<compile_context>
chip_gen: v6e
topology: v6e:2x2x1
jax: 0.10.0
libtpu: 0.0.40
codegen_flags: <defaults>
</compile_context>

<pallas_src>
import functools

import jax
import jax.numpy as jnp
from jax.experimental import pallas as pl
from jax.experimental.pallas import tpu as pltpu


def _ror_res_unit_kernel(xcol_ref, w1i_ref, b1_ref, w2_ref, bout_ref,
                         out_ref, y1p_ref, *, H, W, Cq):
    """One grid step == one batch image.

    xcol_ref : (1, H*W, 9*Cin)   bf16   im2col'd input (built in the wrapper)
    w1i_ref  : (9*Cin, 2*Cq)     bf16   [conv1 weights | embedded 1x1 identity]
    b1_ref   : (1, Cq)           f32    conv1 folded-BN bias
    w2_ref   : (9, Cq, Cq)       bf16   conv2 folded-BN weights, one (Cq,Cq) per tap
    bout_ref : (1, Cq)           f32    combined conv2 + identity folded-BN bias
    out_ref  : (1, H*W, Cq)      f32    lane-dense output block
    y1p_ref  : (H+2, W+2, Cq)    bf16   VMEM scratch: spatially padded y1
    """
    HW = H * W

    # ---- conv1 + identity as one wide MXU matmul (bf16 in, f32 accumulate) ----
    r = jnp.dot(xcol_ref[0], w1i_ref[...],
                preferred_element_type=jnp.float32)          # (HW, 2*Cq) f32
    y1 = jnp.maximum(r[:, :Cq] + b1_ref[...], 0.0)           # conv1 -> BN -> ReLU
    acc = r[:, Cq:] + bout_ref[...]                          # identity conv + (b2+bid)

    # ---- stage y1 (bf16) into the halo-padded VMEM scratch -------------------
    # Interior is fully rewritten every step; the 1-pixel border is explicitly
    # zeroed every step (cheap, and safe under megacore grid partitioning).
    y1_hwc = y1.astype(jnp.bfloat16).reshape(H, W, Cq)
    y1p_ref[1:H + 1, 1:W + 1, :] = y1_hwc
    zcol = jnp.zeros((H + 2, 1, Cq), jnp.bfloat16)
    y1p_ref[:, 0:1, :] = zcol
    y1p_ref[:, W + 1:W + 2, :] = zcol
    zrow = jnp.zeros((1, W + 2, Cq), jnp.bfloat16)
    y1p_ref[0:1, :, :] = zrow
    y1p_ref[H + 1:H + 2, :, :] = zrow

    # ---- conv2: 9 taps, each a full-width (HW, Cq) @ (Cq, Cq) bf16 matmul ----
    t = 0
    for dy in range(3):
        for dx in range(3):
            patch = y1p_ref[dy:dy + H, dx:dx + W, :].reshape(HW, Cq)
            acc = acc + jnp.dot(patch, w2_ref[t],
                                preferred_element_type=jnp.float32)
            t += 1

    # ---- residual add already folded into acc; final ReLU (last_activate) ----
    out_ref[0] = jnp.maximum(acc, 0.0).astype(out_ref.dtype)


def ror_res_unit(x_nchw, params):
    """x_nchw: (N, Cin, H, W) float32.  Returns (N, Cout, H, W) float32."""
    w1, s1, b1, w2, s2, b2, wid, sid, bid = params
    N, Cin, H, W = x_nchw.shape
    Cout = w1.shape[-1]
    HW = H * W
    Cq = ((Cout + 127) // 128) * 128          # lane-dense channel count

    # ---- fold eval-mode BN scales into the conv weights ----------------------
    w1f = w1 * s1                              # (3,3,Cin,Cout)
    w2f = w2 * s2                              # (3,3,Cout,Cout)
    widf = wid * sid                           # (Cin,Cout)
    b_out = b2 + bid                           # combined additive bias (Cout,)

    # ---- pad Cout -> Cq and build the matmul-shaped weight matrices ----------
    w1col = jnp.pad(w1f, ((0, 0), (0, 0), (0, 0), (0, Cq - Cout))
                    ).reshape(9 * Cin, Cq)
    # identity 1x1 conv embedded at the centre tap (dy=1, dx=1) of the im2col K
    wid_emb = jnp.zeros((9 * Cin, Cq), jnp.float32
                        ).at[4 * Cin:5 * Cin, :Cout].set(widf)
    w1i = jnp.concatenate([w1col, wid_emb], axis=1).astype(jnp.bfloat16)
    w2col = jnp.pad(w2f, ((0, 0), (0, 0), (0, Cq - Cout), (0, Cq - Cout))
                    ).reshape(9, Cq, Cq).astype(jnp.bfloat16)
    b1p = jnp.pad(b1, (0, Cq - Cout)).reshape(1, Cq).astype(jnp.float32)
    boutp = jnp.pad(b_out, (0, Cq - Cout)).reshape(1, Cq).astype(jnp.float32)

    # ---- im2col of the (small-Cin) input in the wrapper -----------------------
    # Cin is tiny here, so the 9x inflation of x is a few tens of KB and removes
    # all unaligned input slicing from the kernel; the heavy activation (y1)
    # im2col/halo stays in-kernel.
    x_nhwc = jnp.transpose(x_nchw, (0, 2, 3, 1)).astype(jnp.float32)
    xp = jnp.pad(x_nhwc, ((0, 0), (1, 1), (1, 1), (0, 0)))
    cols = [xp[:, dy:dy + H, dx:dx + W, :] for dy in range(3) for dx in range(3)]
    xcol = jnp.concatenate(cols, axis=-1).reshape(N, HW, 9 * Cin
                                                  ).astype(jnp.bfloat16)

    kernel = functools.partial(_ror_res_unit_kernel, H=H, W=W, Cq=Cq)

    out = pl.pallas_call(
        kernel,
        out_shape=jax.ShapeDtypeStruct((N, HW, Cq), jnp.float32),
        grid_spec=pltpu.PrefetchScalarGridSpec(
            num_scalar_prefetch=0,
            grid=(N,),
            in_specs=[
                pl.BlockSpec((1, HW, 9 * Cin), lambda n: (n, 0, 0)),
                pl.BlockSpec((9 * Cin, 2 * Cq), lambda n: (0, 0)),
                pl.BlockSpec((1, Cq), lambda n: (0, 0)),
                pl.BlockSpec((9, Cq, Cq), lambda n: (0, 0, 0)),
                pl.BlockSpec((1, Cq), lambda n: (0, 0)),
            ],
            out_specs=pl.BlockSpec((1, HW, Cq), lambda n: (n, 0, 0)),
            scratch_shapes=[pltpu.VMEM((H + 2, W + 2, Cq), jnp.bfloat16)],
        ),
        compiler_params=pltpu.CompilerParams(
            dimension_semantics=("parallel",),
            vmem_limit_bytes=32 * 1024 * 1024,
        ),
    )(xcol, w1i, b1p, w2col, boutp)

    out = out[:, :, :Cout].reshape(N, H, W, Cout)
    return jnp.transpose(out, (0, 3, 1, 2))


# --------------------------- parameters & reference ---------------------------

def _fold_bn(gamma, beta, mean, var, eps=1e-5):
    scale = gamma / jnp.sqrt(var + eps)
    return scale, beta - mean * scale          # (C,), (C,)


def make_params(key, cin, cout):
    ks = jax.random.split(key, 12)
    # conv weights in HWIO layout (kh, kw, cin, cout)
    w1 = 0.1 * jax.random.normal(ks[0], (3, 3, cin, cout), jnp.float32)
    w2 = 0.1 * jax.random.normal(ks[1], (3, 3, cout, cout), jnp.float32)
    wid = 0.1 * jax.random.normal(ks[2], (cin, cout), jnp.float32)

    def bn(k0, k1, k2, k3, c):
        gamma = 1.0 + 0.1 * jax.random.normal(k0, (c,), jnp.float32)
        beta = 0.1 * jax.random.normal(k1, (c,), jnp.float32)
        mean = 0.1 * jax.random.normal(k2, (c,), jnp.float32)
        var = 1.0 + 0.1 * jax.random.uniform(k3, (c,), jnp.float32)
        return _fold_bn(gamma, beta, mean, var)

    s1, b1 = bn(ks[3], ks[4], ks[5], ks[6], cout)
    s2, b2 = bn(ks[7], ks[8], ks[9], ks[10], cout)
    sid, bid = bn(*jax.random.split(ks[11], 4), cout)
    return (w1, s1, b1, w2, s2, b2, wid, sid, bid)


def ror_res_unit_reference(x_nchw, params):
    """Pure-JAX (lax.conv) reference, numerically matched to the kernel's
    bf16-operand / f32-accumulation path (folded eval-mode BN)."""
    w1, s1, b1, w2, s2, b2, wid, sid, bid = params
    x = jnp.transpose(x_nchw, (0, 2, 3, 1)).astype(jnp.float32)
    w1f = (w1 * s1).astype(jnp.bfloat16)
    w2f = (w2 * s2).astype(jnp.bfloat16)
    widf = (wid * sid).astype(jnp.bfloat16)[None, None]

    def conv(v, w, p):
        return jax.lax.conv_general_dilated(
            v.astype(jnp.bfloat16), w, (1, 1), [(p, p), (p, p)],
            dimension_numbers=("NHWC", "HWIO", "NHWC"),
            preferred_element_type=jnp.float32)

    y1 = jnp.maximum(conv(x, w1f, 1) + b1, 0.0)
    body = conv(y1, w2f, 1) + b2
    ident = conv(x, widf, 0) + bid
    out = jnp.maximum(body + ident, 0.0)
    return jnp.transpose(out, (0, 3, 1, 2))


if __name__ == "__main__":
    N, Cin, Cout, H, W = 2, 4, 8, 16, 16
    key = jax.random.PRNGKey(0)
    kx, kp = jax.random.split(key)
    x = jax.random.normal(kx, (N, Cin, H, W), jnp.float32)
    params = make_params(kp, Cin, Cout)

    ror_fn = jax.jit(ror_res_unit)
    ref_fn = jax.jit(ror_res_unit_reference)

    out = jax.block_until_ready(ror_fn(x, params))
    ref = jax.block_until_ready(ref_fn(x, params))

    assert out.shape == (N, Cout, H, W)
    err = float(jnp.max(jnp.abs(out - ref)))
    assert jnp.allclose(out, ref, atol=1e-2, rtol=1e-2), err
    print("KERNEL_OK")
</pallas_src>

<mosaic_0001>
module attributes {stable_mosaic.version = 11 : i64} {
  func.func @_ror_res_unit_kernel(%arg0: i32, %arg1: memref<1x256x36xbf16, #tpu.memory_space<vmem>>, %arg2: memref<36x256xbf16, #tpu.memory_space<vmem>>, %arg3: memref<1x128xf32, #tpu.memory_space<vmem>>, %arg4: memref<9x128x128xbf16, #tpu.memory_space<vmem>>, %arg5: memref<1x128xf32, #tpu.memory_space<vmem>>, %arg6: memref<1x256x128xf32, #tpu.memory_space<vmem>>, %arg7: memref<18x18x128xbf16, #tpu.memory_space<vmem>>) attributes {dimension_semantics = [#tpu.dimension_semantics<parallel>], iteration_bounds = array<i64: 2>, scalar_prefetch = 0 : i64, scratch_operands = 1 : i64, tpu.core_type = #tpu.core_type<tc>, window_params = [{transform_indices = @transform_0, window_bounds = array<i64: 1, 256, 36>}, {pipeline_mode = #tpu.pipeline_mode<synchronous>, transform_indices = @transform_1, window_bounds = array<i64: 36, 256>}, {pipeline_mode = #tpu.pipeline_mode<synchronous>, transform_indices = @transform_2, window_bounds = array<i64: 1, 128>}, {pipeline_mode = #tpu.pipeline_mode<synchronous>, transform_indices = @transform_3, window_bounds = array<i64: 9, 128, 128>}, {pipeline_mode = #tpu.pipeline_mode<synchronous>, transform_indices = @transform_4, window_bounds = array<i64: 1, 128>}, {transform_indices = @transform_5, window_bounds = array<i64: 1, 256, 128>}]} {
    %c0 = arith.constant 0 : index
    %c0_0 = arith.constant 0 : index
    %c0_1 = arith.constant 0 : index
    %0 = vector.load %arg1[%c0, %c0_0, %c0_1] : memref<1x256x36xbf16, #tpu.memory_space<vmem>>, vector<1x256x36xbf16>
    %1 = vector.shape_cast %0 : vector<1x256x36xbf16> to vector<256x36xbf16>
    %c0_2 = arith.constant 0 : index
    %c0_3 = arith.constant 0 : index
    %2 = vector.load %arg2[%c0_2, %c0_3] : memref<36x256xbf16, #tpu.memory_space<vmem>>, vector<36x256xbf16>
    %cst = arith.constant dense<0.000000e+00> : vector<256x256xf32>
    %3 = tpu.matmul %1, %2, %cst {dimension_numbers = #tpu.dot_dimension_numbers<[1], [0], [0], [1], [0, 0, 1, 1], [], []>} : vector<256x36xbf16>, vector<36x256xbf16>, vector<256x256xf32> -> vector<256x256xf32>
    %4 = vector.extract_strided_slice %3 {offsets = [0, 0], sizes = [256, 128], strides = [1, 1]} : vector<256x256xf32> to vector<256x128xf32>
    %c0_4 = arith.constant 0 : index
    %c0_5 = arith.constant 0 : index
    %5 = vector.load %arg3[%c0_4, %c0_5] : memref<1x128xf32, #tpu.memory_space<vmem>>, vector<1x128xf32>
    %6 = vector.broadcast %5 : vector<1x128xf32> to vector<256x128xf32>
    %7 = arith.addf %4, %6 : vector<256x128xf32>
    %cst_6 = arith.constant 0.000000e+00 : f32
    %8 = vector.broadcast %cst_6 : f32 to vector<256x128xf32>
    %9 = arith.maximumf %7, %8 : vector<256x128xf32>
    %10 = vector.extract_strided_slice %3 {offsets = [0, 128], sizes = [256, 128], strides = [1, 1]} : vector<256x256xf32> to vector<256x128xf32>
    %c0_7 = arith.constant 0 : index
    %c0_8 = arith.constant 0 : index
    %11 = vector.load %arg5[%c0_7, %c0_8] : memref<1x128xf32, #tpu.memory_space<vmem>>, vector<1x128xf32>
    %12 = vector.broadcast %11 : vector<1x128xf32> to vector<256x128xf32>
    %13 = arith.addf %10, %12 : vector<256x128xf32>
    %14 = arith.truncf %9 : vector<256x128xf32> to vector<256x128xbf16>
    %15 = vector.shape_cast %14 : vector<256x128xbf16> to vector<16x16x128xbf16>
    %c1 = arith.constant 1 : index
    %c1_9 = arith.constant 1 : index
    %c0_10 = arith.constant 0 : index
    %16 = vector.load %arg7[%c1, %c1_9, %c0_10] : memref<18x18x128xbf16, #tpu.memory_space<vmem>>, vector<16x16x128xbf16>
    tpu.vector_store %arg7[%c1, %c1_9, %c0_10], %15 {strides = array<i32>} : memref<18x18x128xbf16, #tpu.memory_space<vmem>>, vector<16x16x128xbf16>,
    %cst_11 = arith.constant 0.000000e+00 : bf16
    %17 = vector.broadcast %cst_11 : bf16 to vector<18x1x128xbf16>
    %c0_12 = arith.constant 0 : index
    %c0_13 = arith.constant 0 : index
    %c0_14 = arith.constant 0 : index
    %18 = vector.load %arg7[%c0_12, %c0_13, %c0_14] : memref<18x18x128xbf16, #tpu.memory_space<vmem>>, vector<18x1x128xbf16>
    tpu.vector_store %arg7[%c0_12, %c0_13, %c0_14], %17 {strides = array<i32>} : memref<18x18x128xbf16, #tpu.memory_space<vmem>>, vector<18x1x128xbf16>,
    %c0_15 = arith.constant 0 : index
    %c17 = arith.constant 17 : index
    %c0_16 = arith.constant 0 : index
    %19 = vector.load %arg7[%c0_15, %c17, %c0_16] : memref<18x18x128xbf16, #tpu.memory_space<vmem>>, vector<18x1x128xbf16>
    tpu.vector_store %arg7[%c0_15, %c17, %c0_16], %17 {strides = array<i32>} : memref<18x18x128xbf16, #tpu.memory_space<vmem>>, vector<18x1x128xbf16>,
    %cst_17 = arith.constant 0.000000e+00 : bf16
    %20 = vector.broadcast %cst_17 : bf16 to vector<1x18x128xbf16>
    %c0_18 = arith.constant 0 : index
    %c0_19 = arith.constant 0 : index
    %c0_20 = arith.constant 0 : index
    %21 = vector.load %arg7[%c0_18, %c0_19, %c0_20] : memref<18x18x128xbf16, #tpu.memory_space<vmem>>, vector<1x18x128xbf16>
    tpu.vector_store %arg7[%c0_18, %c0_19, %c0_20], %20 {strides = array<i32>} : memref<18x18x128xbf16, #tpu.memory_space<vmem>>, vector<1x18x128xbf16>,
    %c17_21 = arith.constant 17 : index
    %c0_22 = arith.constant 0 : index
    %c0_23 = arith.constant 0 : index
    %22 = vector.load %arg7[%c17_21, %c0_22, %c0_23] : memref<18x18x128xbf16, #tpu.memory_space<vmem>>, vector<1x18x128xbf16>
    tpu.vector_store %arg7[%c17_21, %c0_22, %c0_23], %20 {strides = array<i32>} : memref<18x18x128xbf16, #tpu.memory_space<vmem>>, vector<1x18x128xbf16>,
    %c0_24 = arith.constant 0 : index
    %c0_25 = arith.constant 0 : index
    %c0_26 = arith.constant 0 : index
    %23 = vector.load %arg7[%c0_24, %c0_25, %c0_26] : memref<18x18x128xbf16, #tpu.memory_space<vmem>>, vector<16x16x128xbf16>
    %24 = vector.shape_cast %23 : vector<16x16x128xbf16> to vector<256x128xbf16>
    %c0_27 = arith.constant 0 : index
    %c0_28 = arith.constant 0 : index
    %c0_29 = arith.constant 0 : index
    %25 = vector.load %arg4[%c0_27, %c0_28, %c0_29] : memref<9x128x128xbf16, #tpu.memory_space<vmem>>, vector<1x128x128xbf16>
    %26 = vector.shape_cast %25 : vector<1x128x128xbf16> to vector<128x128xbf16>
    %cst_30 = arith.constant dense<0.000000e+00> : vector<256x128xf32>
    %27 = tpu.matmul %24, %26, %cst_30 {dimension_numbers = #tpu.dot_dimension_numbers<[1], [0], [0], [1], [0, 0, 1, 1], [], []>} : vector<256x128xbf16>, vector<128x128xbf16>, vector<256x128xf32> -> vector<256x128xf32>
    %28 = arith.addf %13, %27 : vector<256x128xf32>
    %c0_31 = arith.constant 0 : index
    %c1_32 = arith.constant 1 : index
    %c0_33 = arith.constant 0 : index
    %29 = vector.load %arg7[%c0_31, %c1_32, %c0_33] : memref<18x18x128xbf16, #tpu.memory_space<vmem>>, vector<16x16x128xbf16>
    %30 = vector.shape_cast %29 : vector<16x16x128xbf16> to vector<256x128xbf16>
    %c1_34 = arith.constant 1 : index
    %c0_35 = arith.constant 0 : index
    %c0_36 = arith.constant 0 : index
    %31 = vector.load %arg4[%c1_34, %c0_35, %c0_36] : memref<9x128x128xbf16, #tpu.memory_space<vmem>>, vector<1x128x128xbf16>
    %32 = vector.shape_cast %31 : vector<1x128x128xbf16> to vector<128x128xbf16>
    %cst_37 = arith.constant dense<0.000000e+00> : vector<256x128xf32>
    %33 = tpu.matmul %30, %32, %cst_37 {dimension_numbers = #tpu.dot_dimension_numbers<[1], [0], [0], [1], [0, 0, 1, 1], [], []>} : vector<256x128xbf16>, vector<128x128xbf16>, vector<256x128xf32> -> vector<256x128xf32>
    %34 = arith.addf %28, %33 : vector<256x128xf32>
    %c0_38 = arith.constant 0 : index
    %c2 = arith.constant 2 : index
    %c0_39 = arith.constant 0 : index
    %35 = vector.load %arg7[%c0_38, %c2, %c0_39] : memref<18x18x128xbf16, #tpu.memory_space<vmem>>, vector<16x16x128xbf16>
    %36 = vector.shape_cast %35 : vector<16x16x128xbf16> to vector<256x128xbf16>
    %c2_40 = arith.constant 2 : index
    %c0_41 = arith.constant 0 : index
    %c0_42 = arith.constant 0 : index
    %37 = vector.load %arg4[%c2_40, %c0_41, %c0_42] : memref<9x128x128xbf16, #tpu.memory_space<vmem>>, vector<1x128x128xbf16>
    %38 = vector.shape_cast %37 : vector<1x128x128xbf16> to vector<128x128xbf16>
    %cst_43 = arith.constant dense<0.000000e+00> : vector<256x128xf32>
    %39 = tpu.matmul %36, %38, %cst_43 {dimension_numbers = #tpu.dot_dimension_numbers<[1], [0], [0], [1], [0, 0, 1, 1], [], []>} : vector<256x128xbf16>, vector<128x128xbf16>, vector<256x128xf32> -> vector<256x128xf32>
    %40 = arith.addf %34, %39 : vector<256x128xf32>
    %c1_44 = arith.constant 1 : index
    %c0_45 = arith.constant 0 : index
    %c0_46 = arith.constant 0 : index
    %41 = vector.load %arg7[%c1_44, %c0_45, %c0_46] : memref<18x18x128xbf16, #tpu.memory_space<vmem>>, vector<16x16x128xbf16>
    %42 = vector.shape_cast %41 : vector<16x16x128xbf16> to vector<256x128xbf16>
    %c3 = arith.constant 3 : index
    %c0_47 = arith.constant 0 : index
    %c0_48 = arith.constant 0 : index
    %43 = vector.load %arg4[%c3, %c0_47, %c0_48] : memref<9x128x128xbf16, #tpu.memory_space<vmem>>, vector<1x128x128xbf16>
    %44 = vector.shape_cast %43 : vector<1x128x128xbf16> to vector<128x128xbf16>
    %cst_49 = arith.constant dense<0.000000e+00> : vector<256x128xf32>
    %45 = tpu.matmul %42, %44, %cst_49 {dimension_numbers = #tpu.dot_dimension_numbers<[1], [0], [0], [1], [0, 0, 1, 1], [], []>} : vector<256x128xbf16>, vector<128x128xbf16>, vector<256x128xf32> -> vector<256x128xf32>
    %46 = arith.addf %40, %45 : vector<256x128xf32>
    %c1_50 = arith.constant 1 : index
    %c1_51 = arith.constant 1 : index
    %c0_52 = arith.constant 0 : index
    %47 = vector.load %arg7[%c1_50, %c1_51, %c0_52] : memref<18x18x128xbf16, #tpu.memory_space<vmem>>, vector<16x16x128xbf16>
    %48 = vector.shape_cast %47 : vector<16x16x128xbf16> to vector<256x128xbf16>
    %c4 = arith.constant 4 : index
    %c0_53 = arith.constant 0 : index
    %c0_54 = arith.constant 0 : index
    %49 = vector.load %arg4[%c4, %c0_53, %c0_54] : memref<9x128x128xbf16, #tpu.memory_space<vmem>>, vector<1x128x128xbf16>
    %50 = vector.shape_cast %49 : vector<1x128x128xbf16> to vector<128x128xbf16>
    %cst_55 = arith.constant dense<0.000000e+00> : vector<256x128xf32>
    %51 = tpu.matmul %48, %50, %cst_55 {dimension_numbers = #tpu.dot_dimension_numbers<[1], [0], [0], [1], [0, 0, 1, 1], [], []>} : vector<256x128xbf16>, vector<128x128xbf16>, vector<256x128xf32> -> vector<256x128xf32>
    %52 = arith.addf %46, %51 : vector<256x128xf32>
    %c1_56 = arith.constant 1 : index
    %c2_57 = arith.constant 2 : index
    %c0_58 = arith.constant 0 : index
    %53 = vector.load %arg7[%c1_56, %c2_57, %c0_58] : memref<18x18x128xbf16, #tpu.memory_space<vmem>>, vector<16x16x128xbf16>
    %54 = vector.shape_cast %53 : vector<16x16x128xbf16> to vector<256x128xbf16>
    %c5 = arith.constant 5 : index
    %c0_59 = arith.constant 0 : index
    %c0_60 = arith.constant 0 : index
    %55 = vector.load %arg4[%c5, %c0_59, %c0_60] : memref<9x128x128xbf16, #tpu.memory_space<vmem>>, vector<1x128x128xbf16>
    %56 = vector.shape_cast %55 : vector<1x128x128xbf16> to vector<128x128xbf16>
    %cst_61 = arith.constant dense<0.000000e+00> : vector<256x128xf32>
    %57 = tpu.matmul %54, %56, %cst_61 {dimension_numbers = #tpu.dot_dimension_numbers<[1], [0], [0], [1], [0, 0, 1, 1], [], []>} : vector<256x128xbf16>, vector<128x128xbf16>, vector<256x128xf32> -> vector<256x128xf32>
    %58 = arith.addf %52, %57 : vector<256x128xf32>
    %c2_62 = arith.constant 2 : index
    %c0_63 = arith.constant 0 : index
    %c0_64 = arith.constant 0 : index
    %59 = vector.load %arg7[%c2_62, %c0_63, %c0_64] : memref<18x18x128xbf16, #tpu.memory_space<vmem>>, vector<16x16x128xbf16>
    %60 = vector.shape_cast %59 : vector<16x16x128xbf16> to vector<256x128xbf16>
    %c6 = arith.constant 6 : index
    %c0_65 = arith.constant 0 : index
    %c0_66 = arith.constant 0 : index
    %61 = vector.load %arg4[%c6, %c0_65, %c0_66] : memref<9x128x128xbf16, #tpu.memory_space<vmem>>, vector<1x128x128xbf16>
    %62 = vector.shape_cast %61 : vector<1x128x128xbf16> to vector<128x128xbf16>
    %cst_67 = arith.constant dense<0.000000e+00> : vector<256x128xf32>
    %63 = tpu.matmul %60, %62, %cst_67 {dimension_numbers = #tpu.dot_dimension_numbers<[1], [0], [0], [1], [0, 0, 1, 1], [], []>} : vector<256x128xbf16>, vector<128x128xbf16>, vector<256x128xf32> -> vector<256x128xf32>
    %64 = arith.addf %58, %63 : vector<256x128xf32>
    %c2_68 = arith.constant 2 : index
    %c1_69 = arith.constant 1 : index
    %c0_70 = arith.constant 0 : index
    %65 = vector.load %arg7[%c2_68, %c1_69, %c0_70] : memref<18x18x128xbf16, #tpu.memory_space<vmem>>, vector<16x16x128xbf16>
    %66 = vector.shape_cast %65 : vector<16x16x128xbf16> to vector<256x128xbf16>
    %c7 = arith.constant 7 : index
    %c0_71 = arith.constant 0 : index
    %c0_72 = arith.constant 0 : index
    %67 = vector.load %arg4[%c7, %c0_71, %c0_72] : memref<9x128x128xbf16, #tpu.memory_space<vmem>>, vector<1x128x128xbf16>
    %68 = vector.shape_cast %67 : vector<1x128x128xbf16> to vector<128x128xbf16>
    %cst_73 = arith.constant dense<0.000000e+00> : vector<256x128xf32>
    %69 = tpu.matmul %66, %68, %cst_73 {dimension_numbers = #tpu.dot_dimension_numbers<[1], [0], [0], [1], [0, 0, 1, 1], [], []>} : vector<256x128xbf16>, vector<128x128xbf16>, vector<256x128xf32> -> vector<256x128xf32>
    %70 = arith.addf %64, %69 : vector<256x128xf32>
    %c2_74 = arith.constant 2 : index
    %c2_75 = arith.constant 2 : index
    %c0_76 = arith.constant 0 : index
    %71 = vector.load %arg7[%c2_74, %c2_75, %c0_76] : memref<18x18x128xbf16, #tpu.memory_space<vmem>>, vector<16x16x128xbf16>
    %72 = vector.shape_cast %71 : vector<16x16x128xbf16> to vector<256x128xbf16>
    %c8 = arith.constant 8 : index
    %c0_77 = arith.constant 0 : index
    %c0_78 = arith.constant 0 : index
    %73 = vector.load %arg4[%c8, %c0_77, %c0_78] : memref<9x128x128xbf16, #tpu.memory_space<vmem>>, vector<1x128x128xbf16>
    %74 = vector.shape_cast %73 : vector<1x128x128xbf16> to vector<128x128xbf16>
    %cst_79 = arith.constant dense<0.000000e+00> : vector<256x128xf32>
    %75 = tpu.matmul %72, %74, %cst_79 {dimension_numbers = #tpu.dot_dimension_numbers<[1], [0], [0], [1], [0, 0, 1, 1], [], []>} : vector<256x128xbf16>, vector<128x128xbf16>, vector<256x128xf32> -> vector<256x128xf32>
    %76 = arith.addf %70, %75 : vector<256x128xf32>
    %cst_80 = arith.constant 0.000000e+00 : f32
    %77 = vector.broadcast %cst_80 : f32 to vector<256x128xf32>
    %78 = arith.maximumf %76, %77 : vector<256x128xf32>
    %c0_81 = arith.constant 0 : index
    %c0_82 = arith.constant 0 : index
    %c0_83 = arith.constant 0 : index
    %79 = vector.load %arg6[%c0_81, %c0_82, %c0_83] : memref<1x256x128xf32, #tpu.memory_space<vmem>>, vector<1x256x128xf32>
    %80 = vector.shape_cast %79 : vector<1x256x128xf32> to vector<256x128xf32>
    %81 = vector.shape_cast %78 : vector<256x128xf32> to vector<1x256x128xf32>
    tpu.vector_store %arg6[%c0_81, %c0_82, %c0_83], %81 {strides = array<i32>} : memref<1x256x128xf32, #tpu.memory_space<vmem>>, vector<1x256x128xf32>,
    return
  }
  func.func @transform_0(%arg0: i32) -> (i32, i32, i32) {
    %c0_i32 = arith.constant 0 : i32
    %c0_i32_0 = arith.constant 0 : i32
    %c0_i32_1 = arith.constant 0 : i32
    return %arg0, %c0_i32, %c0_i32_0 : i32, i32, i32
  }
  func.func @transform_1(%arg0: i32) -> (i32, i32) {
    %c0_i32 = arith.constant 0 : i32
    %c0_i32_0 = arith.constant 0 : i32
    %c0_i32_1 = arith.constant 0 : i32
    return %c0_i32, %c0_i32_0 : i32, i32
  }
  func.func @transform_2(%arg0: i32) -> (i32, i32) {
    %c0_i32 = arith.constant 0 : i32
    %c0_i32_0 = arith.constant 0 : i32
    %c0_i32_1 = arith.constant 0 : i32
    return %c0_i32, %c0_i32_0 : i32, i32
  }
  func.func @transform_3(%arg0: i32) -> (i32, i32, i32) {
    %c0_i32 = arith.constant 0 : i32
    %c0_i32_0 = arith.constant 0 : i32
    %c0_i32_1 = arith.constant 0 : i32
    %c0_i32_2 = arith.constant 0 : i32
    return %c0_i32, %c0_i32_0, %c0_i32_1 : i32, i32, i32
  }
  func.func @transform_4(%arg0: i32) -> (i32, i32) {
    %c0_i32 = arith.constant 0 : i32
    %c0_i32_0 = arith.constant 0 : i32
    %c0_i32_1 = arith.constant 0 : i32
    return %c0_i32, %c0_i32_0 : i32, i32
  }
  func.func @transform_5(%arg0: i32) -> (i32, i32, i32) {
    %c0_i32 = arith.constant 0 : i32
    %c0_i32_0 = arith.constant 0 : i32
    %c0_i32_1 = arith.constant 0 : i32
    return %arg0, %c0_i32, %c0_i32_0 : i32, i32, i32
  }
}

</mosaic_0001>

<llo_original>
// kernel: ror_res_unit.1
$region0: #{ror_res_unit.1}
  #allocation0 [shape = 'u32[]', space=smem, size = 0x4, offset = 0x4, fixed_abs, tag = 'smem constant byte address 0x4 - core index']
  #allocation1 [shape = 'u32[144,128]{1,0:T(1,128)}', space=vmem, size = 0x12000, scoped, tag = 'internal scratch']
  #allocation2 [shape = 'bf16[18,18,128]{2,1,0:T(8,128)(2,1)}', space=vmem, size = 0x1b000, scoped, tag = 'scratch operand']
  %s0 = inlined_call_operand.vmem [shape: bf16[2,256,36], index: 0, kind: input, shape index: {}]
  %s1 = inlined_call_operand.vmem [shape: bf16[36,256], index: 1, kind: input, shape index: {}]
  %s2 = inlined_call_operand.vmem [shape: f32[1,128], index: 2, kind: input, shape index: {}]
  %s3 = inlined_call_operand.vmem [shape: bf16[9,128,128], index: 3, kind: input, shape index: {}]
  %s4 = inlined_call_operand.vmem [shape: f32[1,128], index: 4, kind: input, shape index: {}]
  %s5 = inlined_call_operand.vmem [shape: f32[2,256,128], index: 5, kind: output, shape index: {}]
  %s6 = sld [smem:[#allocation0]]
  $region53: #{ror_res_unit.1} parent=0
    _
  %s8 = ssub.s32 1, %s6
  %s9 = scalar_select 0, %s8, %s6
  loop: start=0, step=1, limit=4
  $region2: #{ror_res_unit.1} parent=0 // loop_pre_header
    _
  $region3: #{ror_res_unit.1} parent=0 // loop_header
    %s11 = sphi 0, %s15
    %p12 = scmp.ge.s32.totalorder %s11, 4
    %s21 = sphi 0, %s23
    %s24 = sphi 0, %s21
    %s25 = sphi 0, %s24
    %s41 = sphi 0, %s25
    %s45 = sphi 0, %s45
    %s47 = sphi 0, %s45
    %s48 = sphi 0, %s47
    %s62 = sphi 0, %s48
    %s66 = sphi 0, %s66
    %s68 = sphi 0, %s66
    %s69 = sphi 0, %s68
    %s83 = sphi 0, %s69
    %s87 = sphi 0, %s87
    %s89 = sphi 0, %s87
    %s90 = sphi 0, %s89
    %s104 = sphi 0, %s90
    %s108 = sphi 0, %s108
    %s110 = sphi 0, %s108
    %s111 = sphi 0, %s110
    %s125 = sphi 0, %s111
    %s131 = sphi 0, %s133
    %s134 = sphi 0, %s131
    %s135 = sphi 0, %s134
    %s151 = sphi 0, %s135
  $region4: #{ror_res_unit.1} parent=0 // loop_header_branch
    %14 = sbr.rel (%p12) target = $region8
  $region5: #{ror_res_unit.1} parent=0 // loop_body
    %s16 = ssub.s32 %s11, 1
    %s17 = ssub.s32 %s11, 2
    %s18 = sadd.s32 %s11, 1
    %s19 = ssub.s32 %s11, %s18
    %p20 = scmp.eq.s32.totalorder %s19, 0
    %s22 = sadd.s32 %s21, 1
    %s23 = scalar_select %p20, %s21, %s22
    %p26 = pneg %p20
    %p27 = scmp.eq.s32.totalorder %s11, 1
    %p28 = por %p26, %p27
    %p29 = scmp.ne.s32.totalorder %s21, %s24
    %p30 = scmp.eq.s32.totalorder %s11, 0
    %p31 = por %p29, %p30
    %p32 = scmp.ne.s32.totalorder %s21, %s24
    %p33 = scmp.eq.s32.totalorder %s16, 1
    %p34 = por %p32, %p33
    %p35 = scmp.ne.s32.totalorder %s24, %s25
    %p36 = scmp.eq.s32.totalorder %s16, 0
    %p37 = por %p35, %p36
    %p38 = scmp.ne.s32.totalorder %s24, %s25
    %p39 = scmp.eq.s32.totalorder %s17, 1
    %p40 = por %p38, %p39
    %p42 = scmp.ne.s32.totalorder %s25, %s41
    %p43 = scmp.eq.s32.totalorder %s17, 0
    %p44 = por %p42, %p43
    %s46 = sadd.s32 %s45, 1
    %p49 = scmp.eq.s32.totalorder %s11, 1
    %p50 = scmp.ne.s32.totalorder %s45, %s47
    %p51 = scmp.eq.s32.totalorder %s11, 0
    %p52 = por %p50, %p51
    %p53 = scmp.ne.s32.totalorder %s45, %s47
    %p54 = scmp.eq.s32.totalorder %s16, 1
    %p55 = por %p53, %p54
    %p56 = scmp.ne.s32.totalorder %s47, %s48
    %p57 = scmp.eq.s32.totalorder %s16, 0
    %p58 = por %p56, %p57
    %p59 = scmp.ne.s32.totalorder %s47, %s48
    %p60 = scmp.eq.s32.totalorder %s17, 1
    %p61 = por %p59, %p60
    %p63 = scmp.ne.s32.totalorder %s48, %s62
    %p64 = scmp.eq.s32.totalorder %s17, 0
    %p65 = por %p63, %p64
    %s67 = sadd.s32 %s66, 1
    %p70 = scmp.eq.s32.totalorder %s11, 1
    %p71 = scmp.ne.s32.totalorder %s66, %s68
    %p72 = scmp.eq.s32.totalorder %s11, 0
    %p73 = por %p71, %p72
    %p74 = scmp.ne.s32.totalorder %s66, %s68
    %p75 = scmp.eq.s32.totalorder %s16, 1
    %p76 = por %p74, %p75
    %p77 = scmp.ne.s32.totalorder %s68, %s69
    %p78 = scmp.eq.s32.totalorder %s16, 0
    %p79 = por %p77, %p78
    %p80 = scmp.ne.s32.totalorder %s68, %s69
    %p81 = scmp.eq.s32.totalorder %s17, 1
    %p82 = por %p80, %p81
    %p84 = scmp.ne.s32.totalorder %s69, %s83
    %p85 = scmp.eq.s32.totalorder %s17, 0
    %p86 = por %p84, %p85
    %s88 = sadd.s32 %s87, 1
    %p91 = scmp.eq.s32.totalorder %s11, 1
    %p92 = scmp.ne.s32.totalorder %s87, %s89
    %p93 = scmp.eq.s32.totalorder %s11, 0
    %p94 = por %p92, %p93
    %p95 = scmp.ne.s32.totalorder %s87, %s89
    %p96 = scmp.eq.s32.totalorder %s16, 1
    %p97 = por %p95, %p96
    %p98 = scmp.ne.s32.totalorder %s89, %s90
    %p99 = scmp.eq.s32.totalorder %s16, 0
    %p100 = por %p98, %p99
    %p101 = scmp.ne.s32.totalorder %s89, %s90
    %p102 = scmp.eq.s32.totalorder %s17, 1
    %p103 = por %p101, %p102
    %p105 = scmp.ne.s32.totalorder %s90, %s104
    %p106 = scmp.eq.s32.totalorder %s17, 0
    %p107 = por %p105, %p106
    %s109 = sadd.s32 %s108, 1
    %p112 = scmp.eq.s32.totalorder %s11, 1
    %p113 = scmp.ne.s32.totalorder %s108, %s110
    %p114 = scmp.eq.s32.totalorder %s11, 0
    %p115 = por %p113, %p114
    %p116 = scmp.ne.s32.totalorder %s108, %s110
    %p117 = scmp.eq.s32.totalorder %s16, 1
    %p118 = por %p116, %p117
    %p119 = scmp.ne.s32.totalorder %s110, %s111
    %p120 = scmp.eq.s32.totalorder %s16, 0
    %p121 = por %p119, %p120
    %p122 = scmp.ne.s32.totalorder %s110, %s111
    %p123 = scmp.eq.s32.totalorder %s17, 1
    %p124 = por %p122, %p123
    %p126 = scmp.ne.s32.totalorder %s111, %s125
    %p127 = scmp.eq.s32.totalorder %s17, 0
    %p128 = por %p126, %p127
    %s129 = ssub.s32 %s11, %s18
    %p130 = scmp.eq.s32.totalorder %s129, 0
    %s132 = sadd.s32 %s131, 1
    %s133 = scalar_select %p130, %s131, %s132
    %p136 = pneg %p130
    %p137 = scmp.eq.s32.totalorder %s11, 1
    %p138 = por %p136, %p137
    %p139 = scmp.ne.s32.totalorder %s131, %s134
    %p140 = scmp.eq.s32.totalorder %s11, 0
    %p141 = por %p139, %p140
    %p142 = scmp.ne.s32.totalorder %s131, %s134
    %p143 = scmp.eq.s32.totalorder %s16, 1
    %p144 = por %p142, %p143
    %p145 = scmp.ne.s32.totalorder %s134, %s135
    %p146 = scmp.eq.s32.totalorder %s16, 0
    %p147 = por %p145, %p146
    %p148 = scmp.ne.s32.totalorder %s134, %s135
    %p149 = scmp.eq.s32.totalorder %s17, 1
    %p150 = por %p148, %p149
    %p152 = scmp.ne.s32.totalorder %s135, %s151
    %p153 = scmp.eq.s32.totalorder %s17, 0
    %p154 = por %p152, %p153
    %p155 = scmp.le.s32.totalorder 1, %s11
    %p156 = scmp.lt.s32.totalorder %s11, 3
    %p157 = pnand %p155, %p156
    %p158 = pneg %p157
    // Predicated region
    $region9: #{ror_res_unit.1} parent=5 // pred_check
      _
    $region10: #{ror_res_unit.1} parent=5 // pred_check_branch
      %160 = sbr.rel (%p157) target = $region12
    $region11: #{ror_res_unit.1} parent=5 // pred_region
      %s161 = ssub.s32 %s11, 1
      // Predicated region
      $region13: #{ror_res_unit.1} parent=11 // pred_check
        %p162 = pneg %p58
      $region14: #{ror_res_unit.1} parent=11 // pred_check_branch
        %164 = sbr.rel (%p162) target = $region16
      $region15: #{ror_res_unit.1} parent=11 // pred_region
        _
      $region16: #{ror_res_unit.1} parent=11 // pred_fallthru
        _
      // Predicated region
      $region17: #{ror_res_unit.1} parent=11 // pred_check
        %p165 = pneg %p79
      $region18: #{ror_res_unit.1} parent=11 // pred_check_branch
        %167 = sbr.rel (%p165) target = $region20
      $region19: #{ror_res_unit.1} parent=11 // pred_region
        _
      $region20: #{ror_res_unit.1} parent=11 // pred_fallthru
        _
      // Predicated region
      $region21: #{ror_res_unit.1} parent=11 // pred_check
        %p168 = pneg %p100
      $region22: #{ror_res_unit.1} parent=11 // pred_check_branch
        %170 = sbr.rel (%p168) target = $region24
      $region23: #{ror_res_unit.1} parent=11 // pred_region
        _
      $region24: #{ror_res_unit.1} parent=11 // pred_fallthru
        _
      // Predicated region
      $region25: #{ror_res_unit.1} parent=11 // pred_check
        %p171 = pneg %p121
      $region26: #{ror_res_unit.1} parent=11 // pred_check_branch
        %173 = sbr.rel (%p171) target = $region28
      $region27: #{ror_res_unit.1} parent=11 // pred_region
        _
      $region28: #{ror_res_unit.1} parent=11 // pred_fallthru
        _
    $region12: #{ror_res_unit.1} parent=5 // pred_fallthru
      _
    %p174 = scmp.lt.s32.totalorder %s11, 2
    // Predicated region
    $region29: #{ror_res_unit.1} parent=5 // pred_check
      %p175 = pneg %p174
    $region30: #{ror_res_unit.1} parent=5 // pred_check_branch
      %177 = sbr.rel (%p175) target = $region32
    $region31: #{ror_res_unit.1} parent=5 // pred_region
      // Predicated region
      $region33: #{ror_res_unit.1} parent=31 // pred_check
        %p178 = pneg %p31
      $region34: #{ror_res_unit.1} parent=31 // pred_check_branch
        %180 = sbr.rel (%p178) target = $region36
      $region35: #{ror_res_unit.1} parent=31 // pred_region
        %p181 = scmp.lt.s32.totalorder %s11, 1
        %s182 = scalar_select %p181, %s11, 1
        %s183 = smul.addr %s182, 32
        %s184 = smul.addr %s183, 4
        %s185 = scalar_lea.vmem %s0, %s184
      $region36: #{ror_res_unit.1} parent=31 // pred_fallthru
        _
    $region32: #{ror_res_unit.1} parent=5 // pred_fallthru
      _
    %p186 = scmp.le.s32.totalorder 1, %s11
    %p187 = scmp.lt.s32.totalorder %s11, 3
    %p188 = pnand %p186, %p187
    %p189 = pneg %p188
    // Predicated region
    $region37: #{ror_res_unit.1} parent=5 // pred_check
      _
    $region38: #{ror_res_unit.1} parent=5 // pred_check_branch
      %191 = sbr.rel (%p188) target = $region40
    $region39: #{ror_res_unit.1} parent=5 // pred_region
      %s192 = ssub.s32 %s11, 1
      %p193 = scmp.lt.s32.totalorder %s16, 1
      %s194 = scalar_select %p193, %s16, 1
      %s195 = smul.addr %s194, 32
      %s196 = smul.addr %s195, 4
      %s197 = scalar_lea.vmem %s0, %s196
      %p198 = pneg %p37
      %p199 = pneg %p34
      %p200 = pneg %p58
      %p201 = pneg %p55
      %p202 = pneg %p79
      %p203 = pneg %p76
      %p204 = pneg %p100
      %p205 = pneg %p97
      %p206 = pneg %p121
      %p207 = pneg %p118
      %p208 = pneg %p147
      %p209 = pneg %p144
      %p210 = scmp.lt.s32.totalorder %s16, 1
      %s211 = scalar_select %p210, %s16, 1
      %s212 = smul.addr %s211, 32
      %s213 = smul.addr %s212, 8
      %s214 = scalar_lea.vmem %s5, %s213
      %p215 = scmp.lt.s32.totalorder %s16, 1
      %s216 = scalar_select %p215, %s16, 1
      %s217 = smul.addr %s216, 32
      %s218 = smul.addr %s217, 4
      %s219 = scalar_lea.vmem %s0, %s218
      %p220 = scmp.lt.s32.totalorder %s16, 1
      %s221 = scalar_select %p220, %s16, 1
      %s222 = smul.addr %s221, 32
      %s223 = smul.addr %s222, 8
      %s224 = scalar_lea.vmem %s5, %s223
      %v226 = vld [vmem:[%s219] sm:$0xf]
      %v227 = vld [vmem:[%s219 + $0x4] sm:$0xf]
      %v228 = vld [vmem:[%s219 + $0x8] sm:$0xf]
      %v229 = vld [vmem:[%s219 + $0xc] sm:$0xf]
      %v230 = vld [vmem:[%s219 + $0x10] sm:$0xf]
      %v231 = vld [vmem:[%s219 + $0x14] sm:$0xf]
      %v232 = vld [vmem:[%s219 + $0x18] sm:$0xf]
      %v233 = vld [vmem:[%s219 + $0x1c] sm:$0xf]
      %v234 = vld [vmem:[%s219 + $0x20] sm:$0xf]
      %v235 = vld [vmem:[%s219 + $0x24] sm:$0xf]
      %v236 = vld [vmem:[%s219 + $0x28] sm:$0xf]
      %v237 = vld [vmem:[%s219 + $0x2c] sm:$0xf]
      %v238 = vld [vmem:[%s219 + $0x30] sm:$0xf]
      %v239 = vld [vmem:[%s219 + $0x34] sm:$0xf]
      %v240 = vld [vmem:[%s219 + $0x38] sm:$0xf]
      %v241 = vld [vmem:[%s219 + $0x3c] sm:$0xf]
      %v242 = vld [vmem:[%s219 + $0x40] sm:$0xf]
      %v243 = vld [vmem:[%s219 + $0x44] sm:$0xf]
      %v244 = vld [vmem:[%s219 + $0x48] sm:$0xf]
      %v245 = vld [vmem:[%s219 + $0x4c] sm:$0xf]
      %v246 = vld [vmem:[%s219 + $0x50] sm:$0xf]
      %v247 = vld [vmem:[%s219 + $0x54] sm:$0xf]
      %v248 = vld [vmem:[%s219 + $0x58] sm:$0xf]
      %v249 = vld [vmem:[%s219 + $0x5c] sm:$0xf]
      %v250 = vld [vmem:[%s219 + $0x60] sm:$0xf]
      %v251 = vld [vmem:[%s219 + $0x64] sm:$0xf]
      %v252 = vld [vmem:[%s219 + $0x68] sm:$0xf]
      %v253 = vld [vmem:[%s219 + $0x6c] sm:$0xf]
      %v254 = vld [vmem:[%s219 + $0x70] sm:$0xf]
      %v255 = vld [vmem:[%s219 + $0x74] sm:$0xf]
      %v256 = vld [vmem:[%s219 + $0x78] sm:$0xf]
      %v257 = vld [vmem:[%s219 + $0x7c] sm:$0xf]
      %v258 = vld [vmem:[%s1] sm:$0xff]
      %v259 = vld [vmem:[%s1 + $0x8] sm:$0xff]
      %v260 = vld [vmem:[%s1 + $0x10] sm:$0xff]
      %v261 = vld [vmem:[%s1 + $0x18] sm:$0xff]
      %v262 = vld [vmem:[%s1 + $0x20] sm:$0x33]
      %v295 = vunpack.c.l.b16 %v226
      %v296 = vunpack.c.l.b16 %v227
      %v297 = vunpack.c.l.b16 %v228
      %v298 = vunpack.c.l.b16 %v229
      %v299 = vunpack.c.l.b16 %v230
      %v300 = vunpack.c.l.b16 %v231
      %v301 = vunpack.c.l.b16 %v232
      %v302 = vunpack.c.l.b16 %v233
      %v303 = vunpack.c.l.b16 %v234
      %v304 = vunpack.c.l.b16 %v235
      %v305 = vunpack.c.l.b16 %v236
      %v306 = vunpack.c.l.b16 %v237
      %v307 = vunpack.c.l.b16 %v238
      %v308 = vunpack.c.l.b16 %v239
      %v309 = vunpack.c.l.b16 %v240
      %v310 = vunpack.c.l.b16 %v241
      %v311 = vunpack.c.l.b16 %v242
      %v312 = vunpack.c.l.b16 %v243
      %v313 = vunpack.c.l.b16 %v244
      %v314 = vunpack.c.l.b16 %v245
      %v315 = vunpack.c.l.b16 %v246
      %v316 = vunpack.c.l.b16 %v247
      %v317 = vunpack.c.l.b16 %v248
      %v318 = vunpack.c.l.b16 %v249
      %v319 = vunpack.c.l.b16 %v250
      %v320 = vunpack.c.l.b16 %v251
      %v321 = vunpack.c.l.b16 %v252
      %v322 = vunpack.c.l.b16 %v253
      %v323 = vunpack.c.l.b16 %v254
      %v324 = vunpack.c.l.b16 %v255
      %v325 = vunpack.c.l.b16 %v256
      %v326 = vunpack.c.l.b16 %v257
      %v327 = vpack.c.b16 %v296, %v295
      %v328 = vpack.c.b16 %v298, %v297
      %v329 = vpack.c.b16 %v300, %v299
      %v330 = vpack.c.b16 %v302, %v301
      %v331 = vpack.c.b16 %v304, %v303
      %v332 = vpack.c.b16 %v306, %v305
      %v333 = vpack.c.b16 %v308, %v307
      %v334 = vpack.c.b16 %v310, %v309
      %v335 = vpack.c.b16 %v312, %v311
      %v336 = vpack.c.b16 %v314, %v313
      %v337 = vpack.c.b16 %v316, %v315
      %v338 = vpack.c.b16 %v318, %v317
      %v339 = vpack.c.b16 %v320, %v319
      %v340 = vpack.c.b16 %v322, %v321
      %v341 = vpack.c.b16 %v324, %v323
      %v342 = vpack.c.b16 %v326, %v325
      %v348 = vunpack.c.l.b16 %v258
      %v349 = vunpack.c.h.b16 %v258
      %v350 = vunpack.c.l.b16 %v259
      %v351 = vunpack.c.h.b16 %v259
      %v352 = vunpack.c.l.b16 %v260
      %v353 = vunpack.c.h.b16 %v260
      %v354 = vunpack.c.l.b16 %v261
      %v355 = vunpack.c.h.b16 %v261
      %v356 = vunpack.c.l.b16 %v262
      %v357 = vunpack.c.h.b16 %v262
      %v358 = vpack.c.b16 %v350, %v348
      %v359 = vpack.c.b16 %v351, %v349
      %v360 = vpack.c.b16 %v354, %v352
      %v361 = vpack.c.b16 %v355, %v353
      %v362 = vpack.c.b16 %v356, %v356
      %v363 = vpack.c.b16 %v357, %v357
      %vm368 = vcmask 293888
      %v370 = vsel %vm368, %v327, 0
      %v373 = vsel %vm368, %v328, 0
      %v376 = vsel %vm368, %v329, 0
      %v379 = vsel %vm368, %v330, 0
      %v382 = vsel %vm368, %v331, 0
      %v385 = vsel %vm368, %v332, 0
      %v388 = vsel %vm368, %v333, 0
      %v391 = vsel %vm368, %v334, 0
      %v394 = vsel %vm368, %v335, 0
      %v397 = vsel %vm368, %v336, 0
      %v400 = vsel %vm368, %v337, 0
      %v403 = vsel %vm368, %v338, 0
      %v406 = vsel %vm368, %v339, 0
      %v409 = vsel %vm368, %v340, 0
      %v412 = vsel %vm368, %v341, 0
      %v415 = vsel %vm368, %v342, 0
      %vm417 = vcmask 1041408
      %v419 = vsel %vm417, %v362, 0
      %v422 = vsel %vm417, %v363, 0
      %424 = vmatprep.subr.bf16.mxu0 0
      %425 = vmatpush1.bf16.msra.mxu0 0
      %426 = vmatprep.subr.bf16.mxu0 0
      %427 = vmatpush1.bf16.msra.mxu0 0
      %428 = vmatprep.subr.bf16.mxu0 0
      %429 = vmatpush1.bf16.msra.mxu0 0
      %430 = vmatprep.subr.bf16.mxu0 0
      %431 = vmatpush1.bf16.msra.mxu0 0
      %432 = vmatprep.subr.bf16.mxu0 0
      %433 = vmatpush1.bf16.msra.mxu0 0
      %434 = vmatprep.subr.bf16.mxu0 %v422
      %435 = vmatpush1.bf16.msra.mxu0 %v419
      %436 = vmatprep.subr.bf16.mxu0 %v361
      %437 = vmatpush1.bf16.msra.mxu0 %v360
      %438 = vmatprep.subr.bf16.mxu0 %v359
      %439 = vmatpush1.bf16.msra.mxu0 %v358
      %440 = vmatprep.subr.bf16.mxu0 0
      %441 = vmatpush2.bf16.msra.mxu0 0
      %442 = vmatprep.subr.bf16.mxu0 0
      %443 = vmatpush2.bf16.msra.mxu0 0
      %444 = vmatprep.subr.bf16.mxu0 0
      %445 = vmatpush2.bf16.msra.mxu0 0
      %446 = vmatprep.subr.bf16.mxu0 0
      %447 = vmatpush2.bf16.msra.mxu0 0
      %448 = vmatprep.subr.bf16.mxu0 0
      %449 = vmatpush2.bf16.msra.mxu0 0
      %450 = vmatprep.subr.bf16.mxu0 0
      %451 = vmatpush2.bf16.msra.mxu0 0
      %452 = vmatprep.subr.bf16.mxu0 0
      %453 = vmatpush2.bf16.msra.mxu0 0
      %454 = vmatprep.subr.bf16.mxu0 0
      %455 = vmatpush2.bf16.msra.mxu0 0
      %456 = vmatprep.mubr.bf16.mxu0 0
      %457 = vmatmul.mubr.bf16.gmra.mxu0 %v370
      %v458 = vpop.f32.mrf.mxu0
      %v459 = vadd.f32 0.0, %v458
      %v460 = vpop.f32.mrf.mxu0
      %v461 = vadd.f32 0.0, %v460
      %v462 = vpop.f32.mrf.mxu0
      %v463 = vadd.f32 0.0, %v462
      %v464 = vpop.f32.mrf.mxu0
      %v465 = vadd.f32 0.0, %v464
      %466 = vmatprep.mubr.bf16.mxu0 0
      %467 = vmatmul.mubr.bf16.gmra.mxu0 %v373
      %v468 = vpop.f32.mrf.mxu0
      %v469 = vadd.f32 0.0, %v468
      %v470 = vpop.f32.mrf.mxu0
      %v471 = vadd.f32 0.0, %v470
      %v472 = vpop.f32.mrf.mxu0
      %v473 = vadd.f32 0.0, %v472
      %v474 = vpop.f32.mrf.mxu0
      %v475 = vadd.f32 0.0, %v474
      %476 = vmatprep.mubr.bf16.mxu0 0
      %477 = vmatmul.mubr.bf16.gmra.mxu0 %v376
      %v478 = vpop.f32.mrf.mxu0
      %v479 = vadd.f32 0.0, %v478
      %v480 = vpop.f32.mrf.mxu0
      %v481 = vadd.f32 0.0, %v480
      %v482 = vpop.f32.mrf.mxu0
      %v483 = vadd.f32 0.0, %v482
      %v484 = vpop.f32.mrf.mxu0
      %v485 = vadd.f32 0.0, %v484
      %486 = vmatprep.mubr.bf16.mxu0 0
      %487 = vmatmul.mubr.bf16.gmra.mxu0 %v379
      %v488 = vpop.f32.mrf.mxu0
      %v489 = vadd.f32 0.0, %v488
      %v490 = vpop.f32.mrf.mxu0
      %v491 = vadd.f32 0.0, %v490
      %v492 = vpop.f32.mrf.mxu0
      %v493 = vadd.f32 0.0, %v492
      %v494 = vpop.f32.mrf.mxu0
      %v495 = vadd.f32 0.0, %v494
      %496 = vmatprep.mubr.bf16.mxu0 0
      %497 = vmatmul.mubr.bf16.gmra.mxu0 %v382
      %v498 = vpop.f32.mrf.mxu0
      %v499 = vadd.f32 0.0, %v498
      %v500 = vpop.f32.mrf.mxu0
      %v501 = vadd.f32 0.0, %v500
      %v502 = vpop.f32.mrf.mxu0
      %v503 = vadd.f32 0.0, %v502
      %v504 = vpop.f32.mrf.mxu0
      %v505 = vadd.f32 0.0, %v504
      %506 = vmatprep.mubr.bf16.mxu0 0
      %507 = vmatmul.mubr.bf16.gmra.mxu0 %v385
      %v508 = vpop.f32.mrf.mxu0
      %v509 = vadd.f32 0.0, %v508
      %v510 = vpop.f32.mrf.mxu0
      %v511 = vadd.f32 0.0, %v510
      %v512 = vpop.f32.mrf.mxu0
      %v513 = vadd.f32 0.0, %v512
      %v514 = vpop.f32.mrf.mxu0
      %v515 = vadd.f32 0.0, %v514
      %516 = vmatprep.mubr.bf16.mxu0 0
      %517 = vmatmul.mubr.bf16.gmra.mxu0 %v388
      %v518 = vpop.f32.mrf.mxu0
      %v519 = vadd.f32 0.0, %v518
      %v520 = vpop.f32.mrf.mxu0
      %v521 = vadd.f32 0.0, %v520
      %v522 = vpop.f32.mrf.mxu0
      %v523 = vadd.f32 0.0, %v522
      %v524 = vpop.f32.mrf.mxu0
      %v525 = vadd.f32 0.0, %v524
      %526 = vmatprep.mubr.bf16.mxu0 0
      %527 = vmatmul.mubr.bf16.gmra.mxu0 %v391
      %v528 = vpop.f32.mrf.mxu0
      %v529 = vadd.f32 0.0, %v528
      %v530 = vpop.f32.mrf.mxu0
      %v531 = vadd.f32 0.0, %v530
      %v532 = vpop.f32.mrf.mxu0
      %v533 = vadd.f32 0.0, %v532
      %v534 = vpop.f32.mrf.mxu0
      %v535 = vadd.f32 0.0, %v534
      %536 = vmatprep.mubr.bf16.mxu0 0
      %537 = vmatmul.mubr.bf16.gmra.mxu0 %v394
      %v538 = vpop.f32.mrf.mxu0
      %v539 = vadd.f32 0.0, %v538
      %v540 = vpop.f32.mrf.mxu0
      %v541 = vadd.f32 0.0, %v540
      %v542 = vpop.f32.mrf.mxu0
      %v543 = vadd.f32 0.0, %v542
      %v544 = vpop.f32.mrf.mxu0
      %v545 = vadd.f32 0.0, %v544
      %546 = vmatprep.mubr.bf16.mxu0 0
      %547 = vmatmul.mubr.bf16.gmra.mxu0 %v397
      %v548 = vpop.f32.mrf.mxu0
      %v549 = vadd.f32 0.0, %v548
      %v550 = vpop.f32.mrf.mxu0
      %v551 = vadd.f32 0.0, %v550
      %v552 = vpop.f32.mrf.mxu0
      %v553 = vadd.f32 0.0, %v552
      %v554 = vpop.f32.mrf.mxu0
      %v555 = vadd.f32 0.0, %v554
      %556 = vmatprep.mubr.bf16.mxu0 0
      %557 = vmatmul.mubr.bf16.gmra.mxu0 %v400
      %v558 = vpop.f32.mrf.mxu0
      %v559 = vadd.f32 0.0, %v558
      %v560 = vpop.f32.mrf.mxu0
      %v561 = vadd.f32 0.0, %v560
      %v562 = vpop.f32.mrf.mxu0
      %v563 = vadd.f32 0.0, %v562
      %v564 = vpop.f32.mrf.mxu0
      %v565 = vadd.f32 0.0, %v564
      %566 = vmatprep.mubr.bf16.mxu0 0
      %567 = vmatmul.mubr.bf16.gmra.mxu0 %v403
      %v568 = vpop.f32.mrf.mxu0
      %v569 = vadd.f32 0.0, %v568
      %v570 = vpop.f32.mrf.mxu0
      %v571 = vadd.f32 0.0, %v570
      %v572 = vpop.f32.mrf.mxu0
      %v573 = vadd.f32 0.0, %v572
      %v574 = vpop.f32.mrf.mxu0
      %v575 = vadd.f32 0.0, %v574
      %576 = vmatprep.mubr.bf16.mxu0 0
      %577 = vmatmul.mubr.bf16.gmra.mxu0 %v406
      %v578 = vpop.f32.mrf.mxu0
      %v579 = vadd.f32 0.0, %v578
      %v580 = vpop.f32.mrf.mxu0
      %v581 = vadd.f32 0.0, %v580
      %v582 = vpop.f32.mrf.mxu0
      %v583 = vadd.f32 0.0, %v582
      %v584 = vpop.f32.mrf.mxu0
      %v585 = vadd.f32 0.0, %v584
      %586 = vmatprep.mubr.bf16.mxu0 0
      %587 = vmatmul.mubr.bf16.gmra.mxu0 %v409
      %v588 = vpop.f32.mrf.mxu0
      %v589 = vadd.f32 0.0, %v588
      %v590 = vpop.f32.mrf.mxu0
      %v591 = vadd.f32 0.0, %v590
      %v592 = vpop.f32.mrf.mxu0
      %v593 = vadd.f32 0.0, %v592
      %v594 = vpop.f32.mrf.mxu0
      %v595 = vadd.f32 0.0, %v594
      %596 = vmatprep.mubr.bf16.mxu0 0
      %597 = vmatmul.mubr.bf16.gmra.mxu0 %v412
      %v598 = vpop.f32.mrf.mxu0
      %v599 = vadd.f32 0.0, %v598
      %v600 = vpop.f32.mrf.mxu0
      %v601 = vadd.f32 0.0, %v600
      %v602 = vpop.f32.mrf.mxu0
      %v603 = vadd.f32 0.0, %v602
      %v604 = vpop.f32.mrf.mxu0
      %v605 = vadd.f32 0.0, %v604
      %606 = vmatprep.mubr.bf16.mxu0 0
      %607 = vmatmul.mubr.bf16.gmra.mxu0 %v415
      %v608 = vpop.f32.mrf.mxu0
      %v609 = vadd.f32 0.0, %v608
      %v610 = vpop.f32.mrf.mxu0
      %v611 = vadd.f32 0.0, %v610
      %v612 = vpop.f32.mrf.mxu0
      %v613 = vadd.f32 0.0, %v612
      %v614 = vpop.f32.mrf.mxu0
      %v615 = vadd.f32 0.0, %v614
      %616 = vdwg.mxu0
      %v617 = vld [vmem:[%s2] sm:$0x1]
      %v619 = vlaneseq
      %v620 = vshrl.u32 %v619, 7
      %v621 = vsub.s32 0, %v620
      %v622 = vrot.slane %v617, %v621
      %v624 = vadd.f32 %v459, %v622
      %v625 = vadd.f32 %v463, %v622
      %v626 = vadd.f32 %v469, %v622
      %v627 = vadd.f32 %v473, %v622
      %v628 = vadd.f32 %v479, %v622
      %v629 = vadd.f32 %v483, %v622
      %v630 = vadd.f32 %v489, %v622
      %v631 = vadd.f32 %v493, %v622
      %v632 = vadd.f32 %v499, %v622
      %v633 = vadd.f32 %v503, %v622
      %v634 = vadd.f32 %v509, %v622
      %v635 = vadd.f32 %v513, %v622
      %v636 = vadd.f32 %v519, %v622
      %v637 = vadd.f32 %v523, %v622
      %v638 = vadd.f32 %v529, %v622
      %v639 = vadd.f32 %v533, %v622
      %v640 = vadd.f32 %v539, %v622
      %v641 = vadd.f32 %v543, %v622
      %v642 = vadd.f32 %v549, %v622
      %v643 = vadd.f32 %v553, %v622
      %v644 = vadd.f32 %v559, %v622
      %v645 = vadd.f32 %v563, %v622
      %v646 = vadd.f32 %v569, %v622
      %v647 = vadd.f32 %v573, %v622
      %v648 = vadd.f32 %v579, %v622
      %v649 = vadd.f32 %v583, %v622
      %v650 = vadd.f32 %v589, %v622
      %v651 = vadd.f32 %v593, %v622
      %v652 = vadd.f32 %v599, %v622
      %v653 = vadd.f32 %v603, %v622
      %v654 = vadd.f32 %v609, %v622
      %v655 = vadd.f32 %v613, %v622
      %v656 = vmax.f32 %v624, 0.0
      %v657 = vmax.f32 %v625, 0.0
      %v658 = vmax.f32 %v626, 0.0
      %v659 = vmax.f32 %v627, 0.0
      %v660 = vmax.f32 %v628, 0.0
      %v661 = vmax.f32 %v629, 0.0
      %v662 = vmax.f32 %v630, 0.0
      %v663 = vmax.f32 %v631, 0.0
      %v664 = vmax.f32 %v632, 0.0
      %v665 = vmax.f32 %v633, 0.0
      %v666 = vmax.f32 %v634, 0.0
      %v667 = vmax.f32 %v635, 0.0
      %v668 = vmax.f32 %v636, 0.0
      %v669 = vmax.f32 %v637, 0.0
      %v670 = vmax.f32 %v638, 0.0
      %v671 = vmax.f32 %v639, 0.0
      %v672 = vmax.f32 %v640, 0.0
      %v673 = vmax.f32 %v641, 0.0
      %v674 = vmax.f32 %v642, 0.0
      %v675 = vmax.f32 %v643, 0.0
      %v676 = vmax.f32 %v644, 0.0
      %v677 = vmax.f32 %v645, 0.0
      %v678 = vmax.f32 %v646, 0.0
      %v679 = vmax.f32 %v647, 0.0
      %v680 = vmax.f32 %v648, 0.0
      %v681 = vmax.f32 %v649, 0.0
      %v682 = vmax.f32 %v650, 0.0
      %v683 = vmax.f32 %v651, 0.0
      %v684 = vmax.f32 %v652, 0.0
      %v685 = vmax.f32 %v653, 0.0
      %v686 = vmax.f32 %v654, 0.0
      %v687 = vmax.f32 %v655, 0.0
      %v688 = vld [vmem:[%s4] sm:$0x1]
      %v690 = vlaneseq
      %v691 = vshrl.u32 %v690, 7
      %v692 = vsub.s32 0, %v691
      %v693 = vrot.slane %v688, %v692
      %v695 = vadd.f32 %v461, %v693
      %v696 = vadd.f32 %v465, %v693
      %v697 = vadd.f32 %v471, %v693
      %v698 = vadd.f32 %v475, %v693
      %v699 = vadd.f32 %v481, %v693
      %v700 = vadd.f32 %v485, %v693
      %v701 = vadd.f32 %v491, %v693
      %v702 = vadd.f32 %v495, %v693
      %v703 = vadd.f32 %v501, %v693
      %v704 = vadd.f32 %v505, %v693
      %v705 = vadd.f32 %v511, %v693
      %v706 = vadd.f32 %v515, %v693
      %v707 = vadd.f32 %v521, %v693
      %v708 = vadd.f32 %v525, %v693
      %v709 = vadd.f32 %v531, %v693
      %v710 = vadd.f32 %v535, %v693
      %v711 = vadd.f32 %v541, %v693
      %v712 = vadd.f32 %v545, %v693
      %v713 = vadd.f32 %v551, %v693
      %v714 = vadd.f32 %v555, %v693
      %v715 = vadd.f32 %v561, %v693
      %v716 = vadd.f32 %v565, %v693
      %v717 = vadd.f32 %v571, %v693
      %v718 = vadd.f32 %v575, %v693
      %v719 = vadd.f32 %v581, %v693
      %v720 = vadd.f32 %v585, %v693
      %v721 = vadd.f32 %v591, %v693
      %v722 = vadd.f32 %v595, %v693
      %v723 = vadd.f32 %v601, %v693
      %v724 = vadd.f32 %v605, %v693
      %v725 = vadd.f32 %v611, %v693
      %v726 = vadd.f32 %v615, %v693
      %v727 = vpack.c.bf16 %v657, %v656
      %v728 = vpack.c.bf16 %v659, %v658
      %v729 = vpack.c.bf16 %v661, %v660
      %v730 = vpack.c.bf16 %v663, %v662
      %v731 = vpack.c.bf16 %v665, %v664
      %v732 = vpack.c.bf16 %v667, %v666
      %v733 = vpack.c.bf16 %v669, %v668
      %v734 = vpack.c.bf16 %v671, %v670
      %v735 = vpack.c.bf16 %v673, %v672
      %v736 = vpack.c.bf16 %v675, %v674
      %v737 = vpack.c.bf16 %v677, %v676
      %v738 = vpack.c.bf16 %v679, %v678
      %v739 = vpack.c.bf16 %v681, %v680
      %v740 = vpack.c.bf16 %v683, %v682
      %v741 = vpack.c.bf16 %v685, %v684
      %v742 = vpack.c.bf16 %v687, %v686
      %v759 = vunpack.c.l.b16 %v727
      %v760 = vunpack.c.h.b16 %v727
      %v761 = vunpack.c.l.b16 %v728
      %v762 = vunpack.c.h.b16 %v728
      %v763 = vunpack.c.l.b16 %v729
      %v764 = vunpack.c.h.b16 %v729
      %v765 = vunpack.c.l.b16 %v730
      %v766 = vunpack.c.h.b16 %v730
      %v767 = vunpack.c.l.b16 %v731
      %v768 = vunpack.c.h.b16 %v731
      %v769 = vunpack.c.l.b16 %v732
      %v770 = vunpack.c.h.b16 %v732
      %v771 = vunpack.c.l.b16 %v733
      %v772 = vunpack.c.h.b16 %v733
      %v773 = vunpack.c.l.b16 %v734
      %v774 = vunpack.c.h.b16 %v734
      %v775 = vunpack.c.l.b16 %v735
      %v776 = vunpack.c.h.b16 %v735
      %v777 = vunpack.c.l.b16 %v736
      %v778 = vunpack.c.h.b16 %v736
      %v779 = vunpack.c.l.b16 %v737
      %v780 = vunpack.c.h.b16 %v737
      %v781 = vunpack.c.l.b16 %v738
      %v782 = vunpack.c.h.b16 %v738
      %v783 = vunpack.c.l.b16 %v739
      %v784 = vunpack.c.h.b16 %v739
      %v785 = vunpack.c.l.b16 %v740
      %v786 = vunpack.c.h.b16 %v740
      %v787 = vunpack.c.l.b16 %v741
      %v788 = vunpack.c.h.b16 %v741
      %v789 = vunpack.c.l.b16 %v742
      %v790 = vunpack.c.h.b16 %v742
      %v791 = vpack.c.b16 %v759, %v759
      %v792 = vpack.c.b16 %v760, %v760
      %v793 = vpack.c.b16 %v761, %v761
      %v794 = vpack.c.b16 %v762, %v762
      %v795 = vpack.c.b16 %v763, %v763
      %v796 = vpack.c.b16 %v764, %v764
      %v797 = vpack.c.b16 %v765, %v765
      %v798 = vpack.c.b16 %v766, %v766
      %v799 = vpack.c.b16 %v767, %v767
      %v800 = vpack.c.b16 %v768, %v768
      %v801 = vpack.c.b16 %v769, %v769
      %v802 = vpack.c.b16 %v770, %v770
      %v803 = vpack.c.b16 %v771, %v771
      %v804 = vpack.c.b16 %v772, %v772
      %v805 = vpack.c.b16 %v773, %v773
      %v806 = vpack.c.b16 %v774, %v774
      %v807 = vpack.c.b16 %v775, %v775
      %v808 = vpack.c.b16 %v776, %v776
      %v809 = vpack.c.b16 %v777, %v777
      %v810 = vpack.c.b16 %v778, %v778
      %v811 = vpack.c.b16 %v779, %v779
      %v812 = vpack.c.b16 %v780, %v780
      %v813 = vpack.c.b16 %v781, %v781
      %v814 = vpack.c.b16 %v782, %v782
      %v815 = vpack.c.b16 %v783, %v783
      %v816 = vpack.c.b16 %v784, %v784
      %v817 = vpack.c.b16 %v785, %v785
      %v818 = vpack.c.b16 %v786, %v786
      %v819 = vpack.c.b16 %v787, %v787
      %v820 = vpack.c.b16 %v788, %v788
      %v821 = vpack.c.b16 %v789, %v789
      %v822 = vpack.c.b16 %v790, %v790
      %vm823 = vsmask.f32 256
      %vm824 = vsmask.f32 4368
      %vm825 = vmor %vm823, %vm824
      %v827 = vshrl.u32 %v791, 16
      %v829 = vrot.slane %v827, 7
      %v830 = vshll.u32 %v791, 16
      %v832 = vor.u32 %v829, %v830
      %v833 = vrot.slane %v829, 4
      %v835 = vshrl.u32 %v792, 16
      %v837 = vrot.slane %v835, 7
      %v838 = vshll.u32 %v792, 16
      %v840 = vor.u32 %v837, %v838
      %v841 = vsel %vm825, %v833, %v840
      %v842 = vrot.slane %v837, 4
      %v844 = vshrl.u32 %v793, 16
      %v846 = vrot.slane %v844, 7
      %v847 = vshll.u32 %v793, 16
      %v849 = vor.u32 %v846, %v847
      %v850 = vrot.slane %v846, 4
      %v852 = vshrl.u32 %v794, 16
      %v854 = vrot.slane %v852, 7
      %v855 = vshll.u32 %v794, 16
      %v857 = vor.u32 %v854, %v855
      %v858 = vsel %vm825, %v850, %v857
      %v859 = vrot.slane %v854, 4
      %v861 = vshrl.u32 %v795, 16
      %v863 = vrot.slane %v861, 7
      %v864 = vshll.u32 %v795, 16
      %v866 = vor.u32 %v863, %v864
      %v867 = vrot.slane %v863, 4
      %v869 = vshrl.u32 %v796, 16
      %v871 = vrot.slane %v869, 7
      %v872 = vshll.u32 %v796, 16
      %v874 = vor.u32 %v871, %v872
      %v875 = vsel %vm825, %v867, %v874
      %v876 = vrot.slane %v871, 4
      %v878 = vshrl.u32 %v797, 16
      %v880 = vrot.slane %v878, 7
      %v881 = vshll.u32 %v797, 16
      %v883 = vor.u32 %v880, %v881
      %v884 = vrot.slane %v880, 4
      %v886 = vshrl.u32 %v798, 16
      %v888 = vrot.slane %v886, 7
      %v889 = vshll.u32 %v798, 16
      %v891 = vor.u32 %v888, %v889
      %v892 = vsel %vm825, %v884, %v891
      %v893 = vrot.slane %v888, 4
      %v895 = vshrl.u32 %v799, 16
      %v897 = vrot.slane %v895, 7
      %v898 = vshll.u32 %v799, 16
      %v900 = vor.u32 %v897, %v898
      %v901 = vrot.slane %v897, 4
      %v903 = vshrl.u32 %v800, 16
      %v905 = vrot.slane %v903, 7
      %v906 = vshll.u32 %v800, 16
      %v908 = vor.u32 %v905, %v906
      %v909 = vsel %vm825, %v901, %v908
      %v910 = vrot.slane %v905, 4
      %v912 = vshrl.u32 %v801, 16
      %v914 = vrot.slane %v912, 7
      %v915 = vshll.u32 %v801, 16
      %v917 = vor.u32 %v914, %v915
      %v918 = vrot.slane %v914, 4
      %v920 = vshrl.u32 %v802, 16
      %v922 = vrot.slane %v920, 7
      %v923 = vshll.u32 %v802, 16
      %v925 = vor.u32 %v922, %v923
      %v926 = vsel %vm825, %v918, %v925
      %v927 = vrot.slane %v922, 4
      %v929 = vshrl.u32 %v803, 16
      %v931 = vrot.slane %v929, 7
      %v932 = vshll.u32 %v803, 16
      %v934 = vor.u32 %v931, %v932
      %v935 = vrot.slane %v931, 4
      %v937 = vshrl.u32 %v804, 16
      %v939 = vrot.slane %v937, 7
      %v940 = vshll.u32 %v804, 16
      %v942 = vor.u32 %v939, %v940
      %v943 = vsel %vm825, %v935, %v942
      %v944 = vrot.slane %v939, 4
      %v946 = vshrl.u32 %v805, 16
      %v948 = vrot.slane %v946, 7
      %v949 = vshll.u32 %v805, 16
      %v951 = vor.u32 %v948, %v949
      %v952 = vrot.slane %v948, 4
      %v954 = vshrl.u32 %v806, 16
      %v956 = vrot.slane %v954, 7
      %v957 = vshll.u32 %v806, 16
      %v959 = vor.u32 %v956, %v957
      %v960 = vsel %vm825, %v952, %v959
      %v961 = vrot.slane %v956, 4
      %v963 = vshrl.u32 %v807, 16
      %v965 = vrot.slane %v963, 7
      %v966 = vshll.u32 %v807, 16
      %v968 = vor.u32 %v965, %v966
      %v969 = vrot.slane %v965, 4
      %v971 = vshrl.u32 %v808, 16
      %v973 = vrot.slane %v971, 7
      %v974 = vshll.u32 %v808, 16
      %v976 = vor.u32 %v973, %v974
      %v977 = vsel %vm825, %v969, %v976
      %v978 = vrot.slane %v973, 4
      %v980 = vshrl.u32 %v809, 16
      %v982 = vrot.slane %v980, 7
      %v983 = vshll.u32 %v809, 16
      %v985 = vor.u32 %v982, %v983
      %v986 = vrot.slane %v982, 4
      %v988 = vshrl.u32 %v810, 16
      %v990 = vrot.slane %v988, 7
      %v991 = vshll.u32 %v810, 16
      %v993 = vor.u32 %v990, %v991
      %v994 = vsel %vm825, %v986, %v993
      %v995 = vrot.slane %v990, 4
      %v997 = vshrl.u32 %v811, 16
      %v999 = vrot.slane %v997, 7
      %v1000 = vshll.u32 %v811, 16
      %v1002 = vor.u32 %v999, %v1000
      %v1003 = vrot.slane %v999, 4
      %v1005 = vshrl.u32 %v812, 16
      %v1007 = vrot.slane %v1005, 7
      %v1008 = vshll.u32 %v812, 16
      %v1010 = vor.u32 %v1007, %v1008
      %v1011 = vsel %vm825, %v1003, %v1010
      %v1012 = vrot.slane %v1007, 4
      %v1014 = vshrl.u32 %v813, 16
      %v1016 = vrot.slane %v1014, 7
      %v1017 = vshll.u32 %v813, 16
      %v1019 = vor.u32 %v1016, %v1017
      %v1020 = vrot.slane %v1016, 4
      %v1022 = vshrl.u32 %v814, 16
      %v1024 = vrot.slane %v1022, 7
      %v1025 = vshll.u32 %v814, 16
      %v1027 = vor.u32 %v1024, %v1025
      %v1028 = vsel %vm825, %v1020, %v1027
      %v1029 = vrot.slane %v1024, 4
      %v1031 = vshrl.u32 %v815, 16
      %v1033 = vrot.slane %v1031, 7
      %v1034 = vshll.u32 %v815, 16
      %v1036 = vor.u32 %v1033, %v1034
      %v1037 = vrot.slane %v1033, 4
      %v1039 = vshrl.u32 %v816, 16
      %v1041 = vrot.slane %v1039, 7
      %v1042 = vshll.u32 %v816, 16
      %v1044 = vor.u32 %v1041, %v1042
      %v1045 = vsel %vm825, %v1037, %v1044
      %v1046 = vrot.slane %v1041, 4
      %v1048 = vshrl.u32 %v817, 16
      %v1050 = vrot.slane %v1048, 7
      %v1051 = vshll.u32 %v817, 16
      %v1053 = vor.u32 %v1050, %v1051
      %v1054 = vrot.slane %v1050, 4
      %v1056 = vshrl.u32 %v818, 16
      %v1058 = vrot.slane %v1056, 7
      %v1059 = vshll.u32 %v818, 16
      %v1061 = vor.u32 %v1058, %v1059
      %v1062 = vsel %vm825, %v1054, %v1061
      %v1063 = vrot.slane %v1058, 4
      %v1065 = vshrl.u32 %v819, 16
      %v1067 = vrot.slane %v1065, 7
      %v1068 = vshll.u32 %v819, 16
      %v1070 = vor.u32 %v1067, %v1068
      %v1071 = vrot.slane %v1067, 4
      %v1073 = vshrl.u32 %v820, 16
      %v1075 = vrot.slane %v1073, 7
      %v1076 = vshll.u32 %v820, 16
      %v1078 = vor.u32 %v1075, %v1076
      %v1079 = vsel %vm825, %v1071, %v1078
      %v1080 = vrot.slane %v1075, 4
      %v1082 = vshrl.u32 %v821, 16
      %v1084 = vrot.slane %v1082, 7
      %v1085 = vshll.u32 %v821, 16
      %v1087 = vor.u32 %v1084, %v1085
      %v1088 = vrot.slane %v1084, 4
      %v1090 = vshrl.u32 %v822, 16
      %v1092 = vrot.slane %v1090, 7
      %v1093 = vshll.u32 %v822, 16
      %v1095 = vor.u32 %v1092, %v1093
      %v1096 = vsel %vm825, %v1088, %v1095
      %v1097 = vrot.slane %v1092, 4
      %s1146 = scalar_lea.vmem [#allocation2], 12
      %vm1147 = vcmask 1043456
      %vm1148 = vsmask.f32 7938
      %vm1149 = vmand %vm1147, %vm1148
      %v1150 = vld [vmem:[%s1146] sm:$0xf]
      %v1151 = vsel %vm1149, %v832, %v1150
      %1152 = vst [vmem:[%s1146] sm:$0xf] %v1151
      %1153 = vst [vmem:[%s1146 + $0x4] sm:$0xf] %v841
      %vm1154 = vcmask 1040384
      %vm1155 = vmand %vm1154, %vm823
      %v1156 = vld [vmem:[%s1146 + $0x8] sm:$0x1]
      %v1157 = vsel %vm1155, %v842, %v1156
      %1158 = vst [vmem:[%s1146 + $0x8] sm:$0x1] %v1157
      %v1159 = vld [vmem:[%s1146 + $0xc] sm:$0xf]
      %v1160 = vsel %vm1149, %v849, %v1159
      %1161 = vst [vmem:[%s1146 + $0xc] sm:$0xf] %v1160
      %1162 = vst [vmem:[%s1146 + $0x10] sm:$0xf] %v858
      %v1163 = vld [vmem:[%s1146 + $0x14] sm:$0x1]
      %v1164 = vsel %vm1155, %v859, %v1163
      %1165 = vst [vmem:[%s1146 + $0x14] sm:$0x1] %v1164
      %v1166 = vld [vmem:[%s1146 + $0x18] sm:$0xf]
      %v1167 = vsel %vm1149, %v866, %v1166
      %1168 = vst [vmem:[%s1146 + $0x18] sm:$0xf] %v1167
      %1169 = vst [vmem:[%s1146 + $0x1c] sm:$0xf] %v875
      %v1170 = vld [vmem:[%s1146 + $0x20] sm:$0x1]
      %v1171 = vsel %vm1155, %v876, %v1170
      %1172 = vst [vmem:[%s1146 + $0x20] sm:$0x1] %v1171
      %v1173 = vld [vmem:[%s1146 + $0x24] sm:$0xf]
      %v1174 = vsel %vm1149, %v883, %v1173
      %1175 = vst [vmem:[%s1146 + $0x24] sm:$0xf] %v1174
      %1176 = vst [vmem:[%s1146 + $0x28] sm:$0xf] %v892
      %v1177 = vld [vmem:[%s1146 + $0x2c] sm:$0x1]
      %v1178 = vsel %vm1155, %v893, %v1177
      %1179 = vst [vmem:[%s1146 + $0x2c] sm:$0x1] %v1178
      %v1180 = vld [vmem:[%s1146 + $0x30] sm:$0xf]
      %v1181 = vsel %vm1149, %v900, %v1180
      %1182 = vst [vmem:[%s1146 + $0x30] sm:$0xf] %v1181
      %1183 = vst [vmem:[%s1146 + $0x34] sm:$0xf] %v909
      %v1184 = vld [vmem:[%s1146 + $0x38] sm:$0x1]
      %v1185 = vsel %vm1155, %v910, %v1184
      %1186 = vst [vmem:[%s1146 + $0x38] sm:$0x1] %v1185
      %v1187 = vld [vmem:[%s1146 + $0x3c] sm:$0xf]
      %v1188 = vsel %vm1149, %v917, %v1187
      %1189 = vst [vmem:[%s1146 + $0x3c] sm:$0xf] %v1188
      %1190 = vst [vmem:[%s1146 + $0x40] sm:$0xf] %v926
      %v1191 = vld [vmem:[%s1146 + $0x44] sm:$0x1]
      %v1192 = vsel %vm1155, %v927, %v1191
      %1193 = vst [vmem:[%s1146 + $0x44] sm:$0x1] %v1192
      %v1194 = vld [vmem:[%s1146 + $0x48] sm:$0xf]
      %v1195 = vsel %vm1149, %v934, %v1194
      %1196 = vst [vmem:[%s1146 + $0x48] sm:$0xf] %v1195
      %1197 = vst [vmem:[%s1146 + $0x4c] sm:$0xf] %v943
      %v1198 = vld [vmem:[%s1146 + $0x50] sm:$0x1]
      %v1199 = vsel %vm1155, %v944, %v1198
      %1200 = vst [vmem:[%s1146 + $0x50] sm:$0x1] %v1199
      %v1201 = vld [vmem:[%s1146 + $0x54] sm:$0xf]
      %v1202 = vsel %vm1149, %v951, %v1201
      %1203 = vst [vmem:[%s1146 + $0x54] sm:$0xf] %v1202
      %1204 = vst [vmem:[%s1146 + $0x58] sm:$0xf] %v960
      %v1205 = vld [vmem:[%s1146 + $0x5c] sm:$0x1]
      %v1206 = vsel %vm1155, %v961, %v1205
      %1207 = vst [vmem:[%s1146 + $0x5c] sm:$0x1] %v1206
      %v1208 = vld [vmem:[%s1146 + $0x60] sm:$0xf]
      %v1209 = vsel %vm1149, %v968, %v1208
      %1210 = vst [vmem:[%s1146 + $0x60] sm:$0xf] %v1209
      %1211 = vst [vmem:[%s1146 + $0x64] sm:$0xf] %v977
      %v1212 = vld [vmem:[%s1146 + $0x68] sm:$0x1]
      %v1213 = vsel %vm1155, %v978, %v1212
      %1214 = vst [vmem:[%s1146 + $0x68] sm:$0x1] %v1213
      %v1215 = vld [vmem:[%s1146 + $0x6c] sm:$0xf]
      %v1216 = vsel %vm1149, %v985, %v1215
      %1217 = vst [vmem:[%s1146 + $0x6c] sm:$0xf] %v1216
      %1218 = vst [vmem:[%s1146 + $0x70] sm:$0xf] %v994
      %v1219 = vld [vmem:[%s1146 + $0x74] sm:$0x1]
      %v1220 = vsel %vm1155, %v995, %v1219
      %1221 = vst [vmem:[%s1146 + $0x74] sm:$0x1] %v1220
      %v1222 = vld [vmem:[%s1146 + $0x78] sm:$0xf]
      %v1223 = vsel %vm1149, %v1002, %v1222
      %1224 = vst [vmem:[%s1146 + $0x78] sm:$0xf] %v1223
      %1225 = vst [vmem:[%s1146 + $0x7c] sm:$0xf] %v1011
      %v1226 = vld [vmem:[%s1146 + $0x80] sm:$0x1]
      %v1227 = vsel %vm1155, %v1012, %v1226
      %1228 = vst [vmem:[%s1146 + $0x80] sm:$0x1] %v1227
      %v1229 = vld [vmem:[%s1146 + $0x84] sm:$0xf]
      %v1230 = vsel %vm1149, %v1019, %v1229
      %1231 = vst [vmem:[%s1146 + $0x84] sm:$0xf] %v1230
      %1232 = vst [vmem:[%s1146 + $0x88] sm:$0xf] %v1028
      %v1233 = vld [vmem:[%s1146 + $0x8c] sm:$0x1]
      %v1234 = vsel %vm1155, %v1029, %v1233
      %1235 = vst [vmem:[%s1146 + $0x8c] sm:$0x1] %v1234
      %v1236 = vld [vmem:[%s1146 + $0x90] sm:$0xf]
      %v1237 = vsel %vm1149, %v1036, %v1236
      %1238 = vst [vmem:[%s1146 + $0x90] sm:$0xf] %v1237
      %1239 = vst [vmem:[%s1146 + $0x94] sm:$0xf] %v1045
      %v1240 = vld [vmem:[%s1146 + $0x98] sm:$0x1]
      %v1241 = vsel %vm1155, %v1046, %v1240
      %1242 = vst [vmem:[%s1146 + $0x98] sm:$0x1] %v1241
      %v1243 = vld [vmem:[%s1146 + $0x9c] sm:$0xf]
      %v1244 = vsel %vm1149, %v1053, %v1243
      %1245 = vst [vmem:[%s1146 + $0x9c] sm:$0xf] %v1244
      %1246 = vst [vmem:[%s1146 + $0xa0] sm:$0xf] %v1062
      %v1247 = vld [vmem:[%s1146 + $0xa4] sm:$0x1]
      %v1248 = vsel %vm1155, %v1063, %v1247
      %1249 = vst [vmem:[%s1146 + $0xa4] sm:$0x1] %v1248
      %v1250 = vld [vmem:[%s1146 + $0xa8] sm:$0xf]
      %v1251 = vsel %vm1149, %v1070, %v1250
      %1252 = vst [vmem:[%s1146 + $0xa8] sm:$0xf] %v1251
      %1253 = vst [vmem:[%s1146 + $0xac] sm:$0xf] %v1079
      %v1254 = vld [vmem:[%s1146 + $0xb0] sm:$0x1]
      %v1255 = vsel %vm1155, %v1080, %v1254
      %1256 = vst [vmem:[%s1146 + $0xb0] sm:$0x1] %v1255
      %v1257 = vld [vmem:[%s1146 + $0xb4] sm:$0xf]
      %v1258 = vsel %vm1149, %v1087, %v1257
      %1259 = vst [vmem:[%s1146 + $0xb4] sm:$0xf] %v1258
      %1260 = vst [vmem:[%s1146 + $0xb8] sm:$0xf] %v1096
      %v1261 = vld [vmem:[%s1146 + $0xbc] sm:$0x1]
      %v1262 = vsel %vm1155, %v1097, %v1261
      %1263 = vst [vmem:[%s1146 + $0xbc] sm:$0x1] %v1262
      %v1264 = vld [vmem:[#allocation2] sm:$0x1]
      %v1265 = vsel %vm1155, 0, %v1264
      %1266 = vst [vmem:[#allocation2] sm:$0x1] %v1265
      %v1267 = vld [vmem:[#allocation2 + $0xc] sm:$0x1]
      %v1268 = vsel %vm1155, 0, %v1267
      %1269 = vst [vmem:[#allocation2 + $0xc] sm:$0x1] %v1268
      %v1270 = vld [vmem:[#allocation2 + $0x18] sm:$0x1]
      %v1271 = vsel %vm1155, 0, %v1270
      %1272 = vst [vmem:[#allocation2 + $0x18] sm:$0x1] %v1271
      %v1273 = vld [vmem:[#allocation2 + $0x24] sm:$0x1]
      %v1274 = vsel %vm1155, 0, %v1273
      %1275 = vst [vmem:[#allocation2 + $0x24] sm:$0x1] %v1274
      %v1276 = vld [vmem:[#allocation2 + $0x30] sm:$0x1]
      %v1277 = vsel %vm1155, 0, %v1276
      %1278 = vst [vmem:[#allocation2 + $0x30] sm:$0x1] %v1277
      %v1279 = vld [vmem:[#allocation2 + $0x3c] sm:$0x1]
      %v1280 = vsel %vm1155, 0, %v1279
      %1281 = vst [vmem:[#allocation2 + $0x3c] sm:$0x1] %v1280
      %v1282 = vld [vmem:[#allocation2 + $0x48] sm:$0x1]
      %v1283 = vsel %vm1155, 0, %v1282
      %1284 = vst [vmem:[#allocation2 + $0x48] sm:$0x1] %v1283
      %v1285 = vld [vmem:[#allocation2 + $0x54] sm:$0x1]
      %v1286 = vsel %vm1155, 0, %v1285
      %1287 = vst [vmem:[#allocation2 + $0x54] sm:$0x1] %v1286
      %v1288 = vld [vmem:[#allocation2 + $0x60] sm:$0x1]
      %v1289 = vsel %vm1155, 0, %v1288
      %1290 = vst [vmem:[#allocation2 + $0x60] sm:$0x1] %v1289
      %v1291 = vld [vmem:[#allocation2 + $0x6c] sm:$0x1]
      %v1292 = vsel %vm1155, 0, %v1291
      %1293 = vst [vmem:[#allocation2 + $0x6c] sm:$0x1] %v1292
      %v1294 = vld [vmem:[#allocation2 + $0x78] sm:$0x1]
      %v1295 = vsel %vm1155, 0, %v1294
      %1296 = vst [vmem:[#allocation2 + $0x78] sm:$0x1] %v1295
      %v1297 = vld [vmem:[#allocation2 + $0x84] sm:$0x1]
      %v1298 = vsel %vm1155, 0, %v1297
      %1299 = vst [vmem:[#allocation2 + $0x84] sm:$0x1] %v1298
      %v1300 = vld [vmem:[#allocation2 + $0x90] sm:$0x1]
      %v1301 = vsel %vm1155, 0, %v1300
      %1302 = vst [vmem:[#allocation2 + $0x90] sm:$0x1] %v1301
      %v1303 = vld [vmem:[#allocation2 + $0x9c] sm:$0x1]
      %v1304 = vsel %vm1155, 0, %v1303
      %1305 = vst [vmem:[#allocation2 + $0x9c] sm:$0x1] %v1304
      %v1306 = vld [vmem:[#allocation2 + $0xa8] sm:$0x1]
      %v1307 = vsel %vm1155, 0, %v1306
      %1308 = vst [vmem:[#allocation2 + $0xa8] sm:$0x1] %v1307
      %v1309 = vld [vmem:[#allocation2 + $0xb4] sm:$0x1]
      %v1310 = vsel %vm1155, 0, %v1309
      %1311 = vst [vmem:[#allocation2 + $0xb4] sm:$0x1] %v1310
      %v1312 = vld [vmem:[#allocation2 + $0xc0] sm:$0x1]
      %v1313 = vsel %vm1155, 0, %v1312
      %1314 = vst [vmem:[#allocation2 + $0xc0] sm:$0x1] %v1313
      %v1315 = vld [vmem:[#allocation2 + $0xcc] sm:$0x1]
      %v1316 = vsel %vm1155, 0, %v1315
      %1317 = vst [vmem:[#allocation2 + $0xcc] sm:$0x1] %v1316
      %vm1318 = vmand %vm1154, %vm1148
      %v1319 = vld [vmem:[#allocation2 + $0x8] sm:$0x1]
      %v1320 = vsel %vm1318, 0, %v1319
      %1321 = vst [vmem:[#allocation2 + $0x8] sm:$0x1] %v1320
      %v1322 = vld [vmem:[#allocation2 + $0x14] sm:$0x1]
      %v1323 = vsel %vm1318, 0, %v1322
      %1324 = vst [vmem:[#allocation2 + $0x14] sm:$0x1] %v1323
      %v1325 = vld [vmem:[#allocation2 + $0x20] sm:$0x1]
      %v1326 = vsel %vm1318, 0, %v1325
      %1327 = vst [vmem:[#allocation2 + $0x20] sm:$0x1] %v1326
      %v1328 = vld [vmem:[#allocation2 + $0x2c] sm:$0x1]
      %v1329 = vsel %vm1318, 0, %v1328
      %1330 = vst [vmem:[#allocation2 + $0x2c] sm:$0x1] %v1329
      %v1331 = vld [vmem:[#allocation2 + $0x38] sm:$0x1]
      %v1332 = vsel %vm1318, 0, %v1331
      %1333 = vst [vmem:[#allocation2 + $0x38] sm:$0x1] %v1332
      %v1334 = vld [vmem:[#allocation2 + $0x44] sm:$0x1]
      %v1335 = vsel %vm1318, 0, %v1334
      %1336 = vst [vmem:[#allocation2 + $0x44] sm:$0x1] %v1335
      %v1337 = vld [vmem:[#allocation2 + $0x50] sm:$0x1]
      %v1338 = vsel %vm1318, 0, %v1337
      %1339 = vst [vmem:[#allocation2 + $0x50] sm:$0x1] %v1338
      %v1340 = vld [vmem:[#allocation2 + $0x5c] sm:$0x1]
      %v1341 = vsel %vm1318, 0, %v1340
      %1342 = vst [vmem:[#allocation2 + $0x5c] sm:$0x1] %v1341
      %v1343 = vld [vmem:[#allocation2 + $0x68] sm:$0x1]
      %v1344 = vsel %vm1318, 0, %v1343
      %1345 = vst [vmem:[#allocation2 + $0x68] sm:$0x1] %v1344
      %v1346 = vld [vmem:[#allocation2 + $0x74] sm:$0x1]
      %v1347 = vsel %vm1318, 0, %v1346
      %1348 = vst [vmem:[#allocation2 + $0x74] sm:$0x1] %v1347
      %v1349 = vld [vmem:[#allocation2 + $0x80] sm:$0x1]
      %v1350 = vsel %vm1318, 0, %v1349
      %1351 = vst [vmem:[#allocation2 + $0x80] sm:$0x1] %v1350
      %v1352 = vld [vmem:[#allocation2 + $0x8c] sm:$0x1]
      %v1353 = vsel %vm1318, 0, %v1352
      %1354 = vst [vmem:[#allocation2 + $0x8c] sm:$0x1] %v1353
      %v1355 = vld [vmem:[#allocation2 + $0x98] sm:$0x1]
      %v1356 = vsel %vm1318, 0, %v1355
      %1357 = vst [vmem:[#allocation2 + $0x98] sm:$0x1] %v1356
      %v1358 = vld [vmem:[#allocation2 + $0xa4] sm:$0x1]
      %v1359 = vsel %vm1318, 0, %v1358
      %1360 = vst [vmem:[#allocation2 + $0xa4] sm:$0x1] %v1359
      %v1361 = vld [vmem:[#allocation2 + $0xb0] sm:$0x1]
      %v1362 = vsel %vm1318, 0, %v1361
      %1363 = vst [vmem:[#allocation2 + $0xb0] sm:$0x1] %v1362
      %v1364 = vld [vmem:[#allocation2 + $0xbc] sm:$0x1]
      %v1365 = vsel %vm1318, 0, %v1364
      %1366 = vst [vmem:[#allocation2 + $0xbc] sm:$0x1] %v1365
      %v1367 = vld [vmem:[#allocation2 + $0xc8] sm:$0x1]
      %v1368 = vsel %vm1318, 0, %v1367
      %1369 = vst [vmem:[#allocation2 + $0xc8] sm:$0x1] %v1368
      %v1370 = vld [vmem:[#allocation2 + $0xd4] sm:$0x1]
      %v1371 = vsel %vm1318, 0, %v1370
      %1372 = vst [vmem:[#allocation2 + $0xd4] sm:$0x1] %v1371
      %1373 = vst [vmem:[#allocation2] sm:$0xf] 0
      %1374 = vst [vmem:[#allocation2 + $0x4] sm:$0xf] 0
      %1375 = vst [vmem:[#allocation2 + $0x8] sm:$0x1] 0
      %s1376 = scalar_lea.vmem [#allocation2], 204
      %1377 = vst [vmem:[%s1376] sm:$0xf] 0
      %1378 = vst [vmem:[%s1376 + $0x4] sm:$0xf] 0
      %1379 = vst [vmem:[%s1376 + $0x8] sm:$0x1] 0
      %v1380 = vld [vmem:[#allocation2] sm:$0xf]
      %v1381 = vld [vmem:[#allocation2 + $0x4] sm:$0xf]
      %v1382 = vld [vmem:[#allocation2 + $0xc] sm:$0xf]
      %v1383 = vld [vmem:[#allocation2 + $0x10] sm:$0xf]
      %v1384 = vld [vmem:[#allocation2 + $0x18] sm:$0xf]
      %v1385 = vld [vmem:[#allocation2 + $0x1c] sm:$0xf]
      %v1386 = vld [vmem:[#allocation2 + $0x24] sm:$0xf]
      %v1387 = vld [vmem:[#allocation2 + $0x28] sm:$0xf]
      %v1388 = vld [vmem:[#allocation2 + $0x30] sm:$0xf]
      %v1389 = vld [vmem:[#allocation2 + $0x34] sm:$0xf]
      %v1390 = vld [vmem:[#allocation2 + $0x3c] sm:$0xf]
      %v1391 = vld [vmem:[#allocation2 + $0x40] sm:$0xf]
      %v1392 = vld [vmem:[#allocation2 + $0x48] sm:$0xf]
      %v1393 = vld [vmem:[#allocation2 + $0x4c] sm:$0xf]
      %v1394 = vld [vmem:[#allocation2 + $0x54] sm:$0xf]
      %v1395 = vld [vmem:[#allocation2 + $0x58] sm:$0xf]
      %v1396 = vld [vmem:[#allocation2 + $0x60] sm:$0xf]
      %v1397 = vld [vmem:[#allocation2 + $0x64] sm:$0xf]
      %v1398 = vld [vmem:[#allocation2 + $0x6c] sm:$0xf]
      %v1399 = vld [vmem:[#allocation2 + $0x70] sm:$0xf]
      %v1400 = vld [vmem:[#allocation2 + $0x78] sm:$0xf]
      %v1401 = vld [vmem:[#allocation2 + $0x7c] sm:$0xf]
      %v1402 = vld [vmem:[#allocation2 + $0x84] sm:$0xf]
      %v1403 = vld [vmem:[#allocation2 + $0x88] sm:$0xf]
      %v1404 = vld [vmem:[#allocation2 + $0x90] sm:$0xf]
      %v1405 = vld [vmem:[#allocation2 + $0x94] sm:$0xf]
      %v1406 = vld [vmem:[#allocation2 + $0x9c] sm:$0xf]
      %v1407 = vld [vmem:[#allocation2 + $0xa0] sm:$0xf]
      %v1408 = vld [vmem:[#allocation2 + $0xa8] sm:$0xf]
      %v1409 = vld [vmem:[#allocation2 + $0xac] sm:$0xf]
      %v1410 = vld [vmem:[#allocation2 + $0xb4] sm:$0xf]
      %v1411 = vld [vmem:[#allocation2 + $0xb8] sm:$0xf]
      %v1412 = vld [vmem:[%s3] sm:$0xf]
      %v1413 = vld [vmem:[%s3 + $0x4] sm:$0xf]
      %v1414 = vld [vmem:[%s3 + $0x8] sm:$0xf]
      %v1415 = vld [vmem:[%s3 + $0xc] sm:$0xf]
      %v1416 = vld [vmem:[%s3 + $0x10] sm:$0xf]
      %v1417 = vld [vmem:[%s3 + $0x14] sm:$0xf]
      %v1418 = vld [vmem:[%s3 + $0x18] sm:$0xf]
      %v1419 = vld [vmem:[%s3 + $0x1c] sm:$0xf]
      %v1420 = vld [vmem:[%s3 + $0x20] sm:$0xf]
      %v1421 = vld [vmem:[%s3 + $0x24] sm:$0xf]
      %v1422 = vld [vmem:[%s3 + $0x28] sm:$0xf]
      %v1423 = vld [vmem:[%s3 + $0x2c] sm:$0xf]
      %v1424 = vld [vmem:[%s3 + $0x30] sm:$0xf]
      %v1425 = vld [vmem:[%s3 + $0x34] sm:$0xf]
      %v1426 = vld [vmem:[%s3 + $0x38] sm:$0xf]
      %v1427 = vld [vmem:[%s3 + $0x3c] sm:$0xf]
      %v1460 = vunpack.c.l.b16 %v1380
      %v1461 = vunpack.c.l.b16 %v1381
      %v1462 = vunpack.c.l.b16 %v1382
      %v1463 = vunpack.c.l.b16 %v1383
      %v1464 = vunpack.c.l.b16 %v1384
      %v1465 = vunpack.c.l.b16 %v1385
      %v1466 = vunpack.c.l.b16 %v1386
      %v1467 = vunpack.c.l.b16 %v1387
      %v1468 = vunpack.c.l.b16 %v1388
      %v1469 = vunpack.c.l.b16 %v1389
      %v1470 = vunpack.c.l.b16 %v1390
      %v1471 = vunpack.c.l.b16 %v1391
      %v1472 = vunpack.c.l.b16 %v1392
      %v1473 = vunpack.c.l.b16 %v1393
      %v1474 = vunpack.c.l.b16 %v1394
      %v1475 = vunpack.c.l.b16 %v1395
      %v1476 = vunpack.c.l.b16 %v1396
      %v1477 = vunpack.c.l.b16 %v1397
      %v1478 = vunpack.c.l.b16 %v1398
      %v1479 = vunpack.c.l.b16 %v1399
      %v1480 = vunpack.c.l.b16 %v1400
      %v1481 = vunpack.c.l.b16 %v1401
      %v1482 = vunpack.c.l.b16 %v1402
      %v1483 = vunpack.c.l.b16 %v1403
      %v1484 = vunpack.c.l.b16 %v1404
      %v1485 = vunpack.c.l.b16 %v1405
      %v1486 = vunpack.c.l.b16 %v1406
      %v1487 = vunpack.c.l.b16 %v1407
      %v1488 = vunpack.c.l.b16 %v1408
      %v1489 = vunpack.c.l.b16 %v1409
      %v1490 = vunpack.c.l.b16 %v1410
      %v1491 = vunpack.c.l.b16 %v1411
      %v1492 = vpack.c.b16 %v1461, %v1460
      %v1493 = vpack.c.b16 %v1463, %v1462
      %v1494 = vpack.c.b16 %v1465, %v1464
      %v1495 = vpack.c.b16 %v1467, %v1466
      %v1496 = vpack.c.b16 %v1469, %v1468
      %v1497 = vpack.c.b16 %v1471, %v1470
      %v1498 = vpack.c.b16 %v1473, %v1472
      %v1499 = vpack.c.b16 %v1475, %v1474
      %v1500 = vpack.c.b16 %v1477, %v1476
      %v1501 = vpack.c.b16 %v1479, %v1478
      %v1502 = vpack.c.b16 %v1481, %v1480
      %v1503 = vpack.c.b16 %v1483, %v1482
      %v1504 = vpack.c.b16 %v1485, %v1484
      %v1505 = vpack.c.b16 %v1487, %v1486
      %v1506 = vpack.c.b16 %v1489, %v1488
      %v1507 = vpack.c.b16 %v1491, %v1490
      %v1540 = vunpack.c.l.b16 %v1412
      %v1541 = vunpack.c.l.b16 %v1413
      %v1542 = vunpack.c.l.b16 %v1414
      %v1543 = vunpack.c.l.b16 %v1415
      %v1544 = vunpack.c.l.b16 %v1416
      %v1545 = vunpack.c.l.b16 %v1417
      %v1546 = vunpack.c.l.b16 %v1418
      %v1547 = vunpack.c.l.b16 %v1419
      %v1548 = vunpack.c.l.b16 %v1420
      %v1549 = vunpack.c.l.b16 %v1421
      %v1550 = vunpack.c.l.b16 %v1422
      %v1551 = vunpack.c.l.b16 %v1423
      %v1552 = vunpack.c.l.b16 %v1424
      %v1553 = vunpack.c.l.b16 %v1425
      %v1554 = vunpack.c.l.b16 %v1426
      %v1555 = vunpack.c.l.b16 %v1427
      %v1556 = vpack.c.b16 %v1541, %v1540
      %v1557 = vpack.c.b16 %v1543, %v1542
      %v1558 = vpack.c.b16 %v1545, %v1544
      %v1559 = vpack.c.b16 %v1547, %v1546
      %v1560 = vpack.c.b16 %v1549, %v1548
      %v1561 = vpack.c.b16 %v1551, %v1550
      %v1562 = vpack.c.b16 %v1553, %v1552
      %v1563 = vpack.c.b16 %v1555, %v1554
      %1572 = vmatprep.subr.bf16.mxu0 0
      %1573 = vmatpush1.bf16.msra.mxu0 %v1563
      %1574 = vmatprep.subr.bf16.mxu0 0
      %1575 = vmatpush1.bf16.msra.mxu0 %v1562
      %1576 = vmatprep.subr.bf16.mxu0 0
      %1577 = vmatpush1.bf16.msra.mxu0 %v1561
      %1578 = vmatprep.subr.bf16.mxu0 0
      %1579 = vmatpush1.bf16.msra.mxu0 %v1560
      %1580 = vmatprep.subr.bf16.mxu0 0
      %1581 = vmatpush1.bf16.msra.mxu0 %v1559
      %1582 = vmatprep.subr.bf16.mxu0 0
      %1583 = vmatpush1.bf16.msra.mxu0 %v1558
      %1584 = vmatprep.subr.bf16.mxu0 0
      %1585 = vmatpush1.bf16.msra.mxu0 %v1557
      %1586 = vmatprep.subr.bf16.mxu0 0
      %1587 = vmatpush1.bf16.msra.mxu0 %v1556
      %1588 = vmatprep.subr.bf16.mxu0 0
      %1589 = vmatpush2.bf16.msra.mxu0 0
      %1590 = vmatprep.subr.bf16.mxu0 0
      %1591 = vmatpush2.bf16.msra.mxu0 0
      %1592 = vmatprep.subr.bf16.mxu0 0
      %1593 = vmatpush2.bf16.msra.mxu0 0
      %1594 = vmatprep.subr.bf16.mxu0 0
      %1595 = vmatpush2.bf16.msra.mxu0 0
      %1596 = vmatprep.subr.bf16.mxu0 0
      %1597 = vmatpush2.bf16.msra.mxu0 0
      %1598 = vmatprep.subr.bf16.mxu0 0
      %1599 = vmatpush2.bf16.msra.mxu0 0
      %1600 = vmatprep.subr.bf16.mxu0 0
      %1601 = vmatpush2.bf16.msra.mxu0 0
      %1602 = vmatprep.subr.bf16.mxu0 0
      %1603 = vmatpush2.bf16.msra.mxu0 0
      %1604 = vmatprep.mubr.bf16.mxu0 0
      %1605 = vmatmul.mubr.bf16.gmra.mxu0 %v1492
      %v1606 = vpop.f32.mrf.mxu0
      %v1607 = vadd.f32 0.0, %v1606
      %v1608 = vpop.f32.mrf.mxu0
      %v1609 = vpop.f32.mrf.mxu0
      %v1610 = vadd.f32 0.0, %v1609
      %v1611 = vpop.f32.mrf.mxu0
      %1612 = vmatprep.mubr.bf16.mxu0 0
      %1613 = vmatmul.mubr.bf16.gmra.mxu0 %v1493
      %v1614 = vpop.f32.mrf.mxu0
      %v1615 = vadd.f32 0.0, %v1614
      %v1616 = vpop.f32.mrf.mxu0
      %v1617 = vpop.f32.mrf.mxu0
      %v1618 = vadd.f32 0.0, %v1617
      %v1619 = vpop.f32.mrf.mxu0
      %1620 = vmatprep.mubr.bf16.mxu0 0
      %1621 = vmatmul.mubr.bf16.gmra.mxu0 %v1494
      %v1622 = vpop.f32.mrf.mxu0
      %v1623 = vadd.f32 0.0, %v1622
      %v1624 = vpop.f32.mrf.mxu0
      %v1625 = vpop.f32.mrf.mxu0
      %v1626 = vadd.f32 0.0, %v1625
      %v1627 = vpop.f32.mrf.mxu0
      %1628 = vmatprep.mubr.bf16.mxu0 0
      %1629 = vmatmul.mubr.bf16.gmra.mxu0 %v1495
      %v1630 = vpop.f32.mrf.mxu0
      %v1631 = vadd.f32 0.0, %v1630
      %v1632 = vpop.f32.mrf.mxu0
      %v1633 = vpop.f32.mrf.mxu0
      %v1634 = vadd.f32 0.0, %v1633
      %v1635 = vpop.f32.mrf.mxu0
      %1636 = vmatprep.mubr.bf16.mxu0 0
      %1637 = vmatmul.mubr.bf16.gmra.mxu0 %v1496
      %v1638 = vpop.f32.mrf.mxu0
      %v1639 = vadd.f32 0.0, %v1638
      %v1640 = vpop.f32.mrf.mxu0
      %v1641 = vpop.f32.mrf.mxu0
      %v1642 = vadd.f32 0.0, %v1641
      %v1643 = vpop.f32.mrf.mxu0
      %1644 = vmatprep.mubr.bf16.mxu0 0
      %1645 = vmatmul.mubr.bf16.gmra.mxu0 %v1497
      %v1646 = vpop.f32.mrf.mxu0
      %v1647 = vadd.f32 0.0, %v1646
      %v1648 = vpop.f32.mrf.mxu0
      %v1649 = vpop.f32.mrf.mxu0
      %v1650 = vadd.f32 0.0, %v1649
      %v1651 = vpop.f32.mrf.mxu0
      %1652 = vmatprep.mubr.bf16.mxu0 0
      %1653 = vmatmul.mubr.bf16.gmra.mxu0 %v1498
      %v1654 = vpop.f32.mrf.mxu0
      %v1655 = vadd.f32 0.0, %v1654
      %v1656 = vpop.f32.mrf.mxu0
      %v1657 = vpop.f32.mrf.mxu0
      %v1658 = vadd.f32 0.0, %v1657
      %v1659 = vpop.f32.mrf.mxu0
      %1660 = vmatprep.mubr.bf16.mxu0 0
      %1661 = vmatmul.mubr.bf16.gmra.mxu0 %v1499
      %v1662 = vpop.f32.mrf.mxu0
      %v1663 = vadd.f32 0.0, %v1662
      %v1664 = vpop.f32.mrf.mxu0
      %v1665 = vpop.f32.mrf.mxu0
      %v1666 = vadd.f32 0.0, %v1665
      %v1667 = vpop.f32.mrf.mxu0
      %1668 = vmatprep.mubr.bf16.mxu0 0
      %1669 = vmatmul.mubr.bf16.gmra.mxu0 %v1500
      %v1670 = vpop.f32.mrf.mxu0
      %v1671 = vadd.f32 0.0, %v1670
      %v1672 = vpop.f32.mrf.mxu0
      %v1673 = vpop.f32.mrf.mxu0
      %v1674 = vadd.f32 0.0, %v1673
      %v1675 = vpop.f32.mrf.mxu0
      %1676 = vmatprep.mubr.bf16.mxu0 0
      %1677 = vmatmul.mubr.bf16.gmra.mxu0 %v1501
      %v1678 = vpop.f32.mrf.mxu0
      %v1679 = vadd.f32 0.0, %v1678
      %v1680 = vpop.f32.mrf.mxu0
      %v1681 = vpop.f32.mrf.mxu0
      %v1682 = vadd.f32 0.0, %v1681
      %v1683 = vpop.f32.mrf.mxu0
      %1684 = vmatprep.mubr.bf16.mxu0 0
      %1685 = vmatmul.mubr.bf16.gmra.mxu0 %v1502
      %v1686 = vpop.f32.mrf.mxu0
      %v1687 = vadd.f32 0.0, %v1686
      %v1688 = vpop.f32.mrf.mxu0
      %v1689 = vpop.f32.mrf.mxu0
      %v1690 = vadd.f32 0.0, %v1689
      %v1691 = vpop.f32.mrf.mxu0
      %1692 = vmatprep.mubr.bf16.mxu0 0
      %1693 = vmatmul.mubr.bf16.gmra.mxu0 %v1503
      %v1694 = vpop.f32.mrf.mxu0
      %v1695 = vadd.f32 0.0, %v1694
      %v1696 = vpop.f32.mrf.mxu0
      %v1697 = vpop.f32.mrf.mxu0
      %v1698 = vadd.f32 0.0, %v1697
      %v1699 = vpop.f32.mrf.mxu0
      %1700 = vmatprep.mubr.bf16.mxu0 0
      %1701 = vmatmul.mubr.bf16.gmra.mxu0 %v1504
      %v1702 = vpop.f32.mrf.mxu0
      %v1703 = vadd.f32 0.0, %v1702
      %v1704 = vpop.f32.mrf.mxu0
      %v1705 = vpop.f32.mrf.mxu0
      %v1706 = vadd.f32 0.0, %v1705
      %v1707 = vpop.f32.mrf.mxu0
      %1708 = vmatprep.mubr.bf16.mxu0 0
      %1709 = vmatmul.mubr.bf16.gmra.mxu0 %v1505
      %v1710 = vpop.f32.mrf.mxu0
      %v1711 = vadd.f32 0.0, %v1710
      %v1712 = vpop.f32.mrf.mxu0
      %v1713 = vpop.f32.mrf.mxu0
      %v1714 = vadd.f32 0.0, %v1713
      %v1715 = vpop.f32.mrf.mxu0
      %1716 = vmatprep.mubr.bf16.mxu0 0
      %1717 = vmatmul.mubr.bf16.gmra.mxu0 %v1506
      %v1718 = vpop.f32.mrf.mxu0
      %v1719 = vadd.f32 0.0, %v1718
      %v1720 = vpop.f32.mrf.mxu0
      %v1721 = vpop.f32.mrf.mxu0
      %v1722 = vadd.f32 0.0, %v1721
      %v1723 = vpop.f32.mrf.mxu0
      %1724 = vmatprep.mubr.bf16.mxu0 0
      %1725 = vmatmul.mubr.bf16.gmra.mxu0 %v1507
      %v1726 = vpop.f32.mrf.mxu0
      %v1727 = vadd.f32 0.0, %v1726
      %v1728 = vpop.f32.mrf.mxu0
      %v1729 = vpop.f32.mrf.mxu0
      %v1730 = vadd.f32 0.0, %v1729
      %v1731 = vpop.f32.mrf.mxu0
      %1732 = vdwg.mxu0
      %v1733 = vadd.f32 %v695, %v1607
      %v1734 = vadd.f32 %v696, %v1610
      %v1735 = vadd.f32 %v697, %v1615
      %v1736 = vadd.f32 %v698, %v1618
      %v1737 = vadd.f32 %v699, %v1623
      %v1738 = vadd.f32 %v700, %v1626
      %v1739 = vadd.f32 %v701, %v1631
      %v1740 = vadd.f32 %v702, %v1634
      %v1741 = vadd.f32 %v703, %v1639
      %v1742 = vadd.f32 %v704, %v1642
      %v1743 = vadd.f32 %v705, %v1647
      %v1744 = vadd.f32 %v706, %v1650
      %v1745 = vadd.f32 %v707, %v1655
      %v1746 = vadd.f32 %v708, %v1658
      %v1747 = vadd.f32 %v709, %v1663
      %v1748 = vadd.f32 %v710, %v1666
      %v1749 = vadd.f32 %v711, %v1671
      %v1750 = vadd.f32 %v712, %v1674
      %v1751 = vadd.f32 %v713, %v1679
      %v1752 = vadd.f32 %v714, %v1682
      %v1753 = vadd.f32 %v715, %v1687
      %v1754 = vadd.f32 %v716, %v1690
      %v1755 = vadd.f32 %v717, %v1695
      %v1756 = vadd.f32 %v718, %v1698
      %v1757 = vadd.f32 %v719, %v1703
      %v1758 = vadd.f32 %v720, %v1706
      %v1759 = vadd.f32 %v721, %v1711
      %v1760 = vadd.f32 %v722, %v1714
      %v1761 = vadd.f32 %v723, %v1719
      %v1762 = vadd.f32 %v724, %v1722
      %v1763 = vadd.f32 %v725, %v1727
      %v1764 = vadd.f32 %v726, %v1730
      %v1765 = vld [vmem:[#allocation2] sm:$0xf]
      %v1766 = vld [vmem:[#allocation2 + $0x4] sm:$0xf]
      %v1767 = vld [vmem:[#allocation2 + $0x8] sm:$0x1]
      %v1768 = vld [vmem:[#allocation2 + $0xc] sm:$0xf]
      %v1769 = vld [vmem:[#allocation2 + $0x10] sm:$0xf]
      %v1770 = vld [vmem:[#allocation2 + $0x14] sm:$0x1]
      %v1771 = vld [vmem:[#allocation2 + $0x18] sm:$0xf]
      %v1772 = vld [vmem:[#allocation2 + $0x1c] sm:$0xf]
      %v1773 = vld [vmem:[#allocation2 + $0x20] sm:$0x1]
      %v1774 = vld [vmem:[#allocation2 + $0x24] sm:$0xf]
      %v1775 = vld [vmem:[#allocation2 + $0x28] sm:$0xf]
      %v1776 = vld [vmem:[#allocation2 + $0x2c] sm:$0x1]
      %v1777 = vld [vmem:[#allocation2 + $0x30] sm:$0xf]
      %v1778 = vld [vmem:[#allocation2 + $0x34] sm:$0xf]
      %v1779 = vld [vmem:[#allocation2 + $0x38] sm:$0x1]
      %v1780 = vld [vmem:[#allocation2 + $0x3c] sm:$0xf]
      %v1781 = vld [vmem:[#allocation2 + $0x40] sm:$0xf]
      %v1782 = vld [vmem:[#allocation2 + $0x44] sm:$0x1]
      %v1783 = vld [vmem:[#allocation2 + $0x48] sm:$0xf]
      %v1784 = vld [vmem:[#allocation2 + $0x4c] sm:$0xf]
      %v1785 = vld [vmem:[#allocation2 + $0x50] sm:$0x1]
      %v1786 = vld [vmem:[#allocation2 + $0x54] sm:$0xf]
      %v1787 = vld [vmem:[#allocation2 + $0x58] sm:$0xf]
      %v1788 = vld [vmem:[#allocation2 + $0x5c] sm:$0x1]
      %v1789 = vld [vmem:[#allocation2 + $0x60] sm:$0xf]
      %v1790 = vld [vmem:[#allocation2 + $0x64] sm:$0xf]
      %v1791 = vld [vmem:[#allocation2 + $0x68] sm:$0x1]
      %v1792 = vld [vmem:[#allocation2 + $0x6c] sm:$0xf]
      %v1793 = vld [vmem:[#allocation2 + $0x70] sm:$0xf]
      %v1794 = vld [vmem:[#allocation2 + $0x74] sm:$0x1]
      %v1795 = vld [vmem:[#allocation2 + $0x78] sm:$0xf]
      %v1796 = vld [vmem:[#allocation2 + $0x7c] sm:$0xf]
      %v1797 = vld [vmem:[#allocation2 + $0x80] sm:$0x1]
      %v1798 = vld [vmem:[#allocation2 + $0x84] sm:$0xf]
      %v1799 = vld [vmem:[#allocation2 + $0x88] sm:$0xf]
      %v1800 = vld [vmem:[#allocation2 + $0x8c] sm:$0x1]
      %v1801 = vld [vmem:[#allocation2 + $0x90] sm:$0xf]
      %v1802 = vld [vmem:[#allocation2 + $0x94] sm:$0xf]
      %v1803 = vld [vmem:[#allocation2 + $0x98] sm:$0x1]
      %v1804 = vld [vmem:[#allocation2 + $0x9c] sm:$0xf]
      %v1805 = vld [vmem:[#allocation2 + $0xa0] sm:$0xf]
      %v1806 = vld [vmem:[#allocation2 + $0xa4] sm:$0x1]
      %v1807 = vld [vmem:[#allocation2 + $0xa8] sm:$0xf]
      %v1808 = vld [vmem:[#allocation2 + $0xac] sm:$0xf]
      %v1809 = vld [vmem:[#allocation2 + $0xb0] sm:$0x1]
      %v1810 = vld [vmem:[#allocation2 + $0xb4] sm:$0xf]
      %v1811 = vld [vmem:[#allocation2 + $0xb8] sm:$0xf]
      %v1812 = vld [vmem:[#allocation2 + $0xbc] sm:$0x1]
      %vm1813 = vsmask.f32 3328
      %vm1814 = vsmask.f32 7440
      %vm1815 = vmor %vm1813, %vm1814
      %v1817 = vshrl.u32 %v1765, 16
      %v1819 = vrot.slane %v1817, 4
      %v1820 = vshll.u32 %v1765, 16
      %v1822 = vrot.slane %v1820, 5
      %v1823 = vor.u32 %v1819, %v1822
      %v1824 = vrot.slane %v1823, 4
      %v1826 = vshll.u32 %v1766, 16
      %v1828 = vrot.slane %v1826, 5
      %v1829 = vsel %vm1815, %v1824, %v1828
      %v1830 = vshrl.u32 %v1766, 16
      %v1832 = vrot.slane %v1830, 4
      %v1833 = vor.u32 %v1832, %v1828
      %v1834 = vrot.slane %v1833, 4
      %v1836 = vshll.u32 %v1767, 16
      %v1838 = vrot.slane %v1836, 5
      %v1839 = vsel %vm1815, %v1834, %v1838
      %v1841 = vshrl.u32 %v1768, 16
      %v1843 = vrot.slane %v1841, 4
      %v1844 = vshll.u32 %v1768, 16
      %v1846 = vrot.slane %v1844, 5
      %v1847 = vor.u32 %v1843, %v1846
      %v1848 = vrot.slane %v1847, 4
      %v1850 = vshll.u32 %v1769, 16
      %v1852 = vrot.slane %v1850, 5
      %v1853 = vsel %vm1815, %v1848, %v1852
      %v1854 = vshrl.u32 %v1769, 16
      %v1856 = vrot.slane %v1854, 4
      %v1857 = vor.u32 %v1856, %v1852
      %v1858 = vrot.slane %v1857, 4
      %v1860 = vshll.u32 %v1770, 16
      %v1862 = vrot.slane %v1860, 5
      %v1863 = vsel %vm1815, %v1858, %v1862
      %v1865 = vshrl.u32 %v1771, 16
      %v1867 = vrot.slane %v1865, 4
      %v1868 = vshll.u32 %v1771, 16
      %v1870 = vrot.slane %v1868, 5
      %v1871 = vor.u32 %v1867, %v1870
      %v1872 = vrot.slane %v1871, 4
      %v1874 = vshll.u32 %v1772, 16
      %v1876 = vrot.slane %v1874, 5
      %v1877 = vsel %vm1815, %v1872, %v1876
      %v1878 = vshrl.u32 %v1772, 16
      %v1880 = vrot.slane %v1878, 4
      %v1881 = vor.u32 %v1880, %v1876
      %v1882 = vrot.slane %v1881, 4
      %v1884 = vshll.u32 %v1773, 16
      %v1886 = vrot.slane %v1884, 5
      %v1887 = vsel %vm1815, %v1882, %v1886
      %v1889 = vshrl.u32 %v1774, 16
      %v1891 = vrot.slane %v1889, 4
      %v1892 = vshll.u32 %v1774, 16
      %v1894 = vrot.slane %v1892, 5
      %v1895 = vor.u32 %v1891, %v1894
      %v1896 = vrot.slane %v1895, 4
      %v1898 = vshll.u32 %v1775, 16
      %v1900 = vrot.slane %v1898, 5
      %v1901 = vsel %vm1815, %v1896, %v1900
      %v1902 = vshrl.u32 %v1775, 16
      %v1904 = vrot.slane %v1902, 4
      %v1905 = vor.u32 %v1904, %v1900
      %v1906 = vrot.slane %v1905, 4
      %v1908 = vshll.u32 %v1776, 16
      %v1910 = vrot.slane %v1908, 5
      %v1911 = vsel %vm1815, %v1906, %v1910
      %v1913 = vshrl.u32 %v1777, 16
      %v1915 = vrot.slane %v1913, 4
      %v1916 = vshll.u32 %v1777, 16
      %v1918 = vrot.slane %v1916, 5
      %v1919 = vor.u32 %v1915, %v1918
      %v1920 = vrot.slane %v1919, 4
      %v1922 = vshll.u32 %v1778, 16
      %v1924 = vrot.slane %v1922, 5
      %v1925 = vsel %vm1815, %v1920, %v1924
      %v1926 = vshrl.u32 %v1778, 16
      %v1928 = vrot.slane %v1926, 4
      %v1929 = vor.u32 %v1928, %v1924
      %v1930 = vrot.slane %v1929, 4
      %v1932 = vshll.u32 %v1779, 16
      %v1934 = vrot.slane %v1932, 5
      %v1935 = vsel %vm1815, %v1930, %v1934
      %v1937 = vshrl.u32 %v1780, 16
      %v1939 = vrot.slane %v1937, 4
      %v1940 = vshll.u32 %v1780, 16
      %v1942 = vrot.slane %v1940, 5
      %v1943 = vor.u32 %v1939, %v1942
      %v1944 = vrot.slane %v1943, 4
      %v1946 = vshll.u32 %v1781, 16
      %v1948 = vrot.slane %v1946, 5
      %v1949 = vsel %vm1815, %v1944, %v1948
      %v1950 = vshrl.u32 %v1781, 16
      %v1952 = vrot.slane %v1950, 4
      %v1953 = vor.u32 %v1952, %v1948
      %v1954 = vrot.slane %v1953, 4
      %v1956 = vshll.u32 %v1782, 16
      %v1958 = vrot.slane %v1956, 5
      %v1959 = vsel %vm1815, %v1954, %v1958
      %v1961 = vshrl.u32 %v1783, 16
      %v1963 = vrot.slane %v1961, 4
      %v1964 = vshll.u32 %v1783, 16
      %v1966 = vrot.slane %v1964, 5
      %v1967 = vor.u32 %v1963, %v1966
      %v1968 = vrot.slane %v1967, 4
      %v1970 = vshll.u32 %v1784, 16
      %v1972 = vrot.slane %v1970, 5
      %v1973 = vsel %vm1815, %v1968, %v1972
      %v1974 = vshrl.u32 %v1784, 16
      %v1976 = vrot.slane %v1974, 4
      %v1977 = vor.u32 %v1976, %v1972
      %v1978 = vrot.slane %v1977, 4
      %v1980 = vshll.u32 %v1785, 16
      %v1982 = vrot.slane %v1980, 5
      %v1983 = vsel %vm1815, %v1978, %v1982
      %v1985 = vshrl.u32 %v1786, 16
      %v1987 = vrot.slane %v1985, 4
      %v1988 = vshll.u32 %v1786, 16
      %v1990 = vrot.slane %v1988, 5
      %v1991 = vor.u32 %v1987, %v1990
      %v1992 = vrot.slane %v1991, 4
      %v1994 = vshll.u32 %v1787, 16
      %v1996 = vrot.slane %v1994, 5
      %v1997 = vsel %vm1815, %v1992, %v1996
      %v1998 = vshrl.u32 %v1787, 16
      %v2000 = vrot.slane %v1998, 4
      %v2001 = vor.u32 %v2000, %v1996
      %v2002 = vrot.slane %v2001, 4
      %v2004 = vshll.u32 %v1788, 16
      %v2006 = vrot.slane %v2004, 5
      %v2007 = vsel %vm1815, %v2002, %v2006
      %v2009 = vshrl.u32 %v1789, 16
      %v2011 = vrot.slane %v2009, 4
      %v2012 = vshll.u32 %v1789, 16
      %v2014 = vrot.slane %v2012, 5
      %v2015 = vor.u32 %v2011, %v2014
      %v2016 = vrot.slane %v2015, 4
      %v2018 = vshll.u32 %v1790, 16
      %v2020 = vrot.slane %v2018, 5
      %v2021 = vsel %vm1815, %v2016, %v2020
      %v2022 = vshrl.u32 %v1790, 16
      %v2024 = vrot.slane %v2022, 4
      %v2025 = vor.u32 %v2024, %v2020
      %v2026 = vrot.slane %v2025, 4
      %v2028 = vshll.u32 %v1791, 16
      %v2030 = vrot.slane %v2028, 5
      %v2031 = vsel %vm1815, %v2026, %v2030
      %v2033 = vshrl.u32 %v1792, 16
      %v2035 = vrot.slane %v2033, 4
      %v2036 = vshll.u32 %v1792, 16
      %v2038 = vrot.slane %v2036, 5
      %v2039 = vor.u32 %v2035, %v2038
      %v2040 = vrot.slane %v2039, 4
      %v2042 = vshll.u32 %v1793, 16
      %v2044 = vrot.slane %v2042, 5
      %v2045 = vsel %vm1815, %v2040, %v2044
      %v2046 = vshrl.u32 %v1793, 16
      %v2048 = vrot.slane %v2046, 4
      %v2049 = vor.u32 %v2048, %v2044
      %v2050 = vrot.slane %v2049, 4
      %v2052 = vshll.u32 %v1794, 16
      %v2054 = vrot.slane %v2052, 5
      %v2055 = vsel %vm1815, %v2050, %v2054
      %v2057 = vshrl.u32 %v1795, 16
      %v2059 = vrot.slane %v2057, 4
      %v2060 = vshll.u32 %v1795, 16
      %v2062 = vrot.slane %v2060, 5
      %v2063 = vor.u32 %v2059, %v2062
      %v2064 = vrot.slane %v2063, 4
      %v2066 = vshll.u32 %v1796, 16
      %v2068 = vrot.slane %v2066, 5
      %v2069 = vsel %vm1815, %v2064, %v2068
      %v2070 = vshrl.u32 %v1796, 16
      %v2072 = vrot.slane %v2070, 4
      %v2073 = vor.u32 %v2072, %v2068
      %v2074 = vrot.slane %v2073, 4
      %v2076 = vshll.u32 %v1797, 16
      %v2078 = vrot.slane %v2076, 5
      %v2079 = vsel %vm1815, %v2074, %v2078
      %v2081 = vshrl.u32 %v1798, 16
      %v2083 = vrot.slane %v2081, 4
      %v2084 = vshll.u32 %v1798, 16
      %v2086 = vrot.slane %v2084, 5
      %v2087 = vor.u32 %v2083, %v2086
      %v2088 = vrot.slane %v2087, 4
      %v2090 = vshll.u32 %v1799, 16
      %v2092 = vrot.slane %v2090, 5
      %v2093 = vsel %vm1815, %v2088, %v2092
      %v2094 = vshrl.u32 %v1799, 16
      %v2096 = vrot.slane %v2094, 4
      %v2097 = vor.u32 %v2096, %v2092
      %v2098 = vrot.slane %v2097, 4
      %v2100 = vshll.u32 %v1800, 16
      %v2102 = vrot.slane %v2100, 5
      %v2103 = vsel %vm1815, %v2098, %v2102
      %v2105 = vshrl.u32 %v1801, 16
      %v2107 = vrot.slane %v2105, 4
      %v2108 = vshll.u32 %v1801, 16
      %v2110 = vrot.slane %v2108, 5
      %v2111 = vor.u32 %v2107, %v2110
      %v2112 = vrot.slane %v2111, 4
      %v2114 = vshll.u32 %v1802, 16
      %v2116 = vrot.slane %v2114, 5
      %v2117 = vsel %vm1815, %v2112, %v2116
      %v2118 = vshrl.u32 %v1802, 16
      %v2120 = vrot.slane %v2118, 4
      %v2121 = vor.u32 %v2120, %v2116
      %v2122 = vrot.slane %v2121, 4
      %v2124 = vshll.u32 %v1803, 16
      %v2126 = vrot.slane %v2124, 5
      %v2127 = vsel %vm1815, %v2122, %v2126
      %v2129 = vshrl.u32 %v1804, 16
      %v2131 = vrot.slane %v2129, 4
      %v2132 = vshll.u32 %v1804, 16
      %v2134 = vrot.slane %v2132, 5
      %v2135 = vor.u32 %v2131, %v2134
      %v2136 = vrot.slane %v2135, 4
      %v2138 = vshll.u32 %v1805, 16
      %v2140 = vrot.slane %v2138, 5
      %v2141 = vsel %vm1815, %v2136, %v2140
      %v2142 = vshrl.u32 %v1805, 16
      %v2144 = vrot.slane %v2142, 4
      %v2145 = vor.u32 %v2144, %v2140
      %v2146 = vrot.slane %v2145, 4
      %v2148 = vshll.u32 %v1806, 16
      %v2150 = vrot.slane %v2148, 5
      %v2151 = vsel %vm1815, %v2146, %v2150
      %v2153 = vshrl.u32 %v1807, 16
      %v2155 = vrot.slane %v2153, 4
      %v2156 = vshll.u32 %v1807, 16
      %v2158 = vrot.slane %v2156, 5
      %v2159 = vor.u32 %v2155, %v2158
      %v2160 = vrot.slane %v2159, 4
      %v2162 = vshll.u32 %v1808, 16
      %v2164 = vrot.slane %v2162, 5
      %v2165 = vsel %vm1815, %v2160, %v2164
      %v2166 = vshrl.u32 %v1808, 16
      %v2168 = vrot.slane %v2166, 4
      %v2169 = vor.u32 %v2168, %v2164
      %v2170 = vrot.slane %v2169, 4
      %v2172 = vshll.u32 %v1809, 16
      %v2174 = vrot.slane %v2172, 5
      %v2175 = vsel %vm1815, %v2170, %v2174
      %v2177 = vshrl.u32 %v1810, 16
      %v2179 = vrot.slane %v2177, 4
      %v2180 = vshll.u32 %v1810, 16
      %v2182 = vrot.slane %v2180, 5
      %v2183 = vor.u32 %v2179, %v2182
      %v2184 = vrot.slane %v2183, 4
      %v2186 = vshll.u32 %v1811, 16
      %v2188 = vrot.slane %v2186, 5
      %v2189 = vsel %vm1815, %v2184, %v2188
      %v2190 = vshrl.u32 %v1811, 16
      %v2192 = vrot.slane %v2190, 4
      %v2193 = vor.u32 %v2192, %v2188
      %v2194 = vrot.slane %v2193, 4
      %v2196 = vshll.u32 %v1812, 16
      %v2198 = vrot.slane %v2196, 5
      %v2199 = vsel %vm1815, %v2194, %v2198
      %s2200 = scalar_lea.vmem %s3, 64
      %v2201 = vld [vmem:[%s2200] sm:$0xf]
      %v2202 = vld [vmem:[%s2200 + $0x4] sm:$0xf]
      %v2203 = vld [vmem:[%s2200 + $0x8] sm:$0xf]
      %v2204 = vld [vmem:[%s2200 + $0xc] sm:$0xf]
      %v2205 = vld [vmem:[%s2200 + $0x10] sm:$0xf]
      %v2206 = vld [vmem:[%s2200 + $0x14] sm:$0xf]
      %v2207 = vld [vmem:[%s2200 + $0x18] sm:$0xf]
      %v2208 = vld [vmem:[%s2200 + $0x1c] sm:$0xf]
      %v2209 = vld [vmem:[%s2200 + $0x20] sm:$0xf]
      %v2210 = vld [vmem:[%s2200 + $0x24] sm:$0xf]
      %v2211 = vld [vmem:[%s2200 + $0x28] sm:$0xf]
      %v2212 = vld [vmem:[%s2200 + $0x2c] sm:$0xf]
      %v2213 = vld [vmem:[%s2200 + $0x30] sm:$0xf]
      %v2214 = vld [vmem:[%s2200 + $0x34] sm:$0xf]
      %v2215 = vld [vmem:[%s2200 + $0x38] sm:$0xf]
      %v2216 = vld [vmem:[%s2200 + $0x3c] sm:$0xf]
      %v2217 = vunpack.c.l.b16 %v1829
      %v2218 = vunpack.c.l.b16 %v1839
      %v2219 = vunpack.c.l.b16 %v1853
      %v2220 = vunpack.c.l.b16 %v1863
      %v2221 = vunpack.c.l.b16 %v1877
      %v2222 = vunpack.c.l.b16 %v1887
      %v2223 = vunpack.c.l.b16 %v1901
      %v2224 = vunpack.c.l.b16 %v1911
      %v2225 = vunpack.c.l.b16 %v1925
      %v2226 = vunpack.c.l.b16 %v1935
      %v2227 = vunpack.c.l.b16 %v1949
      %v2228 = vunpack.c.l.b16 %v1959
      %v2229 = vunpack.c.l.b16 %v1973
      %v2230 = vunpack.c.l.b16 %v1983
      %v2231 = vunpack.c.l.b16 %v1997
      %v2232 = vunpack.c.l.b16 %v2007
      %v2233 = vunpack.c.l.b16 %v2021
      %v2234 = vunpack.c.l.b16 %v2031
      %v2235 = vunpack.c.l.b16 %v2045
      %v2236 = vunpack.c.l.b16 %v2055
      %v2237 = vunpack.c.l.b16 %v2069
      %v2238 = vunpack.c.l.b16 %v2079
      %v2239 = vunpack.c.l.b16 %v2093
      %v2240 = vunpack.c.l.b16 %v2103
      %v2241 = vunpack.c.l.b16 %v2117
      %v2242 = vunpack.c.l.b16 %v2127
      %v2243 = vunpack.c.l.b16 %v2141
      %v2244 = vunpack.c.l.b16 %v2151
      %v2245 = vunpack.c.l.b16 %v2165
      %v2246 = vunpack.c.l.b16 %v2175
      %v2247 = vunpack.c.l.b16 %v2189
      %v2248 = vunpack.c.l.b16 %v2199
      %v2249 = vpack.c.b16 %v2218, %v2217
      %v2250 = vpack.c.b16 %v2220, %v2219
      %v2251 = vpack.c.b16 %v2222, %v2221
      %v2252 = vpack.c.b16 %v2224, %v2223
      %v2253 = vpack.c.b16 %v2226, %v2225
      %v2254 = vpack.c.b16 %v2228, %v2227
      %v2255 = vpack.c.b16 %v2230, %v2229
      %v2256 = vpack.c.b16 %v2232, %v2231
      %v2257 = vpack.c.b16 %v2234, %v2233
      %v2258 = vpack.c.b16 %v2236, %v2235
      %v2259 = vpack.c.b16 %v2238, %v2237
      %v2260 = vpack.c.b16 %v2240, %v2239
      %v2261 = vpack.c.b16 %v2242, %v2241
      %v2262 = vpack.c.b16 %v2244, %v2243
      %v2263 = vpack.c.b16 %v2246, %v2245
      %v2264 = vpack.c.b16 %v2248, %v2247
      %v2297 = vunpack.c.l.b16 %v2201
      %v2298 = vunpack.c.l.b16 %v2202
      %v2299 = vunpack.c.l.b16 %v2203
      %v2300 = vunpack.c.l.b16 %v2204
      %v2301 = vunpack.c.l.b16 %v2205
      %v2302 = vunpack.c.l.b16 %v2206
      %v2303 = vunpack.c.l.b16 %v2207
      %v2304 = vunpack.c.l.b16 %v2208
      %v2305 = vunpack.c.l.b16 %v2209
      %v2306 = vunpack.c.l.b16 %v2210
      %v2307 = vunpack.c.l.b16 %v2211
      %v2308 = vunpack.c.l.b16 %v2212
      %v2309 = vunpack.c.l.b16 %v2213
      %v2310 = vunpack.c.l.b16 %v2214
      %v2311 = vunpack.c.l.b16 %v2215
      %v2312 = vunpack.c.l.b16 %v2216
      %v2313 = vpack.c.b16 %v2298, %v2297
      %v2314 = vpack.c.b16 %v2300, %v2299
      %v2315 = vpack.c.b16 %v2302, %v2301
      %v2316 = vpack.c.b16 %v2304, %v2303
      %v2317 = vpack.c.b16 %v2306, %v2305
      %v2318 = vpack.c.b16 %v2308, %v2307
      %v2319 = vpack.c.b16 %v2310, %v2309
      %v2320 = vpack.c.b16 %v2312, %v2311
      %2329 = vmatprep.subr.bf16.mxu0 0
      %2330 = vmatpush1.bf16.msra.mxu0 %v2320
      %2331 = vmatprep.subr.bf16.mxu0 0
      %2332 = vmatpush1.bf16.msra.mxu0 %v2319
      %2333 = vmatprep.subr.bf16.mxu0 0
      %2334 = vmatpush1.bf16.msra.mxu0 %v2318
      %2335 = vmatprep.subr.bf16.mxu0 0
      %2336 = vmatpush1.bf16.msra.mxu0 %v2317
      %2337 = vmatprep.subr.bf16.mxu0 0
      %2338 = vmatpush1.bf16.msra.mxu0 %v2316
      %2339 = vmatprep.subr.bf16.mxu0 0
      %2340 = vmatpush1.bf16.msra.mxu0 %v2315
      %2341 = vmatprep.subr.bf16.mxu0 0
      %2342 = vmatpush1.bf16.msra.mxu0 %v2314
      %2343 = vmatprep.subr.bf16.mxu0 0
      %2344 = vmatpush1.bf16.msra.mxu0 %v2313
      %2345 = vmatprep.subr.bf16.mxu0 0
      %2346 = vmatpush2.bf16.msra.mxu0 0
      %2347 = vmatprep.subr.bf16.mxu0 0
      %2348 = vmatpush2.bf16.msra.mxu0 0
      %2349 = vmatprep.subr.bf16.mxu0 0
      %2350 = vmatpush2.bf16.msra.mxu0 0
      %2351 = vmatprep.subr.bf16.mxu0 0
      %2352 = vmatpush2.bf16.msra.mxu0 0
      %2353 = vmatprep.subr.bf16.mxu0 0
      %2354 = vmatpush2.bf16.msra.mxu0 0
      %2355 = vmatprep.subr.bf16.mxu0 0
      %2356 = vmatpush2.bf16.msra.mxu0 0
      %2357 = vmatprep.subr.bf16.mxu0 0
      %2358 = vmatpush2.bf16.msra.mxu0 0
      %2359 = vmatprep.subr.bf16.mxu0 0
      %2360 = vmatpush2.bf16.msra.mxu0 0
      %2361 = vmatprep.mubr.bf16.mxu0 0
      %2362 = vmatmul.mubr.bf16.gmra.mxu0 %v2249
      %v2363 = vpop.f32.mrf.mxu0
      %v2364 = vadd.f32 0.0, %v2363
      %v2365 = vpop.f32.mrf.mxu0
      %v2366 = vpop.f32.mrf.mxu0
      %v2367 = vadd.f32 0.0, %v2366
      %v2368 = vpop.f32.mrf.mxu0
      %2369 = vmatprep.mubr.bf16.mxu0 0
      %2370 = vmatmul.mubr.bf16.gmra.mxu0 %v2250
      %v2371 = vpop.f32.mrf.mxu0
      %v2372 = vadd.f32 0.0, %v2371
      %v2373 = vpop.f32.mrf.mxu0
      %v2374 = vpop.f32.mrf.mxu0
      %v2375 = vadd.f32 0.0, %v2374
      %v2376 = vpop.f32.mrf.mxu0
      %2377 = vmatprep.mubr.bf16.mxu0 0
      %2378 = vmatmul.mubr.bf16.gmra.mxu0 %v2251
      %v2379 = vpop.f32.mrf.mxu0
      %v2380 = vadd.f32 0.0, %v2379
      %v2381 = vpop.f32.mrf.mxu0
      %v2382 = vpop.f32.mrf.mxu0
      %v2383 = vadd.f32 0.0, %v2382
      %v2384 = vpop.f32.mrf.mxu0
      %2385 = vmatprep.mubr.bf16.mxu0 0
      %2386 = vmatmul.mubr.bf16.gmra.mxu0 %v2252
      %v2387 = vpop.f32.mrf.mxu0
      %v2388 = vadd.f32 0.0, %v2387
      %v2389 = vpop.f32.mrf.mxu0
      %v2390 = vpop.f32.mrf.mxu0
      %v2391 = vadd.f32 0.0, %v2390
      %v2392 = vpop.f32.mrf.mxu0
      %2393 = vmatprep.mubr.bf16.mxu0 0
      %2394 = vmatmul.mubr.bf16.gmra.mxu0 %v2253
      %v2395 = vpop.f32.mrf.mxu0
      %v2396 = vadd.f32 0.0, %v2395
      %v2397 = vpop.f32.mrf.mxu0
      %v2398 = vpop.f32.mrf.mxu0
      %v2399 = vadd.f32 0.0, %v2398
      %v2400 = vpop.f32.mrf.mxu0
      %2401 = vmatprep.mubr.bf16.mxu0 0
      %2402 = vmatmul.mubr.bf16.gmra.mxu0 %v2254
      %v2403 = vpop.f32.mrf.mxu0
      %v2404 = vadd.f32 0.0, %v2403
      %v2405 = vpop.f32.mrf.mxu0
      %v2406 = vpop.f32.mrf.mxu0
      %v2407 = vadd.f32 0.0, %v2406
      %v2408 = vpop.f32.mrf.mxu0
      %2409 = vmatprep.mubr.bf16.mxu0 0
      %2410 = vmatmul.mubr.bf16.gmra.mxu0 %v2255
      %v2411 = vpop.f32.mrf.mxu0
      %v2412 = vadd.f32 0.0, %v2411
      %v2413 = vpop.f32.mrf.mxu0
      %v2414 = vpop.f32.mrf.mxu0
      %v2415 = vadd.f32 0.0, %v2414
      %v2416 = vpop.f32.mrf.mxu0
      %2417 = vmatprep.mubr.bf16.mxu0 0
      %2418 = vmatmul.mubr.bf16.gmra.mxu0 %v2256
      %v2419 = vpop.f32.mrf.mxu0
      %v2420 = vadd.f32 0.0, %v2419
      %v2421 = vpop.f32.mrf.mxu0
      %v2422 = vpop.f32.mrf.mxu0
      %v2423 = vadd.f32 0.0, %v2422
      %v2424 = vpop.f32.mrf.mxu0
      %2425 = vmatprep.mubr.bf16.mxu0 0
      %2426 = vmatmul.mubr.bf16.gmra.mxu0 %v2257
      %v2427 = vpop.f32.mrf.mxu0
      %v2428 = vadd.f32 0.0, %v2427
      %v2429 = vpop.f32.mrf.mxu0
      %v2430 = vpop.f32.mrf.mxu0
      %v2431 = vadd.f32 0.0, %v2430
      %v2432 = vpop.f32.mrf.mxu0
      %2433 = vmatprep.mubr.bf16.mxu0 0
      %2434 = vmatmul.mubr.bf16.gmra.mxu0 %v2258
      %v2435 = vpop.f32.mrf.mxu0
      %v2436 = vadd.f32 0.0, %v2435
      %v2437 = vpop.f32.mrf.mxu0
      %v2438 = vpop.f32.mrf.mxu0
      %v2439 = vadd.f32 0.0, %v2438
      %v2440 = vpop.f32.mrf.mxu0
      %2441 = vmatprep.mubr.bf16.mxu0 0
      %2442 = vmatmul.mubr.bf16.gmra.mxu0 %v2259
      %v2443 = vpop.f32.mrf.mxu0
      %v2444 = vadd.f32 0.0, %v2443
      %v2445 = vpop.f32.mrf.mxu0
      %v2446 = vpop.f32.mrf.mxu0
      %v2447 = vadd.f32 0.0, %v2446
      %v2448 = vpop.f32.mrf.mxu0
      %2449 = vmatprep.mubr.bf16.mxu0 0
      %2450 = vmatmul.mubr.bf16.gmra.mxu0 %v2260
      %v2451 = vpop.f32.mrf.mxu0
      %v2452 = vadd.f32 0.0, %v2451
      %v2453 = vpop.f32.mrf.mxu0
      %v2454 = vpop.f32.mrf.mxu0
      %v2455 = vadd.f32 0.0, %v2454
      %v2456 = vpop.f32.mrf.mxu0
      %2457 = vmatprep.mubr.bf16.mxu0 0
      %2458 = vmatmul.mubr.bf16.gmra.mxu0 %v2261
      %v2459 = vpop.f32.mrf.mxu0
      %v2460 = vadd.f32 0.0, %v2459
      %v2461 = vpop.f32.mrf.mxu0
      %v2462 = vpop.f32.mrf.mxu0
      %v2463 = vadd.f32 0.0, %v2462
      %v2464 = vpop.f32.mrf.mxu0
      %2465 = vmatprep.mubr.bf16.mxu0 0
      %2466 = vmatmul.mubr.bf16.gmra.mxu0 %v2262
      %v2467 = vpop.f32.mrf.mxu0
      %v2468 = vadd.f32 0.0, %v2467
      %v2469 = vpop.f32.mrf.mxu0
      %v2470 = vpop.f32.mrf.mxu0
      %v2471 = vadd.f32 0.0, %v2470
      %v2472 = vpop.f32.mrf.mxu0
      %2473 = vmatprep.mubr.bf16.mxu0 0
      %2474 = vmatmul.mubr.bf16.gmra.mxu0 %v2263
      %v2475 = vpop.f32.mrf.mxu0
      %v2476 = vadd.f32 0.0, %v2475
      %v2477 = vpop.f32.mrf.mxu0
      %v2478 = vpop.f32.mrf.mxu0
      %v2479 = vadd.f32 0.0, %v2478
      %v2480 = vpop.f32.mrf.mxu0
      %2481 = vmatprep.mubr.bf16.mxu0 0
      %2482 = vmatmul.mubr.bf16.gmra.mxu0 %v2264
      %v2483 = vpop.f32.mrf.mxu0
      %v2484 = vadd.f32 0.0, %v2483
      %v2485 = vpop.f32.mrf.mxu0
      %v2486 = vpop.f32.mrf.mxu0
      %v2487 = vadd.f32 0.0, %v2486
      %v2488 = vpop.f32.mrf.mxu0
      %2489 = vdwg.mxu0
      %v2490 = vadd.f32 %v1733, %v2364
      %v2491 = vadd.f32 %v1734, %v2367
      %v2492 = vadd.f32 %v1735, %v2372
      %v2493 = vadd.f32 %v1736, %v2375
      %v2494 = vadd.f32 %v1737, %v2380
      %v2495 = vadd.f32 %v1738, %v2383
      %v2496 = vadd.f32 %v1739, %v2388
      %v2497 = vadd.f32 %v1740, %v2391
      %v2498 = vadd.f32 %v1741, %v2396
      %v2499 = vadd.f32 %v1742, %v2399
      %v2500 = vadd.f32 %v1743, %v2404
      %v2501 = vadd.f32 %v1744, %v2407
      %v2502 = vadd.f32 %v1745, %v2412
      %v2503 = vadd.f32 %v1746, %v2415
      %v2504 = vadd.f32 %v1747, %v2420
      %v2505 = vadd.f32 %v1748, %v2423
      %v2506 = vadd.f32 %v1749, %v2428
      %v2507 = vadd.f32 %v1750, %v2431
      %v2508 = vadd.f32 %v1751, %v2436
      %v2509 = vadd.f32 %v1752, %v2439
      %v2510 = vadd.f32 %v1753, %v2444
      %v2511 = vadd.f32 %v1754, %v2447
      %v2512 = vadd.f32 %v1755, %v2452
      %v2513 = vadd.f32 %v1756, %v2455
      %v2514 = vadd.f32 %v1757, %v2460
      %v2515 = vadd.f32 %v1758, %v2463
      %v2516 = vadd.f32 %v1759, %v2468
      %v2517 = vadd.f32 %v1760, %v2471
      %v2518 = vadd.f32 %v1761, %v2476
      %v2519 = vadd.f32 %v1762, %v2479
      %v2520 = vadd.f32 %v1763, %v2484
      %v2521 = vadd.f32 %v1764, %v2487
      %v2522 = vld [vmem:[#allocation2] sm:$0xe]
      %v2523 = vld [vmem:[#allocation2 + $0xc] sm:$0xe]
      %v2524 = vld [vmem:[#allocation2 + $0x18] sm:$0xe]
      %v2525 = vld [vmem:[#allocation2 + $0x24] sm:$0xe]
      %v2526 = vld [vmem:[#allocation2 + $0x30] sm:$0xe]
      %v2527 = vld [vmem:[#allocation2 + $0x3c] sm:$0xe]
      %v2528 = vld [vmem:[#allocation2 + $0x48] sm:$0xe]
      %v2529 = vld [vmem:[#allocation2 + $0x54] sm:$0xe]
      %v2530 = vld [vmem:[#allocation2 + $0x60] sm:$0xe]
      %v2531 = vld [vmem:[#allocation2 + $0x6c] sm:$0xe]
      %v2532 = vld [vmem:[#allocation2 + $0x78] sm:$0xe]
      %v2533 = vld [vmem:[#allocation2 + $0x84] sm:$0xe]
      %v2534 = vld [vmem:[#allocation2 + $0x90] sm:$0xe]
      %v2535 = vld [vmem:[#allocation2 + $0x9c] sm:$0xe]
      %v2536 = vld [vmem:[#allocation2 + $0xa8] sm:$0xe]
      %v2537 = vld [vmem:[#allocation2 + $0xb4] sm:$0xe]
      %vm2586 = vcmask 1042432
      %vm2587 = vcmask 1046532
      %vm2588 = vmor %vm2586, %vm2587
      %v2589 = vrot.slane %v2522, 5
      %v2590 = vrot.slane %v2589, 4
      %v2591 = vrot.slane %v1766, 5
      %v2592 = vsel %vm2588, %v2590, %v2591
      %v2593 = vrot.slane %v2591, 4
      %v2594 = vrot.slane %v1767, 5
      %v2595 = vsel %vm2588, %v2593, %v2594
      %v2596 = vrot.slane %v2523, 5
      %v2597 = vrot.slane %v2596, 4
      %v2598 = vrot.slane %v1769, 5
      %v2599 = vsel %vm2588, %v2597, %v2598
      %v2600 = vrot.slane %v2598, 4
      %v2601 = vrot.slane %v1770, 5
      %v2602 = vsel %vm2588, %v2600, %v2601
      %v2603 = vrot.slane %v2524, 5
      %v2604 = vrot.slane %v2603, 4
      %v2605 = vrot.slane %v1772, 5
      %v2606 = vsel %vm2588, %v2604, %v2605
      %v2607 = vrot.slane %v2605, 4
      %v2608 = vrot.slane %v1773, 5
      %v2609 = vsel %vm2588, %v2607, %v2608
      %v2610 = vrot.slane %v2525, 5
      %v2611 = vrot.slane %v2610, 4
      %v2612 = vrot.slane %v1775, 5
      %v2613 = vsel %vm2588, %v2611, %v2612
      %v2614 = vrot.slane %v2612, 4
      %v2615 = vrot.slane %v1776, 5
      %v2616 = vsel %vm2588, %v2614, %v2615
      %v2617 = vrot.slane %v2526, 5
      %v2618 = vrot.slane %v2617, 4
      %v2619 = vrot.slane %v1778, 5
      %v2620 = vsel %vm2588, %v2618, %v2619
      %v2621 = vrot.slane %v2619, 4
      %v2622 = vrot.slane %v1779, 5
      %v2623 = vsel %vm2588, %v2621, %v2622
      %v2624 = vrot.slane %v2527, 5
      %v2625 = vrot.slane %v2624, 4
      %v2626 = vrot.slane %v1781, 5
      %v2627 = vsel %vm2588, %v2625, %v2626
      %v2628 = vrot.slane %v2626, 4
      %v2629 = vrot.slane %v1782, 5
      %v2630 = vsel %vm2588, %v2628, %v2629
      %v2631 = vrot.slane %v2528, 5
      %v2632 = vrot.slane %v2631, 4
      %v2633 = vrot.slane %v1784, 5
      %v2634 = vsel %vm2588, %v2632, %v2633
      %v2635 = vrot.slane %v2633, 4
      %v2636 = vrot.slane %v1785, 5
      %v2637 = vsel %vm2588, %v2635, %v2636
      %v2638 = vrot.slane %v2529, 5
      %v2639 = vrot.slane %v2638, 4
      %v2640 = vrot.slane %v1787, 5
      %v2641 = vsel %vm2588, %v2639, %v2640
      %v2642 = vrot.slane %v2640, 4
      %v2643 = vrot.slane %v1788, 5
      %v2644 = vsel %vm2588, %v2642, %v2643
      %v2645 = vrot.slane %v2530, 5
      %v2646 = vrot.slane %v2645, 4
      %v2647 = vrot.slane %v1790, 5
      %v2648 = vsel %vm2588, %v2646, %v2647
      %v2649 = vrot.slane %v2647, 4
      %v2650 = vrot.slane %v1791, 5
      %v2651 = vsel %vm2588, %v2649, %v2650
      %v2652 = vrot.slane %v2531, 5
      %v2653 = vrot.slane %v2652, 4
      %v2654 = vrot.slane %v1793, 5
      %v2655 = vsel %vm2588, %v2653, %v2654
      %v2656 = vrot.slane %v2654, 4
      %v2657 = vrot.slane %v1794, 5
      %v2658 = vsel %vm2588, %v2656, %v2657
      %v2659 = vrot.slane %v2532, 5
      %v2660 = vrot.slane %v2659, 4
      %v2661 = vrot.slane %v1796, 5
      %v2662 = vsel %vm2588, %v2660, %v2661
      %v2663 = vrot.slane %v2661, 4
      %v2664 = vrot.slane %v1797, 5
      %v2665 = vsel %vm2588, %v2663, %v2664
      %v2666 = vrot.slane %v2533, 5
      %v2667 = vrot.slane %v2666, 4
      %v2668 = vrot.slane %v1799, 5
      %v2669 = vsel %vm2588, %v2667, %v2668
      %v2670 = vrot.slane %v2668, 4
      %v2671 = vrot.slane %v1800, 5
      %v2672 = vsel %vm2588, %v2670, %v2671
      %v2673 = vrot.slane %v2534, 5
      %v2674 = vrot.slane %v2673, 4
      %v2675 = vrot.slane %v1802, 5
      %v2676 = vsel %vm2588, %v2674, %v2675
      %v2677 = vrot.slane %v2675, 4
      %v2678 = vrot.slane %v1803, 5
      %v2679 = vsel %vm2588, %v2677, %v2678
      %v2680 = vrot.slane %v2535, 5
      %v2681 = vrot.slane %v2680, 4
      %v2682 = vrot.slane %v1805, 5
      %v2683 = vsel %vm2588, %v2681, %v2682
      %v2684 = vrot.slane %v2682, 4
      %v2685 = vrot.slane %v1806, 5
      %v2686 = vsel %vm2588, %v2684, %v2685
      %v2687 = vrot.slane %v2536, 5
      %v2688 = vrot.slane %v2687, 4
      %v2689 = vrot.slane %v1808, 5
      %v2690 = vsel %vm2588, %v2688, %v2689
      %v2691 = vrot.slane %v2689, 4
      %v2692 = vrot.slane %v1809, 5
      %v2693 = vsel %vm2588, %v2691, %v2692
      %v2694 = vrot.slane %v2537, 5
      %v2695 = vrot.slane %v2694, 4
      %v2696 = vrot.slane %v1811, 5
      %v2697 = vsel %vm2588, %v2695, %v2696
      %v2698 = vrot.slane %v2696, 4
      %v2699 = vrot.slane %v1812, 5
      %v2700 = vsel %vm2588, %v2698, %v2699
      %s2701 = scalar_lea.vmem %s3, 128
      %v2702 = vld [vmem:[%s2701] sm:$0xf]
      %v2703 = vld [vmem:[%s2701 + $0x4] sm:$0xf]
      %v2704 = vld [vmem:[%s2701 + $0x8] sm:$0xf]
      %v2705 = vld [vmem:[%s2701 + $0xc] sm:$0xf]
      %v2706 = vld [vmem:[%s2701 + $0x10] sm:$0xf]
      %v2707 = vld [vmem:[%s2701 + $0x14] sm:$0xf]
      %v2708 = vld [vmem:[%s2701 + $0x18] sm:$0xf]
      %v2709 = vld [vmem:[%s2701 + $0x1c] sm:$0xf]
      %v2710 = vld [vmem:[%s2701 + $0x20] sm:$0xf]
      %v2711 = vld [vmem:[%s2701 + $0x24] sm:$0xf]
      %v2712 = vld [vmem:[%s2701 + $0x28] sm:$0xf]
      %v2713 = vld [vmem:[%s2701 + $0x2c] sm:$0xf]
      %v2714 = vld [vmem:[%s2701 + $0x30] sm:$0xf]
      %v2715 = vld [vmem:[%s2701 + $0x34] sm:$0xf]
      %v2716 = vld [vmem:[%s2701 + $0x38] sm:$0xf]
      %v2717 = vld [vmem:[%s2701 + $0x3c] sm:$0xf]
      %v2718 = vunpack.c.l.b16 %v2592
      %v2719 = vunpack.c.l.b16 %v2595
      %v2720 = vunpack.c.l.b16 %v2599
      %v2721 = vunpack.c.l.b16 %v2602
      %v2722 = vunpack.c.l.b16 %v2606
      %v2723 = vunpack.c.l.b16 %v2609
      %v2724 = vunpack.c.l.b16 %v2613
      %v2725 = vunpack.c.l.b16 %v2616
      %v2726 = vunpack.c.l.b16 %v2620
      %v2727 = vunpack.c.l.b16 %v2623
      %v2728 = vunpack.c.l.b16 %v2627
      %v2729 = vunpack.c.l.b16 %v2630
      %v2730 = vunpack.c.l.b16 %v2634
      %v2731 = vunpack.c.l.b16 %v2637
      %v2732 = vunpack.c.l.b16 %v2641
      %v2733 = vunpack.c.l.b16 %v2644
      %v2734 = vunpack.c.l.b16 %v2648
      %v2735 = vunpack.c.l.b16 %v2651
      %v2736 = vunpack.c.l.b16 %v2655
      %v2737 = vunpack.c.l.b16 %v2658
      %v2738 = vunpack.c.l.b16 %v2662
      %v2739 = vunpack.c.l.b16 %v2665
      %v2740 = vunpack.c.l.b16 %v2669
      %v2741 = vunpack.c.l.b16 %v2672
      %v2742 = vunpack.c.l.b16 %v2676
      %v2743 = vunpack.c.l.b16 %v2679
      %v2744 = vunpack.c.l.b16 %v2683
      %v2745 = vunpack.c.l.b16 %v2686
      %v2746 = vunpack.c.l.b16 %v2690
      %v2747 = vunpack.c.l.b16 %v2693
      %v2748 = vunpack.c.l.b16 %v2697
      %v2749 = vunpack.c.l.b16 %v2700
      %v2750 = vpack.c.b16 %v2719, %v2718
      %v2751 = vpack.c.b16 %v2721, %v2720
      %v2752 = vpack.c.b16 %v2723, %v2722
      %v2753 = vpack.c.b16 %v2725, %v2724
      %v2754 = vpack.c.b16 %v2727, %v2726
      %v2755 = vpack.c.b16 %v2729, %v2728
      %v2756 = vpack.c.b16 %v2731, %v2730
      %v2757 = vpack.c.b16 %v2733, %v2732
      %v2758 = vpack.c.b16 %v2735, %v2734
      %v2759 = vpack.c.b16 %v2737, %v2736
      %v2760 = vpack.c.b16 %v2739, %v2738
      %v2761 = vpack.c.b16 %v2741, %v2740
      %v2762 = vpack.c.b16 %v2743, %v2742
      %v2763 = vpack.c.b16 %v2745, %v2744
      %v2764 = vpack.c.b16 %v2747, %v2746
      %v2765 = vpack.c.b16 %v2749, %v2748
      %v2798 = vunpack.c.l.b16 %v2702
      %v2799 = vunpack.c.l.b16 %v2703
      %v2800 = vunpack.c.l.b16 %v2704
      %v2801 = vunpack.c.l.b16 %v2705
      %v2802 = vunpack.c.l.b16 %v2706
      %v2803 = vunpack.c.l.b16 %v2707
      %v2804 = vunpack.c.l.b16 %v2708
      %v2805 = vunpack.c.l.b16 %v2709
      %v2806 = vunpack.c.l.b16 %v2710
      %v2807 = vunpack.c.l.b16 %v2711
      %v2808 = vunpack.c.l.b16 %v2712
      %v2809 = vunpack.c.l.b16 %v2713
      %v2810 = vunpack.c.l.b16 %v2714
      %v2811 = vunpack.c.l.b16 %v2715
      %v2812 = vunpack.c.l.b16 %v2716
      %v2813 = vunpack.c.l.b16 %v2717
      %v2814 = vpack.c.b16 %v2799, %v2798
      %v2815 = vpack.c.b16 %v2801, %v2800
      %v2816 = vpack.c.b16 %v2803, %v2802
      %v2817 = vpack.c.b16 %v2805, %v2804
      %v2818 = vpack.c.b16 %v2807, %v2806
      %v2819 = vpack.c.b16 %v2809, %v2808
      %v2820 = vpack.c.b16 %v2811, %v2810
      %v2821 = vpack.c.b16 %v2813, %v2812
      %2830 = vmatprep.subr.bf16.mxu0 0
      %2831 = vmatpush1.bf16.msra.mxu0 %v2821
      %2832 = vmatprep.subr.bf16.mxu0 0
      %2833 = vmatpush1.bf16.msra.mxu0 %v2820
      %2834 = vmatprep.subr.bf16.mxu0 0
      %2835 = vmatpush1.bf16.msra.mxu0 %v2819
      %2836 = vmatprep.subr.bf16.mxu0 0
      %2837 = vmatpush1.bf16.msra.mxu0 %v2818
      %2838 = vmatprep.subr.bf16.mxu0 0
      %2839 = vmatpush1.bf16.msra.mxu0 %v2817
      %2840 = vmatprep.subr.bf16.mxu0 0
      %2841 = vmatpush1.bf16.msra.mxu0 %v2816
      %2842 = vmatprep.subr.bf16.mxu0 0
      %2843 = vmatpush1.bf16.msra.mxu0 %v2815
      %2844 = vmatprep.subr.bf16.mxu0 0
      %2845 = vmatpush1.bf16.msra.mxu0 %v2814
      %2846 = vmatprep.subr.bf16.mxu0 0
      %2847 = vmatpush2.bf16.msra.mxu0 0
      %2848 = vmatprep.subr.bf16.mxu0 0
      %2849 = vmatpush2.bf16.msra.mxu0 0
      %2850 = vmatprep.subr.bf16.mxu0 0
      %2851 = vmatpush2.bf16.msra.mxu0 0
      %2852 = vmatprep.subr.bf16.mxu0 0
      %2853 = vmatpush2.bf16.msra.mxu0 0
      %2854 = vmatprep.subr.bf16.mxu0 0
      %2855 = vmatpush2.bf16.msra.mxu0 0
      %2856 = vmatprep.subr.bf16.mxu0 0
      %2857 = vmatpush2.bf16.msra.mxu0 0
      %2858 = vmatprep.subr.bf16.mxu0 0
      %2859 = vmatpush2.bf16.msra.mxu0 0
      %2860 = vmatprep.subr.bf16.mxu0 0
      %2861 = vmatpush2.bf16.msra.mxu0 0
      %2862 = vmatprep.mubr.bf16.mxu0 0
      %2863 = vmatmul.mubr.bf16.gmra.mxu0 %v2750
      %v2864 = vpop.f32.mrf.mxu0
      %v2865 = vadd.f32 0.0, %v2864
      %v2866 = vpop.f32.mrf.mxu0
      %v2867 = vpop.f32.mrf.mxu0
      %v2868 = vadd.f32 0.0, %v2867
      %v2869 = vpop.f32.mrf.mxu0
      %2870 = vmatprep.mubr.bf16.mxu0 0
      %2871 = vmatmul.mubr.bf16.gmra.mxu0 %v2751
      %v2872 = vpop.f32.mrf.mxu0
      %v2873 = vadd.f32 0.0, %v2872
      %v2874 = vpop.f32.mrf.mxu0
      %v2875 = vpop.f32.mrf.mxu0
      %v2876 = vadd.f32 0.0, %v2875
      %v2877 = vpop.f32.mrf.mxu0
      %2878 = vmatprep.mubr.bf16.mxu0 0
      %2879 = vmatmul.mubr.bf16.gmra.mxu0 %v2752
      %v2880 = vpop.f32.mrf.mxu0
      %v2881 = vadd.f32 0.0, %v2880
      %v2882 = vpop.f32.mrf.mxu0
      %v2883 = vpop.f32.mrf.mxu0
      %v2884 = vadd.f32 0.0, %v2883
      %v2885 = vpop.f32.mrf.mxu0
      %2886 = vmatprep.mubr.bf16.mxu0 0
      %2887 = vmatmul.mubr.bf16.gmra.mxu0 %v2753
      %v2888 = vpop.f32.mrf.mxu0
      %v2889 = vadd.f32 0.0, %v2888
      %v2890 = vpop.f32.mrf.mxu0
      %v2891 = vpop.f32.mrf.mxu0
      %v2892 = vadd.f32 0.0, %v2891
      %v2893 = vpop.f32.mrf.mxu0
      %2894 = vmatprep.mubr.bf16.mxu0 0
      %2895 = vmatmul.mubr.bf16.gmra.mxu0 %v2754
      %v2896 = vpop.f32.mrf.mxu0
      %v2897 = vadd.f32 0.0, %v2896
      %v2898 = vpop.f32.mrf.mxu0
      %v2899 = vpop.f32.mrf.mxu0
      %v2900 = vadd.f32 0.0, %v2899
      %v2901 = vpop.f32.mrf.mxu0
      %2902 = vmatprep.mubr.bf16.mxu0 0
      %2903 = vmatmul.mubr.bf16.gmra.mxu0 %v2755
      %v2904 = vpop.f32.mrf.mxu0
      %v2905 = vadd.f32 0.0, %v2904
      %v2906 = vpop.f32.mrf.mxu0
      %v2907 = vpop.f32.mrf.mxu0
      %v2908 = vadd.f32 0.0, %v2907
      %v2909 = vpop.f32.mrf.mxu0
      %2910 = vmatprep.mubr.bf16.mxu0 0
      %2911 = vmatmul.mubr.bf16.gmra.mxu0 %v2756
      %v2912 = vpop.f32.mrf.mxu0
      %v2913 = vadd.f32 0.0, %v2912
      %v2914 = vpop.f32.mrf.mxu0
      %v2915 = vpop.f32.mrf.mxu0
      %v2916 = vadd.f32 0.0, %v2915
      %v2917 = vpop.f32.mrf.mxu0
      %2918 = vmatprep.mubr.bf16.mxu0 0
      %2919 = vmatmul.mubr.bf16.gmra.mxu0 %v2757
      %v2920 = vpop.f32.mrf.mxu0
      %v2921 = vadd.f32 0.0, %v2920
      %v2922 = vpop.f32.mrf.mxu0
      %v2923 = vpop.f32.mrf.mxu0
      %v2924 = vadd.f32 0.0, %v2923
      %v2925 = vpop.f32.mrf.mxu0
      %2926 = vmatprep.mubr.bf16.mxu0 0
      %2927 = vmatmul.mubr.bf16.gmra.mxu0 %v2758
      %v2928 = vpop.f32.mrf.mxu0
      %v2929 = vadd.f32 0.0, %v2928
      %v2930 = vpop.f32.mrf.mxu0
      %v2931 = vpop.f32.mrf.mxu0
      %v2932 = vadd.f32 0.0, %v2931
      %v2933 = vpop.f32.mrf.mxu0
      %2934 = vmatprep.mubr.bf16.mxu0 0
      %2935 = vmatmul.mubr.bf16.gmra.mxu0 %v2759
      %v2936 = vpop.f32.mrf.mxu0
      %v2937 = vadd.f32 0.0, %v2936
      %v2938 = vpop.f32.mrf.mxu0
      %v2939 = vpop.f32.mrf.mxu0
      %v2940 = vadd.f32 0.0, %v2939
      %v2941 = vpop.f32.mrf.mxu0
      %2942 = vmatprep.mubr.bf16.mxu0 0
      %2943 = vmatmul.mubr.bf16.gmra.mxu0 %v2760
      %v2944 = vpop.f32.mrf.mxu0
      %v2945 = vadd.f32 0.0, %v2944
      %v2946 = vpop.f32.mrf.mxu0
      %v2947 = vpop.f32.mrf.mxu0
      %v2948 = vadd.f32 0.0, %v2947
      %v2949 = vpop.f32.mrf.mxu0
      %2950 = vmatprep.mubr.bf16.mxu0 0
      %2951 = vmatmul.mubr.bf16.gmra.mxu0 %v2761
      %v2952 = vpop.f32.mrf.mxu0
      %v2953 = vadd.f32 0.0, %v2952
      %v2954 = vpop.f32.mrf.mxu0
      %v2955 = vpop.f32.mrf.mxu0
      %v2956 = vadd.f32 0.0, %v2955
      %v2957 = vpop.f32.mrf.mxu0
      %2958 = vmatprep.mubr.bf16.mxu0 0
      %2959 = vmatmul.mubr.bf16.gmra.mxu0 %v2762
      %v2960 = vpop.f32.mrf.mxu0
      %v2961 = vadd.f32 0.0, %v2960
      %v2962 = vpop.f32.mrf.mxu0
      %v2963 = vpop.f32.mrf.mxu0
      %v2964 = vadd.f32 0.0, %v2963
      %v2965 = vpop.f32.mrf.mxu0
      %2966 = vmatprep.mubr.bf16.mxu0 0
      %2967 = vmatmul.mubr.bf16.gmra.mxu0 %v2763
      %v2968 = vpop.f32.mrf.mxu0
      %v2969 = vadd.f32 0.0, %v2968
      %v2970 = vpop.f32.mrf.mxu0
      %v2971 = vpop.f32.mrf.mxu0
      %v2972 = vadd.f32 0.0, %v2971
      %v2973 = vpop.f32.mrf.mxu0
      %2974 = vmatprep.mubr.bf16.mxu0 0
      %2975 = vmatmul.mubr.bf16.gmra.mxu0 %v2764
      %v2976 = vpop.f32.mrf.mxu0
      %v2977 = vadd.f32 0.0, %v2976
      %v2978 = vpop.f32.mrf.mxu0
      %v2979 = vpop.f32.mrf.mxu0
      %v2980 = vadd.f32 0.0, %v2979
      %v2981 = vpop.f32.mrf.mxu0
      %2982 = vmatprep.mubr.bf16.mxu0 0
      %2983 = vmatmul.mubr.bf16.gmra.mxu0 %v2765
      %v2984 = vpop.f32.mrf.mxu0
      %v2985 = vadd.f32 0.0, %v2984
      %v2986 = vpop.f32.mrf.mxu0
      %v2987 = vpop.f32.mrf.mxu0
      %v2988 = vadd.f32 0.0, %v2987
      %v2989 = vpop.f32.mrf.mxu0
      %2990 = vdwg.mxu0
      %v2991 = vadd.f32 %v2490, %v2865
      %v2992 = vadd.f32 %v2491, %v2868
      %v2993 = vadd.f32 %v2492, %v2873
      %v2994 = vadd.f32 %v2493, %v2876
      %v2995 = vadd.f32 %v2494, %v2881
      %v2996 = vadd.f32 %v2495, %v2884
      %v2997 = vadd.f32 %v2496, %v2889
      %v2998 = vadd.f32 %v2497, %v2892
      %v2999 = vadd.f32 %v2498, %v2897
      %v3000 = vadd.f32 %v2499, %v2900
      %v3001 = vadd.f32 %v2500, %v2905
      %v3002 = vadd.f32 %v2501, %v2908
      %v3003 = vadd.f32 %v2502, %v2913
      %v3004 = vadd.f32 %v2503, %v2916
      %v3005 = vadd.f32 %v2504, %v2921
      %v3006 = vadd.f32 %v2505, %v2924
      %v3007 = vadd.f32 %v2506, %v2929
      %v3008 = vadd.f32 %v2507, %v2932
      %v3009 = vadd.f32 %v2508, %v2937
      %v3010 = vadd.f32 %v2509, %v2940
      %v3011 = vadd.f32 %v2510, %v2945
      %v3012 = vadd.f32 %v2511, %v2948
      %v3013 = vadd.f32 %v2512, %v2953
      %v3014 = vadd.f32 %v2513, %v2956
      %v3015 = vadd.f32 %v2514, %v2961
      %v3016 = vadd.f32 %v2515, %v2964
      %v3017 = vadd.f32 %v2516, %v2969
      %v3018 = vadd.f32 %v2517, %v2972
      %v3019 = vadd.f32 %v2518, %v2977
      %v3020 = vadd.f32 %v2519, %v2980
      %v3021 = vadd.f32 %v2520, %v2985
      %v3022 = vadd.f32 %v2521, %v2988
      %v3023 = vld [vmem:[%s1146] sm:$0xf]
      %v3024 = vld [vmem:[%s1146 + $0x4] sm:$0xf]
      %v3025 = vld [vmem:[%s1146 + $0xc] sm:$0xf]
      %v3026 = vld [vmem:[%s1146 + $0x10] sm:$0xf]
      %v3027 = vld [vmem:[%s1146 + $0x18] sm:$0xf]
      %v3028 = vld [vmem:[%s1146 + $0x1c] sm:$0xf]
      %v3029 = vld [vmem:[%s1146 + $0x24] sm:$0xf]
      %v3030 = vld [vmem:[%s1146 + $0x28] sm:$0xf]
      %v3031 = vld [vmem:[%s1146 + $0x30] sm:$0xf]
      %v3032 = vld [vmem:[%s1146 + $0x34] sm:$0xf]
      %v3033 = vld [vmem:[%s1146 + $0x3c] sm:$0xf]
      %v3034 = vld [vmem:[%s1146 + $0x40] sm:$0xf]
      %v3035 = vld [vmem:[%s1146 + $0x48] sm:$0xf]
      %v3036 = vld [vmem:[%s1146 + $0x4c] sm:$0xf]
      %v3037 = vld [vmem:[%s1146 + $0x54] sm:$0xf]
      %v3038 = vld [vmem:[%s1146 + $0x58] sm:$0xf]
      %v3039 = vld [vmem:[%s1146 + $0x60] sm:$0xf]
      %v3040 = vld [vmem:[%s1146 + $0x64] sm:$0xf]
      %v3041 = vld [vmem:[%s1146 + $0x6c] sm:$0xf]
      %v3042 = vld [vmem:[%s1146 + $0x70] sm:$0xf]
      %v3043 = vld [vmem:[%s1146 + $0x78] sm:$0xf]
      %v3044 = vld [vmem:[%s1146 + $0x7c] sm:$0xf]
      %v3045 = vld [vmem:[%s1146 + $0x84] sm:$0xf]
      %v3046 = vld [vmem:[%s1146 + $0x88] sm:$0xf]
      %v3047 = vld [vmem:[%s1146 + $0x90] sm:$0xf]
      %v3048 = vld [vmem:[%s1146 + $0x94] sm:$0xf]
      %v3049 = vld [vmem:[%s1146 + $0x9c] sm:$0xf]
      %v3050 = vld [vmem:[%s1146 + $0xa0] sm:$0xf]
      %v3051 = vld [vmem:[%s1146 + $0xa8] sm:$0xf]
      %v3052 = vld [vmem:[%s1146 + $0xac] sm:$0xf]
      %v3053 = vld [vmem:[%s1146 + $0xb4] sm:$0xf]
      %v3054 = vld [vmem:[%s1146 + $0xb8] sm:$0xf]
      %s3055 = scalar_lea.vmem %s3, 192
      %v3056 = vld [vmem:[%s3055] sm:$0xf]
      %v3057 = vld [vmem:[%s3055 + $0x4] sm:$0xf]
      %v3058 = vld [vmem:[%s3055 + $0x8] sm:$0xf]
      %v3059 = vld [vmem:[%s3055 + $0xc] sm:$0xf]
      %v3060 = vld [vmem:[%s3055 + $0x10] sm:$0xf]
      %v3061 = vld [vmem:[%s3055 + $0x14] sm:$0xf]
      %v3062 = vld [vmem:[%s3055 + $0x18] sm:$0xf]
      %v3063 = vld [vmem:[%s3055 + $0x1c] sm:$0xf]
      %v3064 = vld [vmem:[%s3055 + $0x20] sm:$0xf]
      %v3065 = vld [vmem:[%s3055 + $0x24] sm:$0xf]
      %v3066 = vld [vmem:[%s3055 + $0x28] sm:$0xf]
      %v3067 = vld [vmem:[%s3055 + $0x2c] sm:$0xf]
      %v3068 = vld [vmem:[%s3055 + $0x30] sm:$0xf]
      %v3069 = vld [vmem:[%s3055 + $0x34] sm:$0xf]
      %v3070 = vld [vmem:[%s3055 + $0x38] sm:$0xf]
      %v3071 = vld [vmem:[%s3055 + $0x3c] sm:$0xf]
      %v3104 = vunpack.c.l.b16 %v3023
      %v3105 = vunpack.c.l.b16 %v3024
      %v3106 = vunpack.c.l.b16 %v3025
      %v3107 = vunpack.c.l.b16 %v3026
      %v3108 = vunpack.c.l.b16 %v3027
      %v3109 = vunpack.c.l.b16 %v3028
      %v3110 = vunpack.c.l.b16 %v3029
      %v3111 = vunpack.c.l.b16 %v3030
      %v3112 = vunpack.c.l.b16 %v3031
      %v3113 = vunpack.c.l.b16 %v3032
      %v3114 = vunpack.c.l.b16 %v3033
      %v3115 = vunpack.c.l.b16 %v3034
      %v3116 = vunpack.c.l.b16 %v3035
      %v3117 = vunpack.c.l.b16 %v3036
      %v3118 = vunpack.c.l.b16 %v3037
      %v3119 = vunpack.c.l.b16 %v3038
      %v3120 = vunpack.c.l.b16 %v3039
      %v3121 = vunpack.c.l.b16 %v3040
      %v3122 = vunpack.c.l.b16 %v3041
      %v3123 = vunpack.c.l.b16 %v3042
      %v3124 = vunpack.c.l.b16 %v3043
      %v3125 = vunpack.c.l.b16 %v3044
      %v3126 = vunpack.c.l.b16 %v3045
      %v3127 = vunpack.c.l.b16 %v3046
      %v3128 = vunpack.c.l.b16 %v3047
      %v3129 = vunpack.c.l.b16 %v3048
      %v3130 = vunpack.c.l.b16 %v3049
      %v3131 = vunpack.c.l.b16 %v3050
      %v3132 = vunpack.c.l.b16 %v3051
      %v3133 = vunpack.c.l.b16 %v3052
      %v3134 = vunpack.c.l.b16 %v3053
      %v3135 = vunpack.c.l.b16 %v3054
      %v3136 = vpack.c.b16 %v3105, %v3104
      %v3137 = vpack.c.b16 %v3107, %v3106
      %v3138 = vpack.c.b16 %v3109, %v3108
      %v3139 = vpack.c.b16 %v3111, %v3110
      %v3140 = vpack.c.b16 %v3113, %v3112
      %v3141 = vpack.c.b16 %v3115, %v3114
      %v3142 = vpack.c.b16 %v3117, %v3116
      %v3143 = vpack.c.b16 %v3119, %v3118
      %v3144 = vpack.c.b16 %v3121, %v3120
      %v3145 = vpack.c.b16 %v3123, %v3122
      %v3146 = vpack.c.b16 %v3125, %v3124
      %v3147 = vpack.c.b16 %v3127, %v3126
      %v3148 = vpack.c.b16 %v3129, %v3128
      %v3149 = vpack.c.b16 %v3131, %v3130
      %v3150 = vpack.c.b16 %v3133, %v3132
      %v3151 = vpack.c.b16 %v3135, %v3134
      %v3184 = vunpack.c.l.b16 %v3056
      %v3185 = vunpack.c.l.b16 %v3057
      %v3186 = vunpack.c.l.b16 %v3058
      %v3187 = vunpack.c.l.b16 %v3059
      %v3188 = vunpack.c.l.b16 %v3060
      %v3189 = vunpack.c.l.b16 %v3061
      %v3190 = vunpack.c.l.b16 %v3062
      %v3191 = vunpack.c.l.b16 %v3063
      %v3192 = vunpack.c.l.b16 %v3064
      %v3193 = vunpack.c.l.b16 %v3065
      %v3194 = vunpack.c.l.b16 %v3066
      %v3195 = vunpack.c.l.b16 %v3067
      %v3196 = vunpack.c.l.b16 %v3068
      %v3197 = vunpack.c.l.b16 %v3069
      %v3198 = vunpack.c.l.b16 %v3070
      %v3199 = vunpack.c.l.b16 %v3071
      %v3200 = vpack.c.b16 %v3185, %v3184
      %v3201 = vpack.c.b16 %v3187, %v3186
      %v3202 = vpack.c.b16 %v3189, %v3188
      %v3203 = vpack.c.b16 %v3191, %v3190
      %v3204 = vpack.c.b16 %v3193, %v3192
      %v3205 = vpack.c.b16 %v3195, %v3194
      %v3206 = vpack.c.b16 %v3197, %v3196
      %v3207 = vpack.c.b16 %v3199, %v3198
      %3216 = vmatprep.subr.bf16.mxu0 0
      %3217 = vmatpush1.bf16.msra.mxu0 %v3207
      %3218 = vmatprep.subr.bf16.mxu0 0
      %3219 = vmatpush1.bf16.msra.mxu0 %v3206
      %3220 = vmatprep.subr.bf16.mxu0 0
      %3221 = vmatpush1.bf16.msra.mxu0 %v3205
      %3222 = vmatprep.subr.bf16.mxu0 0
      %3223 = vmatpush1.bf16.msra.mxu0 %v3204
      %3224 = vmatprep.subr.bf16.mxu0 0
      %3225 = vmatpush1.bf16.msra.mxu0 %v3203
      %3226 = vmatprep.subr.bf16.mxu0 0
      %3227 = vmatpush1.bf16.msra.mxu0 %v3202
      %3228 = vmatprep.subr.bf16.mxu0 0
      %3229 = vmatpush1.bf16.msra.mxu0 %v3201
      %3230 = vmatprep.subr.bf16.mxu0 0
      %3231 = vmatpush1.bf16.msra.mxu0 %v3200
      %3232 = vmatprep.subr.bf16.mxu0 0
      %3233 = vmatpush2.bf16.msra.mxu0 0
      %3234 = vmatprep.subr.bf16.mxu0 0
      %3235 = vmatpush2.bf16.msra.mxu0 0
      %3236 = vmatprep.subr.bf16.mxu0 0
      %3237 = vmatpush2.bf16.msra.mxu0 0
      %3238 = vmatprep.subr.bf16.mxu0 0
      %3239 = vmatpush2.bf16.msra.mxu0 0
      %3240 = vmatprep.subr.bf16.mxu0 0
      %3241 = vmatpush2.bf16.msra.mxu0 0
      %3242 = vmatprep.subr.bf16.mxu0 0
      %3243 = vmatpush2.bf16.msra.mxu0 0
      %3244 = vmatprep.subr.bf16.mxu0 0
      %3245 = vmatpush2.bf16.msra.mxu0 0
      %3246 = vmatprep.subr.bf16.mxu0 0
      %3247 = vmatpush2.bf16.msra.mxu0 0
      %3248 = vmatprep.mubr.bf16.mxu0 0
      %3249 = vmatmul.mubr.bf16.gmra.mxu0 %v3136
      %v3250 = vpop.f32.mrf.mxu0
      %v3251 = vadd.f32 0.0, %v3250
      %v3252 = vpop.f32.mrf.mxu0
      %v3253 = vpop.f32.mrf.mxu0
      %v3254 = vadd.f32 0.0, %v3253
      %v3255 = vpop.f32.mrf.mxu0
      %3256 = vmatprep.mubr.bf16.mxu0 0
      %3257 = vmatmul.mubr.bf16.gmra.mxu0 %v3137
      %v3258 = vpop.f32.mrf.mxu0
      %v3259 = vadd.f32 0.0, %v3258
      %v3260 = vpop.f32.mrf.mxu0
      %v3261 = vpop.f32.mrf.mxu0
      %v3262 = vadd.f32 0.0, %v3261
      %v3263 = vpop.f32.mrf.mxu0
      %3264 = vmatprep.mubr.bf16.mxu0 0
      %3265 = vmatmul.mubr.bf16.gmra.mxu0 %v3138
      %v3266 = vpop.f32.mrf.mxu0
      %v3267 = vadd.f32 0.0, %v3266
      %v3268 = vpop.f32.mrf.mxu0
      %v3269 = vpop.f32.mrf.mxu0
      %v3270 = vadd.f32 0.0, %v3269
      %v3271 = vpop.f32.mrf.mxu0
      %3272 = vmatprep.mubr.bf16.mxu0 0
      %3273 = vmatmul.mubr.bf16.gmra.mxu0 %v3139
      %v3274 = vpop.f32.mrf.mxu0
      %v3275 = vadd.f32 0.0, %v3274
      %v3276 = vpop.f32.mrf.mxu0
      %v3277 = vpop.f32.mrf.mxu0
      %v3278 = vadd.f32 0.0, %v3277
      %v3279 = vpop.f32.mrf.mxu0
      %3280 = vmatprep.mubr.bf16.mxu0 0
      %3281 = vmatmul.mubr.bf16.gmra.mxu0 %v3140
      %v3282 = vpop.f32.mrf.mxu0
      %v3283 = vadd.f32 0.0, %v3282
      %v3284 = vpop.f32.mrf.mxu0
      %v3285 = vpop.f32.mrf.mxu0
      %v3286 = vadd.f32 0.0, %v3285
      %v3287 = vpop.f32.mrf.mxu0
      %3288 = vmatprep.mubr.bf16.mxu0 0
      %3289 = vmatmul.mubr.bf16.gmra.mxu0 %v3141
      %v3290 = vpop.f32.mrf.mxu0
      %v3291 = vadd.f32 0.0, %v3290
      %v3292 = vpop.f32.mrf.mxu0
      %v3293 = vpop.f32.mrf.mxu0
      %v3294 = vadd.f32 0.0, %v3293
      %v3295 = vpop.f32.mrf.mxu0
      %3296 = vmatprep.mubr.bf16.mxu0 0
      %3297 = vmatmul.mubr.bf16.gmra.mxu0 %v3142
      %v3298 = vpop.f32.mrf.mxu0
      %v3299 = vadd.f32 0.0, %v3298
      %v3300 = vpop.f32.mrf.mxu0
      %v3301 = vpop.f32.mrf.mxu0
      %v3302 = vadd.f32 0.0, %v3301
      %v3303 = vpop.f32.mrf.mxu0
      %3304 = vmatprep.mubr.bf16.mxu0 0
      %3305 = vmatmul.mubr.bf16.gmra.mxu0 %v3143
      %v3306 = vpop.f32.mrf.mxu0
      %v3307 = vadd.f32 0.0, %v3306
      %v3308 = vpop.f32.mrf.mxu0
      %v3309 = vpop.f32.mrf.mxu0
      %v3310 = vadd.f32 0.0, %v3309
      %v3311 = vpop.f32.mrf.mxu0
      %3312 = vmatprep.mubr.bf16.mxu0 0
      %3313 = vmatmul.mubr.bf16.gmra.mxu0 %v3144
      %v3314 = vpop.f32.mrf.mxu0
      %v3315 = vadd.f32 0.0, %v3314
      %v3316 = vpop.f32.mrf.mxu0
      %v3317 = vpop.f32.mrf.mxu0
      %v3318 = vadd.f32 0.0, %v3317
      %v3319 = vpop.f32.mrf.mxu0
      %3320 = vmatprep.mubr.bf16.mxu0 0
      %3321 = vmatmul.mubr.bf16.gmra.mxu0 %v3145
      %v3322 = vpop.f32.mrf.mxu0
      %v3323 = vadd.f32 0.0, %v3322
      %v3324 = vpop.f32.mrf.mxu0
      %v3325 = vpop.f32.mrf.mxu0
      %v3326 = vadd.f32 0.0, %v3325
      %v3327 = vpop.f32.mrf.mxu0
      %3328 = vmatprep.mubr.bf16.mxu0 0
      %3329 = vmatmul.mubr.bf16.gmra.mxu0 %v3146
      %v3330 = vpop.f32.mrf.mxu0
      %v3331 = vadd.f32 0.0, %v3330
      %v3332 = vpop.f32.mrf.mxu0
      %v3333 = vpop.f32.mrf.mxu0
      %v3334 = vadd.f32 0.0, %v3333
      %v3335 = vpop.f32.mrf.mxu0
      %3336 = vmatprep.mubr.bf16.mxu0 0
      %3337 = vmatmul.mubr.bf16.gmra.mxu0 %v3147
      %v3338 = vpop.f32.mrf.mxu0
      %v3339 = vadd.f32 0.0, %v3338
      %v3340 = vpop.f32.mrf.mxu0
      %v3341 = vpop.f32.mrf.mxu0
      %v3342 = vadd.f32 0.0, %v3341
      %v3343 = vpop.f32.mrf.mxu0
      %3344 = vmatprep.mubr.bf16.mxu0 0
      %3345 = vmatmul.mubr.bf16.gmra.mxu0 %v3148
      %v3346 = vpop.f32.mrf.mxu0
      %v3347 = vadd.f32 0.0, %v3346
      %v3348 = vpop.f32.mrf.mxu0
      %v3349 = vpop.f32.mrf.mxu0
      %v3350 = vadd.f32 0.0, %v3349
      %v3351 = vpop.f32.mrf.mxu0
      %3352 = vmatprep.mubr.bf16.mxu0 0
      %3353 = vmatmul.mubr.bf16.gmra.mxu0 %v3149
      %v3354 = vpop.f32.mrf.mxu0
      %v3355 = vadd.f32 0.0, %v3354
      %v3356 = vpop.f32.mrf.mxu0
      %v3357 = vpop.f32.mrf.mxu0
      %v3358 = vadd.f32 0.0, %v3357
      %v3359 = vpop.f32.mrf.mxu0
      %3360 = vmatprep.mubr.bf16.mxu0 0
      %3361 = vmatmul.mubr.bf16.gmra.mxu0 %v3150
      %v3362 = vpop.f32.mrf.mxu0
      %v3363 = vadd.f32 0.0, %v3362
      %v3364 = vpop.f32.mrf.mxu0
      %v3365 = vpop.f32.mrf.mxu0
      %v3366 = vadd.f32 0.0, %v3365
      %v3367 = vpop.f32.mrf.mxu0
      %3368 = vmatprep.mubr.bf16.mxu0 0
      %3369 = vmatmul.mubr.bf16.gmra.mxu0 %v3151
      %v3370 = vpop.f32.mrf.mxu0
      %v3371 = vadd.f32 0.0, %v3370
      %v3372 = vpop.f32.mrf.mxu0
      %v3373 = vpop.f32.mrf.mxu0
      %v3374 = vadd.f32 0.0, %v3373
      %v3375 = vpop.f32.mrf.mxu0
      %3376 = vdwg.mxu0
      %v3377 = vadd.f32 %v2991, %v3251
      %v3378 = vadd.f32 %v2992, %v3254
      %v3379 = vadd.f32 %v2993, %v3259
      %v3380 = vadd.f32 %v2994, %v3262
      %v3381 = vadd.f32 %v2995, %v3267
      %v3382 = vadd.f32 %v2996, %v3270
      %v3383 = vadd.f32 %v2997, %v3275
      %v3384 = vadd.f32 %v2998, %v3278
      %v3385 = vadd.f32 %v2999, %v3283
      %v3386 = vadd.f32 %v3000, %v3286
      %v3387 = vadd.f32 %v3001, %v3291
      %v3388 = vadd.f32 %v3002, %v3294
      %v3389 = vadd.f32 %v3003, %v3299
      %v3390 = vadd.f32 %v3004, %v3302
      %v3391 = vadd.f32 %v3005, %v3307
      %v3392 = vadd.f32 %v3006, %v3310
      %v3393 = vadd.f32 %v3007, %v3315
      %v3394 = vadd.f32 %v3008, %v3318
      %v3395 = vadd.f32 %v3009, %v3323
      %v3396 = vadd.f32 %v3010, %v3326
      %v3397 = vadd.f32 %v3011, %v3331
      %v3398 = vadd.f32 %v3012, %v3334
      %v3399 = vadd.f32 %v3013, %v3339
      %v3400 = vadd.f32 %v3014, %v3342
      %v3401 = vadd.f32 %v3015, %v3347
      %v3402 = vadd.f32 %v3016, %v3350
      %v3403 = vadd.f32 %v3017, %v3355
      %v3404 = vadd.f32 %v3018, %v3358
      %v3405 = vadd.f32 %v3019, %v3363
      %v3406 = vadd.f32 %v3020, %v3366
      %v3407 = vadd.f32 %v3021, %v3371
      %v3408 = vadd.f32 %v3022, %v3374
      %v3409 = vld [vmem:[%s1146] sm:$0xf]
      %v3410 = vld [vmem:[%s1146 + $0x4] sm:$0xf]
      %v3411 = vld [vmem:[%s1146 + $0x8] sm:$0x1]
      %v3412 = vld [vmem:[%s1146 + $0xc] sm:$0xf]
      %v3413 = vld [vmem:[%s1146 + $0x10] sm:$0xf]
      %v3414 = vld [vmem:[%s1146 + $0x14] sm:$0x1]
      %v3415 = vld [vmem:[%s1146 + $0x18] sm:$0xf]
      %v3416 = vld [vmem:[%s1146 + $0x1c] sm:$0xf]
      %v3417 = vld [vmem:[%s1146 + $0x20] sm:$0x1]
      %v3418 = vld [vmem:[%s1146 + $0x24] sm:$0xf]
      %v3419 = vld [vmem:[%s1146 + $0x28] sm:$0xf]
      %v3420 = vld [vmem:[%s1146 + $0x2c] sm:$0x1]
      %v3421 = vld [vmem:[%s1146 + $0x30] sm:$0xf]
      %v3422 = vld [vmem:[%s1146 + $0x34] sm:$0xf]
      %v3423 = vld [vmem:[%s1146 + $0x38] sm:$0x1]
      %v3424 = vld [vmem:[%s1146 + $0x3c] sm:$0xf]
      %v3425 = vld [vmem:[%s1146 + $0x40] sm:$0xf]
      %v3426 = vld [vmem:[%s1146 + $0x44] sm:$0x1]
      %v3427 = vld [vmem:[%s1146 + $0x48] sm:$0xf]
      %v3428 = vld [vmem:[%s1146 + $0x4c] sm:$0xf]
      %v3429 = vld [vmem:[%s1146 + $0x50] sm:$0x1]
      %v3430 = vld [vmem:[%s1146 + $0x54] sm:$0xf]
      %v3431 = vld [vmem:[%s1146 + $0x58] sm:$0xf]
      %v3432 = vld [vmem:[%s1146 + $0x5c] sm:$0x1]
      %v3433 = vld [vmem:[%s1146 + $0x60] sm:$0xf]
      %v3434 = vld [vmem:[%s1146 + $0x64] sm:$0xf]
      %v3435 = vld [vmem:[%s1146 + $0x68] sm:$0x1]
      %v3436 = vld [vmem:[%s1146 + $0x6c] sm:$0xf]
      %v3437 = vld [vmem:[%s1146 + $0x70] sm:$0xf]
      %v3438 = vld [vmem:[%s1146 + $0x74] sm:$0x1]
      %v3439 = vld [vmem:[%s1146 + $0x78] sm:$0xf]
      %v3440 = vld [vmem:[%s1146 + $0x7c] sm:$0xf]
      %v3441 = vld [vmem:[%s1146 + $0x80] sm:$0x1]
      %v3442 = vld [vmem:[%s1146 + $0x84] sm:$0xf]
      %v3443 = vld [vmem:[%s1146 + $0x88] sm:$0xf]
      %v3444 = vld [vmem:[%s1146 + $0x8c] sm:$0x1]
      %v3445 = vld [vmem:[%s1146 + $0x90] sm:$0xf]
      %v3446 = vld [vmem:[%s1146 + $0x94] sm:$0xf]
      %v3447 = vld [vmem:[%s1146 + $0x98] sm:$0x1]
      %v3448 = vld [vmem:[%s1146 + $0x9c] sm:$0xf]
      %v3449 = vld [vmem:[%s1146 + $0xa0] sm:$0xf]
      %v3450 = vld [vmem:[%s1146 + $0xa4] sm:$0x1]
      %v3451 = vld [vmem:[%s1146 + $0xa8] sm:$0xf]
      %v3452 = vld [vmem:[%s1146 + $0xac] sm:$0xf]
      %v3453 = vld [vmem:[%s1146 + $0xb0] sm:$0x1]
      %v3454 = vld [vmem:[%s1146 + $0xb4] sm:$0xf]
      %v3455 = vld [vmem:[%s1146 + $0xb8] sm:$0xf]
      %v3456 = vld [vmem:[%s1146 + $0xbc] sm:$0x1]
      %v3458 = vshrl.u32 %v3409, 16
      %v3460 = vrot.slane %v3458, 4
      %v3461 = vshll.u32 %v3409, 16
      %v3463 = vrot.slane %v3461, 5
      %v3464 = vor.u32 %v3460, %v3463
      %v3465 = vrot.slane %v3464, 4
      %v3467 = vshll.u32 %v3410, 16
      %v3469 = vrot.slane %v3467, 5
      %v3470 = vsel %vm1815, %v3465, %v3469
      %v3471 = vshrl.u32 %v3410, 16
      %v3473 = vrot.slane %v3471, 4
      %v3474 = vor.u32 %v3473, %v3469
      %v3475 = vrot.slane %v3474, 4
      %v3477 = vshll.u32 %v3411, 16
      %v3479 = vrot.slane %v3477, 5
      %v3480 = vsel %vm1815, %v3475, %v3479
      %v3482 = vshrl.u32 %v3412, 16
      %v3484 = vrot.slane %v3482, 4
      %v3485 = vshll.u32 %v3412, 16
      %v3487 = vrot.slane %v3485, 5
      %v3488 = vor.u32 %v3484, %v3487
      %v3489 = vrot.slane %v3488, 4
      %v3491 = vshll.u32 %v3413, 16
      %v3493 = vrot.slane %v3491, 5
      %v3494 = vsel %vm1815, %v3489, %v3493
      %v3495 = vshrl.u32 %v3413, 16
      %v3497 = vrot.slane %v3495, 4
      %v3498 = vor.u32 %v3497, %v3493
      %v3499 = vrot.slane %v3498, 4
      %v3501 = vshll.u32 %v3414, 16
      %v3503 = vrot.slane %v3501, 5
      %v3504 = vsel %vm1815, %v3499, %v3503
      %v3506 = vshrl.u32 %v3415, 16
      %v3508 = vrot.slane %v3506, 4
      %v3509 = vshll.u32 %v3415, 16
      %v3511 = vrot.slane %v3509, 5
      %v3512 = vor.u32 %v3508, %v3511
      %v3513 = vrot.slane %v3512, 4
      %v3515 = vshll.u32 %v3416, 16
      %v3517 = vrot.slane %v3515, 5
      %v3518 = vsel %vm1815, %v3513, %v3517
      %v3519 = vshrl.u32 %v3416, 16
      %v3521 = vrot.slane %v3519, 4
      %v3522 = vor.u32 %v3521, %v3517
      %v3523 = vrot.slane %v3522, 4
      %v3525 = vshll.u32 %v3417, 16
      %v3527 = vrot.slane %v3525, 5
      %v3528 = vsel %vm1815, %v3523, %v3527
      %v3530 = vshrl.u32 %v3418, 16
      %v3532 = vrot.slane %v3530, 4
      %v3533 = vshll.u32 %v3418, 16
      %v3535 = vrot.slane %v3533, 5
      %v3536 = vor.u32 %v3532, %v3535
      %v3537 = vrot.slane %v3536, 4
      %v3539 = vshll.u32 %v3419, 16
      %v3541 = vrot.slane %v3539, 5
      %v3542 = vsel %vm1815, %v3537, %v3541
      %v3543 = vshrl.u32 %v3419, 16
      %v3545 = vrot.slane %v3543, 4
      %v3546 = vor.u32 %v3545, %v3541
      %v3547 = vrot.slane %v3546, 4
      %v3549 = vshll.u32 %v3420, 16
      %v3551 = vrot.slane %v3549, 5
      %v3552 = vsel %vm1815, %v3547, %v3551
      %v3554 = vshrl.u32 %v3421, 16
      %v3556 = vrot.slane %v3554, 4
      %v3557 = vshll.u32 %v3421, 16
      %v3559 = vrot.slane %v3557, 5
      %v3560 = vor.u32 %v3556, %v3559
      %v3561 = vrot.slane %v3560, 4
      %v3563 = vshll.u32 %v3422, 16
      %v3565 = vrot.slane %v3563, 5
      %v3566 = vsel %vm1815, %v3561, %v3565
      %v3567 = vshrl.u32 %v3422, 16
      %v3569 = vrot.slane %v3567, 4
      %v3570 = vor.u32 %v3569, %v3565
      %v3571 = vrot.slane %v3570, 4
      %v3573 = vshll.u32 %v3423, 16
      %v3575 = vrot.slane %v3573, 5
      %v3576 = vsel %vm1815, %v3571, %v3575
      %v3578 = vshrl.u32 %v3424, 16
      %v3580 = vrot.slane %v3578, 4
      %v3581 = vshll.u32 %v3424, 16
      %v3583 = vrot.slane %v3581, 5
      %v3584 = vor.u32 %v3580, %v3583
      %v3585 = vrot.slane %v3584, 4
      %v3587 = vshll.u32 %v3425, 16
      %v3589 = vrot.slane %v3587, 5
      %v3590 = vsel %vm1815, %v3585, %v3589
      %v3591 = vshrl.u32 %v3425, 16
      %v3593 = vrot.slane %v3591, 4
      %v3594 = vor.u32 %v3593, %v3589
      %v3595 = vrot.slane %v3594, 4
      %v3597 = vshll.u32 %v3426, 16
      %v3599 = vrot.slane %v3597, 5
      %v3600 = vsel %vm1815, %v3595, %v3599
      %v3602 = vshrl.u32 %v3427, 16
      %v3604 = vrot.slane %v3602, 4
      %v3605 = vshll.u32 %v3427, 16
      %v3607 = vrot.slane %v3605, 5
      %v3608 = vor.u32 %v3604, %v3607
      %v3609 = vrot.slane %v3608, 4
      %v3611 = vshll.u32 %v3428, 16
      %v3613 = vrot.slane %v3611, 5
      %v3614 = vsel %vm1815, %v3609, %v3613
      %v3615 = vshrl.u32 %v3428, 16
      %v3617 = vrot.slane %v3615, 4
      %v3618 = vor.u32 %v3617, %v3613
      %v3619 = vrot.slane %v3618, 4
      %v3621 = vshll.u32 %v3429, 16
      %v3623 = vrot.slane %v3621, 5
      %v3624 = vsel %vm1815, %v3619, %v3623
      %v3626 = vshrl.u32 %v3430, 16
      %v3628 = vrot.slane %v3626, 4
      %v3629 = vshll.u32 %v3430, 16
      %v3631 = vrot.slane %v3629, 5
      %v3632 = vor.u32 %v3628, %v3631
      %v3633 = vrot.slane %v3632, 4
      %v3635 = vshll.u32 %v3431, 16
      %v3637 = vrot.slane %v3635, 5
      %v3638 = vsel %vm1815, %v3633, %v3637
      %v3639 = vshrl.u32 %v3431, 16
      %v3641 = vrot.slane %v3639, 4
      %v3642 = vor.u32 %v3641, %v3637
      %v3643 = vrot.slane %v3642, 4
      %v3645 = vshll.u32 %v3432, 16
      %v3647 = vrot.slane %v3645, 5
      %v3648 = vsel %vm1815, %v3643, %v3647
      %v3650 = vshrl.u32 %v3433, 16
      %v3652 = vrot.slane %v3650, 4
      %v3653 = vshll.u32 %v3433, 16
      %v3655 = vrot.slane %v3653, 5
      %v3656 = vor.u32 %v3652, %v3655
      %v3657 = vrot.slane %v3656, 4
      %v3659 = vshll.u32 %v3434, 16
      %v3661 = vrot.slane %v3659, 5
      %v3662 = vsel %vm1815, %v3657, %v3661
      %v3663 = vshrl.u32 %v3434, 16
      %v3665 = vrot.slane %v3663, 4
      %v3666 = vor.u32 %v3665, %v3661
      %v3667 = vrot.slane %v3666, 4
      %v3669 = vshll.u32 %v3435, 16
      %v3671 = vrot.slane %v3669, 5
      %v3672 = vsel %vm1815, %v3667, %v3671
      %v3674 = vshrl.u32 %v3436, 16
      %v3676 = vrot.slane %v3674, 4
      %v3677 = vshll.u32 %v3436, 16
      %v3679 = vrot.slane %v3677, 5
      %v3680 = vor.u32 %v3676, %v3679
      %v3681 = vrot.slane %v3680, 4
      %v3683 = vshll.u32 %v3437, 16
      %v3685 = vrot.slane %v3683, 5
      %v3686 = vsel %vm1815, %v3681, %v3685
      %v3687 = vshrl.u32 %v3437, 16
      %v3689 = vrot.slane %v3687, 4
      %v3690 = vor.u32 %v3689, %v3685
      %v3691 = vrot.slane %v3690, 4
      %v3693 = vshll.u32 %v3438, 16
      %v3695 = vrot.slane %v3693, 5
      %v3696 = vsel %vm1815, %v3691, %v3695
      %v3698 = vshrl.u32 %v3439, 16
      %v3700 = vrot.slane %v3698, 4
      %v3701 = vshll.u32 %v3439, 16
      %v3703 = vrot.slane %v3701, 5
      %v3704 = vor.u32 %v3700, %v3703
      %v3705 = vrot.slane %v3704, 4
      %v3707 = vshll.u32 %v3440, 16
      %v3709 = vrot.slane %v3707, 5
      %v3710 = vsel %vm1815, %v3705, %v3709
      %v3711 = vshrl.u32 %v3440, 16
      %v3713 = vrot.slane %v3711, 4
      %v3714 = vor.u32 %v3713, %v3709
      %v3715 = vrot.slane %v3714, 4
      %v3717 = vshll.u32 %v3441, 16
      %v3719 = vrot.slane %v3717, 5
      %v3720 = vsel %vm1815, %v3715, %v3719
      %v3722 = vshrl.u32 %v3442, 16
      %v3724 = vrot.slane %v3722, 4
      %v3725 = vshll.u32 %v3442, 16
      %v3727 = vrot.slane %v3725, 5
      %v3728 = vor.u32 %v3724, %v3727
      %v3729 = vrot.slane %v3728, 4
      %v3731 = vshll.u32 %v3443, 16
      %v3733 = vrot.slane %v3731, 5
      %v3734 = vsel %vm1815, %v3729, %v3733
      %v3735 = vshrl.u32 %v3443, 16
      %v3737 = vrot.slane %v3735, 4
      %v3738 = vor.u32 %v3737, %v3733
      %v3739 = vrot.slane %v3738, 4
      %v3741 = vshll.u32 %v3444, 16
      %v3743 = vrot.slane %v3741, 5
      %v3744 = vsel %vm1815, %v3739, %v3743
      %v3746 = vshrl.u32 %v3445, 16
      %v3748 = vrot.slane %v3746, 4
      %v3749 = vshll.u32 %v3445, 16
      %v3751 = vrot.slane %v3749, 5
      %v3752 = vor.u32 %v3748, %v3751
      %v3753 = vrot.slane %v3752, 4
      %v3755 = vshll.u32 %v3446, 16
      %v3757 = vrot.slane %v3755, 5
      %v3758 = vsel %vm1815, %v3753, %v3757
      %v3759 = vshrl.u32 %v3446, 16
      %v3761 = vrot.slane %v3759, 4
      %v3762 = vor.u32 %v3761, %v3757
      %v3763 = vrot.slane %v3762, 4
      %v3765 = vshll.u32 %v3447, 16
      %v3767 = vrot.slane %v3765, 5
      %v3768 = vsel %vm1815, %v3763, %v3767
      %v3770 = vshrl.u32 %v3448, 16
      %v3772 = vrot.slane %v3770, 4
      %v3773 = vshll.u32 %v3448, 16
      %v3775 = vrot.slane %v3773, 5
      %v3776 = vor.u32 %v3772, %v3775
      %v3777 = vrot.slane %v3776, 4
      %v3779 = vshll.u32 %v3449, 16
      %v3781 = vrot.slane %v3779, 5
      %v3782 = vsel %vm1815, %v3777, %v3781
      %v3783 = vshrl.u32 %v3449, 16
      %v3785 = vrot.slane %v3783, 4
      %v3786 = vor.u32 %v3785, %v3781
      %v3787 = vrot.slane %v3786, 4
      %v3789 = vshll.u32 %v3450, 16
      %v3791 = vrot.slane %v3789, 5
      %v3792 = vsel %vm1815, %v3787, %v3791
      %v3794 = vshrl.u32 %v3451, 16
      %v3796 = vrot.slane %v3794, 4
      %v3797 = vshll.u32 %v3451, 16
      %v3799 = vrot.slane %v3797, 5
      %v3800 = vor.u32 %v3796, %v3799
      %v3801 = vrot.slane %v3800, 4
      %v3803 = vshll.u32 %v3452, 16
      %v3805 = vrot.slane %v3803, 5
      %v3806 = vsel %vm1815, %v3801, %v3805
      %v3807 = vshrl.u32 %v3452, 16
      %v3809 = vrot.slane %v3807, 4
      %v3810 = vor.u32 %v3809, %v3805
      %v3811 = vrot.slane %v3810, 4
      %v3813 = vshll.u32 %v3453, 16
      %v3815 = vrot.slane %v3813, 5
      %v3816 = vsel %vm1815, %v3811, %v3815
      %v3818 = vshrl.u32 %v3454, 16
      %v3820 = vrot.slane %v3818, 4
      %v3821 = vshll.u32 %v3454, 16
      %v3823 = vrot.slane %v3821, 5
      %v3824 = vor.u32 %v3820, %v3823
      %v3825 = vrot.slane %v3824, 4
      %v3827 = vshll.u32 %v3455, 16
      %v3829 = vrot.slane %v3827, 5
      %v3830 = vsel %vm1815, %v3825, %v3829
      %v3831 = vshrl.u32 %v3455, 16
      %v3833 = vrot.slane %v3831, 4
      %v3834 = vor.u32 %v3833, %v3829
      %v3835 = vrot.slane %v3834, 4
      %v3837 = vshll.u32 %v3456, 16
      %v3839 = vrot.slane %v3837, 5
      %v3840 = vsel %vm1815, %v3835, %v3839
      %s3841 = scalar_lea.vmem %s3, 256
      %v3842 = vld [vmem:[%s3841] sm:$0xf]
      %v3843 = vld [vmem:[%s3841 + $0x4] sm:$0xf]
      %v3844 = vld [vmem:[%s3841 + $0x8] sm:$0xf]
      %v3845 = vld [vmem:[%s3841 + $0xc] sm:$0xf]
      %v3846 = vld [vmem:[%s3841 + $0x10] sm:$0xf]
      %v3847 = vld [vmem:[%s3841 + $0x14] sm:$0xf]
      %v3848 = vld [vmem:[%s3841 + $0x18] sm:$0xf]
      %v3849 = vld [vmem:[%s3841 + $0x1c] sm:$0xf]
      %v3850 = vld [vmem:[%s3841 + $0x20] sm:$0xf]
      %v3851 = vld [vmem:[%s3841 + $0x24] sm:$0xf]
      %v3852 = vld [vmem:[%s3841 + $0x28] sm:$0xf]
      %v3853 = vld [vmem:[%s3841 + $0x2c] sm:$0xf]
      %v3854 = vld [vmem:[%s3841 + $0x30] sm:$0xf]
      %v3855 = vld [vmem:[%s3841 + $0x34] sm:$0xf]
      %v3856 = vld [vmem:[%s3841 + $0x38] sm:$0xf]
      %v3857 = vld [vmem:[%s3841 + $0x3c] sm:$0xf]
      %v3858 = vunpack.c.l.b16 %v3470
      %v3859 = vunpack.c.l.b16 %v3480
      %v3860 = vunpack.c.l.b16 %v3494
      %v3861 = vunpack.c.l.b16 %v3504
      %v3862 = vunpack.c.l.b16 %v3518
      %v3863 = vunpack.c.l.b16 %v3528
      %v3864 = vunpack.c.l.b16 %v3542
      %v3865 = vunpack.c.l.b16 %v3552
      %v3866 = vunpack.c.l.b16 %v3566
      %v3867 = vunpack.c.l.b16 %v3576
      %v3868 = vunpack.c.l.b16 %v3590
      %v3869 = vunpack.c.l.b16 %v3600
      %v3870 = vunpack.c.l.b16 %v3614
      %v3871 = vunpack.c.l.b16 %v3624
      %v3872 = vunpack.c.l.b16 %v3638
      %v3873 = vunpack.c.l.b16 %v3648
      %v3874 = vunpack.c.l.b16 %v3662
      %v3875 = vunpack.c.l.b16 %v3672
      %v3876 = vunpack.c.l.b16 %v3686
      %v3877 = vunpack.c.l.b16 %v3696
      %v3878 = vunpack.c.l.b16 %v3710
      %v3879 = vunpack.c.l.b16 %v3720
      %v3880 = vunpack.c.l.b16 %v3734
      %v3881 = vunpack.c.l.b16 %v3744
      %v3882 = vunpack.c.l.b16 %v3758
      %v3883 = vunpack.c.l.b16 %v3768
      %v3884 = vunpack.c.l.b16 %v3782
      %v3885 = vunpack.c.l.b16 %v3792
      %v3886 = vunpack.c.l.b16 %v3806
      %v3887 = vunpack.c.l.b16 %v3816
      %v3888 = vunpack.c.l.b16 %v3830
      %v3889 = vunpack.c.l.b16 %v3840
      %v3890 = vpack.c.b16 %v3859, %v3858
      %v3891 = vpack.c.b16 %v3861, %v3860
      %v3892 = vpack.c.b16 %v3863, %v3862
      %v3893 = vpack.c.b16 %v3865, %v3864
      %v3894 = vpack.c.b16 %v3867, %v3866
      %v3895 = vpack.c.b16 %v3869, %v3868
      %v3896 = vpack.c.b16 %v3871, %v3870
      %v3897 = vpack.c.b16 %v3873, %v3872
      %v3898 = vpack.c.b16 %v3875, %v3874
      %v3899 = vpack.c.b16 %v3877, %v3876
      %v3900 = vpack.c.b16 %v3879, %v3878
      %v3901 = vpack.c.b16 %v3881, %v3880
      %v3902 = vpack.c.b16 %v3883, %v3882
      %v3903 = vpack.c.b16 %v3885, %v3884
      %v3904 = vpack.c.b16 %v3887, %v3886
      %v3905 = vpack.c.b16 %v3889, %v3888
      %v3938 = vunpack.c.l.b16 %v3842
      %v3939 = vunpack.c.l.b16 %v3843
      %v3940 = vunpack.c.l.b16 %v3844
      %v3941 = vunpack.c.l.b16 %v3845
      %v3942 = vunpack.c.l.b16 %v3846
      %v3943 = vunpack.c.l.b16 %v3847
      %v3944 = vunpack.c.l.b16 %v3848
      %v3945 = vunpack.c.l.b16 %v3849
      %v3946 = vunpack.c.l.b16 %v3850
      %v3947 = vunpack.c.l.b16 %v3851
      %v3948 = vunpack.c.l.b16 %v3852
      %v3949 = vunpack.c.l.b16 %v3853
      %v3950 = vunpack.c.l.b16 %v3854
      %v3951 = vunpack.c.l.b16 %v3855
      %v3952 = vunpack.c.l.b16 %v3856
      %v3953 = vunpack.c.l.b16 %v3857
      %v3954 = vpack.c.b16 %v3939, %v3938
      %v3955 = vpack.c.b16 %v3941, %v3940
      %v3956 = vpack.c.b16 %v3943, %v3942
      %v3957 = vpack.c.b16 %v3945, %v3944
      %v3958 = vpack.c.b16 %v3947, %v3946
      %v3959 = vpack.c.b16 %v3949, %v3948
      %v3960 = vpack.c.b16 %v3951, %v3950
      %v3961 = vpack.c.b16 %v3953, %v3952
      %3970 = vmatprep.subr.bf16.mxu0 0
      %3971 = vmatpush1.bf16.msra.mxu0 %v3961
      %3972 = vmatprep.subr.bf16.mxu0 0
      %3973 = vmatpush1.bf16.msra.mxu0 %v3960
      %3974 = vmatprep.subr.bf16.mxu0 0
      %3975 = vmatpush1.bf16.msra.mxu0 %v3959
      %3976 = vmatprep.subr.bf16.mxu0 0
      %3977 = vmatpush1.bf16.msra.mxu0 %v3958
      %3978 = vmatprep.subr.bf16.mxu0 0
      %3979 = vmatpush1.bf16.msra.mxu0 %v3957
      %3980 = vmatprep.subr.bf16.mxu0 0
      %3981 = vmatpush1.bf16.msra.mxu0 %v3956
      %3982 = vmatprep.subr.bf16.mxu0 0
      %3983 = vmatpush1.bf16.msra.mxu0 %v3955
      %3984 = vmatprep.subr.bf16.mxu0 0
      %3985 = vmatpush1.bf16.msra.mxu0 %v3954
      %3986 = vmatprep.subr.bf16.mxu0 0
      %3987 = vmatpush2.bf16.msra.mxu0 0
      %3988 = vmatprep.subr.bf16.mxu0 0
      %3989 = vmatpush2.bf16.msra.mxu0 0
      %3990 = vmatprep.subr.bf16.mxu0 0
      %3991 = vmatpush2.bf16.msra.mxu0 0
      %3992 = vmatprep.subr.bf16.mxu0 0
      %3993 = vmatpush2.bf16.msra.mxu0 0
      %3994 = vmatprep.subr.bf16.mxu0 0
      %3995 = vmatpush2.bf16.msra.mxu0 0
      %3996 = vmatprep.subr.bf16.mxu0 0
      %3997 = vmatpush2.bf16.msra.mxu0 0
      %3998 = vmatprep.subr.bf16.mxu0 0
      %3999 = vmatpush2.bf16.msra.mxu0 0
      %4000 = vmatprep.subr.bf16.mxu0 0
      %4001 = vmatpush2.bf16.msra.mxu0 0
      %4002 = vmatprep.mubr.bf16.mxu0 0
      %4003 = vmatmul.mubr.bf16.gmra.mxu0 %v3890
      %v4004 = vpop.f32.mrf.mxu0
      %v4005 = vadd.f32 0.0, %v4004
      %v4006 = vpop.f32.mrf.mxu0
      %v4007 = vpop.f32.mrf.mxu0
      %v4008 = vadd.f32 0.0, %v4007
      %v4009 = vpop.f32.mrf.mxu0
      %4010 = vmatprep.mubr.bf16.mxu0 0
      %4011 = vmatmul.mubr.bf16.gmra.mxu0 %v3891
      %v4012 = vpop.f32.mrf.mxu0
      %v4013 = vadd.f32 0.0, %v4012
      %v4014 = vpop.f32.mrf.mxu0
      %v4015 = vpop.f32.mrf.mxu0
      %v4016 = vadd.f32 0.0, %v4015
      %v4017 = vpop.f32.mrf.mxu0
      %4018 = vmatprep.mubr.bf16.mxu0 0
      %4019 = vmatmul.mubr.bf16.gmra.mxu0 %v3892
      %v4020 = vpop.f32.mrf.mxu0
      %v4021 = vadd.f32 0.0, %v4020
      %v4022 = vpop.f32.mrf.mxu0
      %v4023 = vpop.f32.mrf.mxu0
      %v4024 = vadd.f32 0.0, %v4023
      %v4025 = vpop.f32.mrf.mxu0
      %4026 = vmatprep.mubr.bf16.mxu0 0
      %4027 = vmatmul.mubr.bf16.gmra.mxu0 %v3893
      %v4028 = vpop.f32.mrf.mxu0
      %v4029 = vadd.f32 0.0, %v4028
      %v4030 = vpop.f32.mrf.mxu0
      %v4031 = vpop.f32.mrf.mxu0
      %v4032 = vadd.f32 0.0, %v4031
      %v4033 = vpop.f32.mrf.mxu0
      %4034 = vmatprep.mubr.bf16.mxu0 0
      %4035 = vmatmul.mubr.bf16.gmra.mxu0 %v3894
      %v4036 = vpop.f32.mrf.mxu0
      %v4037 = vadd.f32 0.0, %v4036
      %v4038 = vpop.f32.mrf.mxu0
      %v4039 = vpop.f32.mrf.mxu0
      %v4040 = vadd.f32 0.0, %v4039
      %v4041 = vpop.f32.mrf.mxu0
      %4042 = vmatprep.mubr.bf16.mxu0 0
      %4043 = vmatmul.mubr.bf16.gmra.mxu0 %v3895
      %v4044 = vpop.f32.mrf.mxu0
      %v4045 = vadd.f32 0.0, %v4044
      %v4046 = vpop.f32.mrf.mxu0
      %v4047 = vpop.f32.mrf.mxu0
      %v4048 = vadd.f32 0.0, %v4047
      %v4049 = vpop.f32.mrf.mxu0
      %4050 = vmatprep.mubr.bf16.mxu0 0
      %4051 = vmatmul.mubr.bf16.gmra.mxu0 %v3896
      %v4052 = vpop.f32.mrf.mxu0
      %v4053 = vadd.f32 0.0, %v4052
      %v4054 = vpop.f32.mrf.mxu0
      %v4055 = vpop.f32.mrf.mxu0
      %v4056 = vadd.f32 0.0, %v4055
      %v4057 = vpop.f32.mrf.mxu0
      %4058 = vmatprep.mubr.bf16.mxu0 0
      %4059 = vmatmul.mubr.bf16.gmra.mxu0 %v3897
      %v4060 = vpop.f32.mrf.mxu0
      %v4061 = vadd.f32 0.0, %v4060
      %v4062 = vpop.f32.mrf.mxu0
      %v4063 = vpop.f32.mrf.mxu0
      %v4064 = vadd.f32 0.0, %v4063
      %v4065 = vpop.f32.mrf.mxu0
      %4066 = vmatprep.mubr.bf16.mxu0 0
      %4067 = vmatmul.mubr.bf16.gmra.mxu0 %v3898
      %v4068 = vpop.f32.mrf.mxu0
      %v4069 = vadd.f32 0.0, %v4068
      %v4070 = vpop.f32.mrf.mxu0
      %v4071 = vpop.f32.mrf.mxu0
      %v4072 = vadd.f32 0.0, %v4071
      %v4073 = vpop.f32.mrf.mxu0
      %4074 = vmatprep.mubr.bf16.mxu0 0
      %4075 = vmatmul.mubr.bf16.gmra.mxu0 %v3899
      %v4076 = vpop.f32.mrf.mxu0
      %v4077 = vadd.f32 0.0, %v4076
      %v4078 = vpop.f32.mrf.mxu0
      %v4079 = vpop.f32.mrf.mxu0
      %v4080 = vadd.f32 0.0, %v4079
      %v4081 = vpop.f32.mrf.mxu0
      %4082 = vmatprep.mubr.bf16.mxu0 0
      %4083 = vmatmul.mubr.bf16.gmra.mxu0 %v3900
      %v4084 = vpop.f32.mrf.mxu0
      %v4085 = vadd.f32 0.0, %v4084
      %v4086 = vpop.f32.mrf.mxu0
      %v4087 = vpop.f32.mrf.mxu0
      %v4088 = vadd.f32 0.0, %v4087
      %v4089 = vpop.f32.mrf.mxu0
      %4090 = vmatprep.mubr.bf16.mxu0 0
      %4091 = vmatmul.mubr.bf16.gmra.mxu0 %v3901
      %v4092 = vpop.f32.mrf.mxu0
      %v4093 = vadd.f32 0.0, %v4092
      %v4094 = vpop.f32.mrf.mxu0
      %v4095 = vpop.f32.mrf.mxu0
      %v4096 = vadd.f32 0.0, %v4095
      %v4097 = vpop.f32.mrf.mxu0
      %4098 = vmatprep.mubr.bf16.mxu0 0
      %4099 = vmatmul.mubr.bf16.gmra.mxu0 %v3902
      %v4100 = vpop.f32.mrf.mxu0
      %v4101 = vadd.f32 0.0, %v4100
      %v4102 = vpop.f32.mrf.mxu0
      %v4103 = vpop.f32.mrf.mxu0
      %v4104 = vadd.f32 0.0, %v4103
      %v4105 = vpop.f32.mrf.mxu0
      %4106 = vmatprep.mubr.bf16.mxu0 0
      %4107 = vmatmul.mubr.bf16.gmra.mxu0 %v3903
      %v4108 = vpop.f32.mrf.mxu0
      %v4109 = vadd.f32 0.0, %v4108
      %v4110 = vpop.f32.mrf.mxu0
      %v4111 = vpop.f32.mrf.mxu0
      %v4112 = vadd.f32 0.0, %v4111
      %v4113 = vpop.f32.mrf.mxu0
      %4114 = vmatprep.mubr.bf16.mxu0 0
      %4115 = vmatmul.mubr.bf16.gmra.mxu0 %v3904
      %v4116 = vpop.f32.mrf.mxu0
      %v4117 = vadd.f32 0.0, %v4116
      %v4118 = vpop.f32.mrf.mxu0
      %v4119 = vpop.f32.mrf.mxu0
      %v4120 = vadd.f32 0.0, %v4119
      %v4121 = vpop.f32.mrf.mxu0
      %4122 = vmatprep.mubr.bf16.mxu0 0
      %4123 = vmatmul.mubr.bf16.gmra.mxu0 %v3905
      %v4124 = vpop.f32.mrf.mxu0
      %v4125 = vadd.f32 0.0, %v4124
      %v4126 = vpop.f32.mrf.mxu0
      %v4127 = vpop.f32.mrf.mxu0
      %v4128 = vadd.f32 0.0, %v4127
      %v4129 = vpop.f32.mrf.mxu0
      %4130 = vdwg.mxu0
      %v4131 = vadd.f32 %v3377, %v4005
      %v4132 = vadd.f32 %v3378, %v4008
      %v4133 = vadd.f32 %v3379, %v4013
      %v4134 = vadd.f32 %v3380, %v4016
      %v4135 = vadd.f32 %v3381, %v4021
      %v4136 = vadd.f32 %v3382, %v4024
      %v4137 = vadd.f32 %v3383, %v4029
      %v4138 = vadd.f32 %v3384, %v4032
      %v4139 = vadd.f32 %v3385, %v4037
      %v4140 = vadd.f32 %v3386, %v4040
      %v4141 = vadd.f32 %v3387, %v4045
      %v4142 = vadd.f32 %v3388, %v4048
      %v4143 = vadd.f32 %v3389, %v4053
      %v4144 = vadd.f32 %v3390, %v4056
      %v4145 = vadd.f32 %v3391, %v4061
      %v4146 = vadd.f32 %v3392, %v4064
      %v4147 = vadd.f32 %v3393, %v4069
      %v4148 = vadd.f32 %v3394, %v4072
      %v4149 = vadd.f32 %v3395, %v4077
      %v4150 = vadd.f32 %v3396, %v4080
      %v4151 = vadd.f32 %v3397, %v4085
      %v4152 = vadd.f32 %v3398, %v4088
      %v4153 = vadd.f32 %v3399, %v4093
      %v4154 = vadd.f32 %v3400, %v4096
      %v4155 = vadd.f32 %v3401, %v4101
      %v4156 = vadd.f32 %v3402, %v4104
      %v4157 = vadd.f32 %v3403, %v4109
      %v4158 = vadd.f32 %v3404, %v4112
      %v4159 = vadd.f32 %v3405, %v4117
      %v4160 = vadd.f32 %v3406, %v4120
      %v4161 = vadd.f32 %v3407, %v4125
      %v4162 = vadd.f32 %v3408, %v4128
      %v4163 = vld [vmem:[%s1146] sm:$0xe]
      %v4164 = vld [vmem:[%s1146 + $0xc] sm:$0xe]
      %v4165 = vld [vmem:[%s1146 + $0x18] sm:$0xe]
      %v4166 = vld [vmem:[%s1146 + $0x24] sm:$0xe]
      %v4167 = vld [vmem:[%s1146 + $0x30] sm:$0xe]
      %v4168 = vld [vmem:[%s1146 + $0x3c] sm:$0xe]
      %v4169 = vld [vmem:[%s1146 + $0x48] sm:$0xe]
      %v4170 = vld [vmem:[%s1146 + $0x54] sm:$0xe]
      %v4171 = vld [vmem:[%s1146 + $0x60] sm:$0xe]
      %v4172 = vld [vmem:[%s1146 + $0x6c] sm:$0xe]
      %v4173 = vld [vmem:[%s1146 + $0x78] sm:$0xe]
      %v4174 = vld [vmem:[%s1146 + $0x84] sm:$0xe]
      %v4175 = vld [vmem:[%s1146 + $0x90] sm:$0xe]
      %v4176 = vld [vmem:[%s1146 + $0x9c] sm:$0xe]
      %v4177 = vld [vmem:[%s1146 + $0xa8] sm:$0xe]
      %v4178 = vld [vmem:[%s1146 + $0xb4] sm:$0xe]
      %v4227 = vrot.slane %v4163, 5
      %v4228 = vrot.slane %v4227, 4
      %v4229 = vrot.slane %v3410, 5
      %v4230 = vsel %vm2588, %v4228, %v4229
      %v4231 = vrot.slane %v4229, 4
      %v4232 = vrot.slane %v3411, 5
      %v4233 = vsel %vm2588, %v4231, %v4232
      %v4234 = vrot.slane %v4164, 5
      %v4235 = vrot.slane %v4234, 4
      %v4236 = vrot.slane %v3413, 5
      %v4237 = vsel %vm2588, %v4235, %v4236
      %v4238 = vrot.slane %v4236, 4
      %v4239 = vrot.slane %v3414, 5
      %v4240 = vsel %vm2588, %v4238, %v4239
      %v4241 = vrot.slane %v4165, 5
      %v4242 = vrot.slane %v4241, 4
      %v4243 = vrot.slane %v3416, 5
      %v4244 = vsel %vm2588, %v4242, %v4243
      %v4245 = vrot.slane %v4243, 4
      %v4246 = vrot.slane %v3417, 5
      %v4247 = vsel %vm2588, %v4245, %v4246
      %v4248 = vrot.slane %v4166, 5
      %v4249 = vrot.slane %v4248, 4
      %v4250 = vrot.slane %v3419, 5
      %v4251 = vsel %vm2588, %v4249, %v4250
      %v4252 = vrot.slane %v4250, 4
      %v4253 = vrot.slane %v3420, 5
      %v4254 = vsel %vm2588, %v4252, %v4253
      %v4255 = vrot.slane %v4167, 5
      %v4256 = vrot.slane %v4255, 4
      %v4257 = vrot.slane %v3422, 5
      %v4258 = vsel %vm2588, %v4256, %v4257
      %v4259 = vrot.slane %v4257, 4
      %v4260 = vrot.slane %v3423, 5
      %v4261 = vsel %vm2588, %v4259, %v4260
      %v4262 = vrot.slane %v4168, 5
      %v4263 = vrot.slane %v4262, 4
      %v4264 = vrot.slane %v3425, 5
      %v4265 = vsel %vm2588, %v4263, %v4264
      %v4266 = vrot.slane %v4264, 4
      %v4267 = vrot.slane %v3426, 5
      %v4268 = vsel %vm2588, %v4266, %v4267
      %v4269 = vrot.slane %v4169, 5
      %v4270 = vrot.slane %v4269, 4
      %v4271 = vrot.slane %v3428, 5
      %v4272 = vsel %vm2588, %v4270, %v4271
      %v4273 = vrot.slane %v4271, 4
      %v4274 = vrot.slane %v3429, 5
      %v4275 = vsel %vm2588, %v4273, %v4274
      %v4276 = vrot.slane %v4170, 5
      %v4277 = vrot.slane %v4276, 4
      %v4278 = vrot.slane %v3431, 5
      %v4279 = vsel %vm2588, %v4277, %v4278
      %v4280 = vrot.slane %v4278, 4
      %v4281 = vrot.slane %v3432, 5
      %v4282 = vsel %vm2588, %v4280, %v4281
      %v4283 = vrot.slane %v4171, 5
      %v4284 = vrot.slane %v4283, 4
      %v4285 = vrot.slane %v3434, 5
      %v4286 = vsel %vm2588, %v4284, %v4285
      %v4287 = vrot.slane %v4285, 4
      %v4288 = vrot.slane %v3435, 5
      %v4289 = vsel %vm2588, %v4287, %v4288
      %v4290 = vrot.slane %v4172, 5
      %v4291 = vrot.slane %v4290, 4
      %v4292 = vrot.slane %v3437, 5
      %v4293 = vsel %vm2588, %v4291, %v4292
      %v4294 = vrot.slane %v4292, 4
      %v4295 = vrot.slane %v3438, 5
      %v4296 = vsel %vm2588, %v4294, %v4295
      %v4297 = vrot.slane %v4173, 5
      %v4298 = vrot.slane %v4297, 4
      %v4299 = vrot.slane %v3440, 5
      %v4300 = vsel %vm2588, %v4298, %v4299
      %v4301 = vrot.slane %v4299, 4
      %v4302 = vrot.slane %v3441, 5
      %v4303 = vsel %vm2588, %v4301, %v4302
      %v4304 = vrot.slane %v4174, 5
      %v4305 = vrot.slane %v4304, 4
      %v4306 = vrot.slane %v3443, 5
      %v4307 = vsel %vm2588, %v4305, %v4306
      %v4308 = vrot.slane %v4306, 4
      %v4309 = vrot.slane %v3444, 5
      %v4310 = vsel %vm2588, %v4308, %v4309
      %v4311 = vrot.slane %v4175, 5
      %v4312 = vrot.slane %v4311, 4
      %v4313 = vrot.slane %v3446, 5
      %v4314 = vsel %vm2588, %v4312, %v4313
      %v4315 = vrot.slane %v4313, 4
      %v4316 = vrot.slane %v3447, 5
      %v4317 = vsel %vm2588, %v4315, %v4316
      %v4318 = vrot.slane %v4176, 5
      %v4319 = vrot.slane %v4318, 4
      %v4320 = vrot.slane %v3449, 5
      %v4321 = vsel %vm2588, %v4319, %v4320
      %v4322 = vrot.slane %v4320, 4
      %v4323 = vrot.slane %v3450, 5
      %v4324 = vsel %vm2588, %v4322, %v4323
      %v4325 = vrot.slane %v4177, 5
      %v4326 = vrot.slane %v4325, 4
      %v4327 = vrot.slane %v3452, 5
      %v4328 = vsel %vm2588, %v4326, %v4327
      %v4329 = vrot.slane %v4327, 4
      %v4330 = vrot.slane %v3453, 5
      %v4331 = vsel %vm2588, %v4329, %v4330
      %v4332 = vrot.slane %v4178, 5
      %v4333 = vrot.slane %v4332, 4
      %v4334 = vrot.slane %v3455, 5
      %v4335 = vsel %vm2588, %v4333, %v4334
      %v4336 = vrot.slane %v4334, 4
      %v4337 = vrot.slane %v3456, 5
      %v4338 = vsel %vm2588, %v4336, %v4337
      %s4339 = scalar_lea.vmem %s3, 320
      %v4340 = vld [vmem:[%s4339] sm:$0xf]
      %v4341 = vld [vmem:[%s4339 + $0x4] sm:$0xf]
      %v4342 = vld [vmem:[%s4339 + $0x8] sm:$0xf]
      %v4343 = vld [vmem:[%s4339 + $0xc] sm:$0xf]
      %v4344 = vld [vmem:[%s4339 + $0x10] sm:$0xf]
      %v4345 = vld [vmem:[%s4339 + $0x14] sm:$0xf]
      %v4346 = vld [vmem:[%s4339 + $0x18] sm:$0xf]
      %v4347 = vld [vmem:[%s4339 + $0x1c] sm:$0xf]
      %v4348 = vld [vmem:[%s4339 + $0x20] sm:$0xf]
      %v4349 = vld [vmem:[%s4339 + $0x24] sm:$0xf]
      %v4350 = vld [vmem:[%s4339 + $0x28] sm:$0xf]
      %v4351 = vld [vmem:[%s4339 + $0x2c] sm:$0xf]
      %v4352 = vld [vmem:[%s4339 + $0x30] sm:$0xf]
      %v4353 = vld [vmem:[%s4339 + $0x34] sm:$0xf]
      %v4354 = vld [vmem:[%s4339 + $0x38] sm:$0xf]
      %v4355 = vld [vmem:[%s4339 + $0x3c] sm:$0xf]
      %v4356 = vunpack.c.l.b16 %v4230
      %v4357 = vunpack.c.l.b16 %v4233
      %v4358 = vunpack.c.l.b16 %v4237
      %v4359 = vunpack.c.l.b16 %v4240
      %v4360 = vunpack.c.l.b16 %v4244
      %v4361 = vunpack.c.l.b16 %v4247
      %v4362 = vunpack.c.l.b16 %v4251
      %v4363 = vunpack.c.l.b16 %v4254
      %v4364 = vunpack.c.l.b16 %v4258
      %v4365 = vunpack.c.l.b16 %v4261
      %v4366 = vunpack.c.l.b16 %v4265
      %v4367 = vunpack.c.l.b16 %v4268
      %v4368 = vunpack.c.l.b16 %v4272
      %v4369 = vunpack.c.l.b16 %v4275
      %v4370 = vunpack.c.l.b16 %v4279
      %v4371 = vunpack.c.l.b16 %v4282
      %v4372 = vunpack.c.l.b16 %v4286
      %v4373 = vunpack.c.l.b16 %v4289
      %v4374 = vunpack.c.l.b16 %v4293
      %v4375 = vunpack.c.l.b16 %v4296
      %v4376 = vunpack.c.l.b16 %v4300
      %v4377 = vunpack.c.l.b16 %v4303
      %v4378 = vunpack.c.l.b16 %v4307
      %v4379 = vunpack.c.l.b16 %v4310
      %v4380 = vunpack.c.l.b16 %v4314
      %v4381 = vunpack.c.l.b16 %v4317
      %v4382 = vunpack.c.l.b16 %v4321
      %v4383 = vunpack.c.l.b16 %v4324
      %v4384 = vunpack.c.l.b16 %v4328
      %v4385 = vunpack.c.l.b16 %v4331
      %v4386 = vunpack.c.l.b16 %v4335
      %v4387 = vunpack.c.l.b16 %v4338
      %v4388 = vpack.c.b16 %v4357, %v4356
      %v4389 = vpack.c.b16 %v4359, %v4358
      %v4390 = vpack.c.b16 %v4361, %v4360
      %v4391 = vpack.c.b16 %v4363, %v4362
      %v4392 = vpack.c.b16 %v4365, %v4364
      %v4393 = vpack.c.b16 %v4367, %v4366
      %v4394 = vpack.c.b16 %v4369, %v4368
      %v4395 = vpack.c.b16 %v4371, %v4370
      %v4396 = vpack.c.b16 %v4373, %v4372
      %v4397 = vpack.c.b16 %v4375, %v4374
      %v4398 = vpack.c.b16 %v4377, %v4376
      %v4399 = vpack.c.b16 %v4379, %v4378
      %v4400 = vpack.c.b16 %v4381, %v4380
      %v4401 = vpack.c.b16 %v4383, %v4382
      %v4402 = vpack.c.b16 %v4385, %v4384
      %v4403 = vpack.c.b16 %v4387, %v4386
      %v4436 = vunpack.c.l.b16 %v4340
      %v4437 = vunpack.c.l.b16 %v4341
      %v4438 = vunpack.c.l.b16 %v4342
      %v4439 = vunpack.c.l.b16 %v4343
      %v4440 = vunpack.c.l.b16 %v4344
      %v4441 = vunpack.c.l.b16 %v4345
      %v4442 = vunpack.c.l.b16 %v4346
      %v4443 = vunpack.c.l.b16 %v4347
      %v4444 = vunpack.c.l.b16 %v4348
      %v4445 = vunpack.c.l.b16 %v4349
      %v4446 = vunpack.c.l.b16 %v4350
      %v4447 = vunpack.c.l.b16 %v4351
      %v4448 = vunpack.c.l.b16 %v4352
      %v4449 = vunpack.c.l.b16 %v4353
      %v4450 = vunpack.c.l.b16 %v4354
      %v4451 = vunpack.c.l.b16 %v4355
      %v4452 = vpack.c.b16 %v4437, %v4436
      %v4453 = vpack.c.b16 %v4439, %v4438
      %v4454 = vpack.c.b16 %v4441, %v4440
      %v4455 = vpack.c.b16 %v4443, %v4442
      %v4456 = vpack.c.b16 %v4445, %v4444
      %v4457 = vpack.c.b16 %v4447, %v4446
      %v4458 = vpack.c.b16 %v4449, %v4448
      %v4459 = vpack.c.b16 %v4451, %v4450
      %4468 = vmatprep.subr.bf16.mxu0 0
      %4469 = vmatpush1.bf16.msra.mxu0 %v4459
      %4470 = vmatprep.subr.bf16.mxu0 0
      %4471 = vmatpush1.bf16.msra.mxu0 %v4458
      %4472 = vmatprep.subr.bf16.mxu0 0
      %4473 = vmatpush1.bf16.msra.mxu0 %v4457
      %4474 = vmatprep.subr.bf16.mxu0 0
      %4475 = vmatpush1.bf16.msra.mxu0 %v4456
      %4476 = vmatprep.subr.bf16.mxu0 0
      %4477 = vmatpush1.bf16.msra.mxu0 %v4455
      %4478 = vmatprep.subr.bf16.mxu0 0
      %4479 = vmatpush1.bf16.msra.mxu0 %v4454
      %4480 = vmatprep.subr.bf16.mxu0 0
      %4481 = vmatpush1.bf16.msra.mxu0 %v4453
      %4482 = vmatprep.subr.bf16.mxu0 0
      %4483 = vmatpush1.bf16.msra.mxu0 %v4452
      %4484 = vmatprep.subr.bf16.mxu0 0
      %4485 = vmatpush2.bf16.msra.mxu0 0
      %4486 = vmatprep.subr.bf16.mxu0 0
      %4487 = vmatpush2.bf16.msra.mxu0 0
      %4488 = vmatprep.subr.bf16.mxu0 0
      %4489 = vmatpush2.bf16.msra.mxu0 0
      %4490 = vmatprep.subr.bf16.mxu0 0
      %4491 = vmatpush2.bf16.msra.mxu0 0
      %4492 = vmatprep.subr.bf16.mxu0 0
      %4493 = vmatpush2.bf16.msra.mxu0 0
      %4494 = vmatprep.subr.bf16.mxu0 0
      %4495 = vmatpush2.bf16.msra.mxu0 0
      %4496 = vmatprep.subr.bf16.mxu0 0
      %4497 = vmatpush2.bf16.msra.mxu0 0
      %4498 = vmatprep.subr.bf16.mxu0 0
      %4499 = vmatpush2.bf16.msra.mxu0 0
      %4500 = vmatprep.mubr.bf16.mxu0 0
      %4501 = vmatmul.mubr.bf16.gmra.mxu0 %v4388
      %v4502 = vpop.f32.mrf.mxu0
      %v4503 = vadd.f32 0.0, %v4502
      %v4504 = vpop.f32.mrf.mxu0
      %v4505 = vpop.f32.mrf.mxu0
      %v4506 = vadd.f32 0.0, %v4505
      %v4507 = vpop.f32.mrf.mxu0
      %4508 = vmatprep.mubr.bf16.mxu0 0
      %4509 = vmatmul.mubr.bf16.gmra.mxu0 %v4389
      %v4510 = vpop.f32.mrf.mxu0
      %v4511 = vadd.f32 0.0, %v4510
      %v4512 = vpop.f32.mrf.mxu0
      %v4513 = vpop.f32.mrf.mxu0
      %v4514 = vadd.f32 0.0, %v4513
      %v4515 = vpop.f32.mrf.mxu0
      %4516 = vmatprep.mubr.bf16.mxu0 0
      %4517 = vmatmul.mubr.bf16.gmra.mxu0 %v4390
      %v4518 = vpop.f32.mrf.mxu0
      %v4519 = vadd.f32 0.0, %v4518
      %v4520 = vpop.f32.mrf.mxu0
      %v4521 = vpop.f32.mrf.mxu0
      %v4522 = vadd.f32 0.0, %v4521
      %v4523 = vpop.f32.mrf.mxu0
      %4524 = vmatprep.mubr.bf16.mxu0 0
      %4525 = vmatmul.mubr.bf16.gmra.mxu0 %v4391
      %v4526 = vpop.f32.mrf.mxu0
      %v4527 = vadd.f32 0.0, %v4526
      %v4528 = vpop.f32.mrf.mxu0
      %v4529 = vpop.f32.mrf.mxu0
      %v4530 = vadd.f32 0.0, %v4529
      %v4531 = vpop.f32.mrf.mxu0
      %4532 = vmatprep.mubr.bf16.mxu0 0
      %4533 = vmatmul.mubr.bf16.gmra.mxu0 %v4392
      %v4534 = vpop.f32.mrf.mxu0
      %v4535 = vadd.f32 0.0, %v4534
      %v4536 = vpop.f32.mrf.mxu0
      %v4537 = vpop.f32.mrf.mxu0
      %v4538 = vadd.f32 0.0, %v4537
      %v4539 = vpop.f32.mrf.mxu0
      %4540 = vmatprep.mubr.bf16.mxu0 0
      %4541 = vmatmul.mubr.bf16.gmra.mxu0 %v4393
      %v4542 = vpop.f32.mrf.mxu0
      %v4543 = vadd.f32 0.0, %v4542
      %v4544 = vpop.f32.mrf.mxu0
      %v4545 = vpop.f32.mrf.mxu0
      %v4546 = vadd.f32 0.0, %v4545
      %v4547 = vpop.f32.mrf.mxu0
      %4548 = vmatprep.mubr.bf16.mxu0 0
      %4549 = vmatmul.mubr.bf16.gmra.mxu0 %v4394
      %v4550 = vpop.f32.mrf.mxu0
      %v4551 = vadd.f32 0.0, %v4550
      %v4552 = vpop.f32.mrf.mxu0
      %v4553 = vpop.f32.mrf.mxu0
      %v4554 = vadd.f32 0.0, %v4553
      %v4555 = vpop.f32.mrf.mxu0
      %4556 = vmatprep.mubr.bf16.mxu0 0
      %4557 = vmatmul.mubr.bf16.gmra.mxu0 %v4395
      %v4558 = vpop.f32.mrf.mxu0
      %v4559 = vadd.f32 0.0, %v4558
      %v4560 = vpop.f32.mrf.mxu0
      %v4561 = vpop.f32.mrf.mxu0
      %v4562 = vadd.f32 0.0, %v4561
      %v4563 = vpop.f32.mrf.mxu0
      %4564 = vmatprep.mubr.bf16.mxu0 0
      %4565 = vmatmul.mubr.bf16.gmra.mxu0 %v4396
      %v4566 = vpop.f32.mrf.mxu0
      %v4567 = vadd.f32 0.0, %v4566
      %v4568 = vpop.f32.mrf.mxu0
      %v4569 = vpop.f32.mrf.mxu0
      %v4570 = vadd.f32 0.0, %v4569
      %v4571 = vpop.f32.mrf.mxu0
      %4572 = vmatprep.mubr.bf16.mxu0 0
      %4573 = vmatmul.mubr.bf16.gmra.mxu0 %v4397
      %v4574 = vpop.f32.mrf.mxu0
      %v4575 = vadd.f32 0.0, %v4574
      %v4576 = vpop.f32.mrf.mxu0
      %v4577 = vpop.f32.mrf.mxu0
      %v4578 = vadd.f32 0.0, %v4577
      %v4579 = vpop.f32.mrf.mxu0
      %4580 = vmatprep.mubr.bf16.mxu0 0
      %4581 = vmatmul.mubr.bf16.gmra.mxu0 %v4398
      %v4582 = vpop.f32.mrf.mxu0
      %v4583 = vadd.f32 0.0, %v4582
      %v4584 = vpop.f32.mrf.mxu0
      %v4585 = vpop.f32.mrf.mxu0
      %v4586 = vadd.f32 0.0, %v4585
      %v4587 = vpop.f32.mrf.mxu0
      %4588 = vmatprep.mubr.bf16.mxu0 0
      %4589 = vmatmul.mubr.bf16.gmra.mxu0 %v4399
      %v4590 = vpop.f32.mrf.mxu0
      %v4591 = vadd.f32 0.0, %v4590
      %v4592 = vpop.f32.mrf.mxu0
      %v4593 = vpop.f32.mrf.mxu0
      %v4594 = vadd.f32 0.0, %v4593
      %v4595 = vpop.f32.mrf.mxu0
      %4596 = vmatprep.mubr.bf16.mxu0 0
      %4597 = vmatmul.mubr.bf16.gmra.mxu0 %v4400
      %v4598 = vpop.f32.mrf.mxu0
      %v4599 = vadd.f32 0.0, %v4598
      %v4600 = vpop.f32.mrf.mxu0
      %v4601 = vpop.f32.mrf.mxu0
      %v4602 = vadd.f32 0.0, %v4601
      %v4603 = vpop.f32.mrf.mxu0
      %4604 = vmatprep.mubr.bf16.mxu0 0
      %4605 = vmatmul.mubr.bf16.gmra.mxu0 %v4401
      %v4606 = vpop.f32.mrf.mxu0
      %v4607 = vadd.f32 0.0, %v4606
      %v4608 = vpop.f32.mrf.mxu0
      %v4609 = vpop.f32.mrf.mxu0
      %v4610 = vadd.f32 0.0, %v4609
      %v4611 = vpop.f32.mrf.mxu0
      %4612 = vmatprep.mubr.bf16.mxu0 0
      %4613 = vmatmul.mubr.bf16.gmra.mxu0 %v4402
      %v4614 = vpop.f32.mrf.mxu0
      %v4615 = vadd.f32 0.0, %v4614
      %v4616 = vpop.f32.mrf.mxu0
      %v4617 = vpop.f32.mrf.mxu0
      %v4618 = vadd.f32 0.0, %v4617
      %v4619 = vpop.f32.mrf.mxu0
      %4620 = vmatprep.mubr.bf16.mxu0 0
      %4621 = vmatmul.mubr.bf16.gmra.mxu0 %v4403
      %v4622 = vpop.f32.mrf.mxu0
      %v4623 = vadd.f32 0.0, %v4622
      %v4624 = vpop.f32.mrf.mxu0
      %v4625 = vpop.f32.mrf.mxu0
      %v4626 = vadd.f32 0.0, %v4625
      %v4627 = vpop.f32.mrf.mxu0
      %4628 = vdwg.mxu0
      %v4629 = vadd.f32 %v4131, %v4503
      %v4630 = vadd.f32 %v4132, %v4506
      %v4631 = vadd.f32 %v4133, %v4511
      %v4632 = vadd.f32 %v4134, %v4514
      %v4633 = vadd.f32 %v4135, %v4519
      %v4634 = vadd.f32 %v4136, %v4522
      %v4635 = vadd.f32 %v4137, %v4527
      %v4636 = vadd.f32 %v4138, %v4530
      %v4637 = vadd.f32 %v4139, %v4535
      %v4638 = vadd.f32 %v4140, %v4538
      %v4639 = vadd.f32 %v4141, %v4543
      %v4640 = vadd.f32 %v4142, %v4546
      %v4641 = vadd.f32 %v4143, %v4551
      %v4642 = vadd.f32 %v4144, %v4554
      %v4643 = vadd.f32 %v4145, %v4559
      %v4644 = vadd.f32 %v4146, %v4562
      %v4645 = vadd.f32 %v4147, %v4567
      %v4646 = vadd.f32 %v4148, %v4570
      %v4647 = vadd.f32 %v4149, %v4575
      %v4648 = vadd.f32 %v4150, %v4578
      %v4649 = vadd.f32 %v4151, %v4583
      %v4650 = vadd.f32 %v4152, %v4586
      %v4651 = vadd.f32 %v4153, %v4591
      %v4652 = vadd.f32 %v4154, %v4594
      %v4653 = vadd.f32 %v4155, %v4599
      %v4654 = vadd.f32 %v4156, %v4602
      %v4655 = vadd.f32 %v4157, %v4607
      %v4656 = vadd.f32 %v4158, %v4610
      %v4657 = vadd.f32 %v4159, %v4615
      %v4658 = vadd.f32 %v4160, %v4618
      %v4659 = vadd.f32 %v4161, %v4623
      %v4660 = vadd.f32 %v4162, %v4626
      %s4661 = scalar_lea.vmem [#allocation2], 24
      %v4662 = vld [vmem:[%s4661] sm:$0xf]
      %v4663 = vld [vmem:[%s4661 + $0x4] sm:$0xf]
      %v4664 = vld [vmem:[%s4661 + $0xc] sm:$0xf]
      %v4665 = vld [vmem:[%s4661 + $0x10] sm:$0xf]
      %v4666 = vld [vmem:[%s4661 + $0x18] sm:$0xf]
      %v4667 = vld [vmem:[%s4661 + $0x1c] sm:$0xf]
      %v4668 = vld [vmem:[%s4661 + $0x24] sm:$0xf]
      %v4669 = vld [vmem:[%s4661 + $0x28] sm:$0xf]
      %v4670 = vld [vmem:[%s4661 + $0x30] sm:$0xf]
      %v4671 = vld [vmem:[%s4661 + $0x34] sm:$0xf]
      %v4672 = vld [vmem:[%s4661 + $0x3c] sm:$0xf]
      %v4673 = vld [vmem:[%s4661 + $0x40] sm:$0xf]
      %v4674 = vld [vmem:[%s4661 + $0x48] sm:$0xf]
      %v4675 = vld [vmem:[%s4661 + $0x4c] sm:$0xf]
      %v4676 = vld [vmem:[%s4661 + $0x54] sm:$0xf]
      %v4677 = vld [vmem:[%s4661 + $0x58] sm:$0xf]
      %v4678 = vld [vmem:[%s4661 + $0x60] sm:$0xf]
      %v4679 = vld [vmem:[%s4661 + $0x64] sm:$0xf]
      %v4680 = vld [vmem:[%s4661 + $0x6c] sm:$0xf]
      %v4681 = vld [vmem:[%s4661 + $0x70] sm:$0xf]
      %v4682 = vld [vmem:[%s4661 + $0x78] sm:$0xf]
      %v4683 = vld [vmem:[%s4661 + $0x7c] sm:$0xf]
      %v4684 = vld [vmem:[%s4661 + $0x84] sm:$0xf]
      %v4685 = vld [vmem:[%s4661 + $0x88] sm:$0xf]
      %v4686 = vld [vmem:[%s4661 + $0x90] sm:$0xf]
      %v4687 = vld [vmem:[%s4661 + $0x94] sm:$0xf]
      %v4688 = vld [vmem:[%s4661 + $0x9c] sm:$0xf]
      %v4689 = vld [vmem:[%s4661 + $0xa0] sm:$0xf]
      %v4690 = vld [vmem:[%s4661 + $0xa8] sm:$0xf]
      %v4691 = vld [vmem:[%s4661 + $0xac] sm:$0xf]
      %v4692 = vld [vmem:[%s4661 + $0xb4] sm:$0xf]
      %v4693 = vld [vmem:[%s4661 + $0xb8] sm:$0xf]
      %s4694 = scalar_lea.vmem %s3, 384
      %v4695 = vld [vmem:[%s4694] sm:$0xf]
      %v4696 = vld [vmem:[%s4694 + $0x4] sm:$0xf]
      %v4697 = vld [vmem:[%s4694 + $0x8] sm:$0xf]
      %v4698 = vld [vmem:[%s4694 + $0xc] sm:$0xf]
      %v4699 = vld [vmem:[%s4694 + $0x10] sm:$0xf]
      %v4700 = vld [vmem:[%s4694 + $0x14] sm:$0xf]
      %v4701 = vld [vmem:[%s4694 + $0x18] sm:$0xf]
      %v4702 = vld [vmem:[%s4694 + $0x1c] sm:$0xf]
      %v4703 = vld [vmem:[%s4694 + $0x20] sm:$0xf]
      %v4704 = vld [vmem:[%s4694 + $0x24] sm:$0xf]
      %v4705 = vld [vmem:[%s4694 + $0x28] sm:$0xf]
      %v4706 = vld [vmem:[%s4694 + $0x2c] sm:$0xf]
      %v4707 = vld [vmem:[%s4694 + $0x30] sm:$0xf]
      %v4708 = vld [vmem:[%s4694 + $0x34] sm:$0xf]
      %v4709 = vld [vmem:[%s4694 + $0x38] sm:$0xf]
      %v4710 = vld [vmem:[%s4694 + $0x3c] sm:$0xf]
      %v4743 = vunpack.c.l.b16 %v4662
      %v4744 = vunpack.c.l.b16 %v4663
      %v4745 = vunpack.c.l.b16 %v4664
      %v4746 = vunpack.c.l.b16 %v4665
      %v4747 = vunpack.c.l.b16 %v4666
      %v4748 = vunpack.c.l.b16 %v4667
      %v4749 = vunpack.c.l.b16 %v4668
      %v4750 = vunpack.c.l.b16 %v4669
      %v4751 = vunpack.c.l.b16 %v4670
      %v4752 = vunpack.c.l.b16 %v4671
      %v4753 = vunpack.c.l.b16 %v4672
      %v4754 = vunpack.c.l.b16 %v4673
      %v4755 = vunpack.c.l.b16 %v4674
      %v4756 = vunpack.c.l.b16 %v4675
      %v4757 = vunpack.c.l.b16 %v4676
      %v4758 = vunpack.c.l.b16 %v4677
      %v4759 = vunpack.c.l.b16 %v4678
      %v4760 = vunpack.c.l.b16 %v4679
      %v4761 = vunpack.c.l.b16 %v4680
      %v4762 = vunpack.c.l.b16 %v4681
      %v4763 = vunpack.c.l.b16 %v4682
      %v4764 = vunpack.c.l.b16 %v4683
      %v4765 = vunpack.c.l.b16 %v4684
      %v4766 = vunpack.c.l.b16 %v4685
      %v4767 = vunpack.c.l.b16 %v4686
      %v4768 = vunpack.c.l.b16 %v4687
      %v4769 = vunpack.c.l.b16 %v4688
      %v4770 = vunpack.c.l.b16 %v4689
      %v4771 = vunpack.c.l.b16 %v4690
      %v4772 = vunpack.c.l.b16 %v4691
      %v4773 = vunpack.c.l.b16 %v4692
      %v4774 = vunpack.c.l.b16 %v4693
      %v4775 = vpack.c.b16 %v4744, %v4743
      %v4776 = vpack.c.b16 %v4746, %v4745
      %v4777 = vpack.c.b16 %v4748, %v4747
      %v4778 = vpack.c.b16 %v4750, %v4749
      %v4779 = vpack.c.b16 %v4752, %v4751
      %v4780 = vpack.c.b16 %v4754, %v4753
      %v4781 = vpack.c.b16 %v4756, %v4755
      %v4782 = vpack.c.b16 %v4758, %v4757
      %v4783 = vpack.c.b16 %v4760, %v4759
      %v4784 = vpack.c.b16 %v4762, %v4761
      %v4785 = vpack.c.b16 %v4764, %v4763
      %v4786 = vpack.c.b16 %v4766, %v4765
      %v4787 = vpack.c.b16 %v4768, %v4767
      %v4788 = vpack.c.b16 %v4770, %v4769
      %v4789 = vpack.c.b16 %v4772, %v4771
      %v4790 = vpack.c.b16 %v4774, %v4773
      %v4823 = vunpack.c.l.b16 %v4695
      %v4824 = vunpack.c.l.b16 %v4696
      %v4825 = vunpack.c.l.b16 %v4697
      %v4826 = vunpack.c.l.b16 %v4698
      %v4827 = vunpack.c.l.b16 %v4699
      %v4828 = vunpack.c.l.b16 %v4700
      %v4829 = vunpack.c.l.b16 %v4701
      %v4830 = vunpack.c.l.b16 %v4702
      %v4831 = vunpack.c.l.b16 %v4703
      %v4832 = vunpack.c.l.b16 %v4704
      %v4833 = vunpack.c.l.b16 %v4705
      %v4834 = vunpack.c.l.b16 %v4706
      %v4835 = vunpack.c.l.b16 %v4707
      %v4836 = vunpack.c.l.b16 %v4708
      %v4837 = vunpack.c.l.b16 %v4709
      %v4838 = vunpack.c.l.b16 %v4710
      %v4839 = vpack.c.b16 %v4824, %v4823
      %v4840 = vpack.c.b16 %v4826, %v4825
      %v4841 = vpack.c.b16 %v4828, %v4827
      %v4842 = vpack.c.b16 %v4830, %v4829
      %v4843 = vpack.c.b16 %v4832, %v4831
      %v4844 = vpack.c.b16 %v4834, %v4833
      %v4845 = vpack.c.b16 %v4836, %v4835
      %v4846 = vpack.c.b16 %v4838, %v4837
      %4855 = vmatprep.subr.bf16.mxu0 0
      %4856 = vmatpush1.bf16.msra.mxu0 %v4846
      %4857 = vmatprep.subr.bf16.mxu0 0
      %4858 = vmatpush1.bf16.msra.mxu0 %v4845
      %4859 = vmatprep.subr.bf16.mxu0 0
      %4860 = vmatpush1.bf16.msra.mxu0 %v4844
      %4861 = vmatprep.subr.bf16.mxu0 0
      %4862 = vmatpush1.bf16.msra.mxu0 %v4843
      %4863 = vmatprep.subr.bf16.mxu0 0
      %4864 = vmatpush1.bf16.msra.mxu0 %v4842
      %4865 = vmatprep.subr.bf16.mxu0 0
      %4866 = vmatpush1.bf16.msra.mxu0 %v4841
      %4867 = vmatprep.subr.bf16.mxu0 0
      %4868 = vmatpush1.bf16.msra.mxu0 %v4840
      %4869 = vmatprep.subr.bf16.mxu0 0
      %4870 = vmatpush1.bf16.msra.mxu0 %v4839
      %4871 = vmatprep.subr.bf16.mxu0 0
      %4872 = vmatpush2.bf16.msra.mxu0 0
      %4873 = vmatprep.subr.bf16.mxu0 0
      %4874 = vmatpush2.bf16.msra.mxu0 0
      %4875 = vmatprep.subr.bf16.mxu0 0
      %4876 = vmatpush2.bf16.msra.mxu0 0
      %4877 = vmatprep.subr.bf16.mxu0 0
      %4878 = vmatpush2.bf16.msra.mxu0 0
      %4879 = vmatprep.subr.bf16.mxu0 0
      %4880 = vmatpush2.bf16.msra.mxu0 0
      %4881 = vmatprep.subr.bf16.mxu0 0
      %4882 = vmatpush2.bf16.msra.mxu0 0
      %4883 = vmatprep.subr.bf16.mxu0 0
      %4884 = vmatpush2.bf16.msra.mxu0 0
      %4885 = vmatprep.subr.bf16.mxu0 0
      %4886 = vmatpush2.bf16.msra.mxu0 0
      %4887 = vmatprep.mubr.bf16.mxu0 0
      %4888 = vmatmul.mubr.bf16.gmra.mxu0 %v4775
      %v4889 = vpop.f32.mrf.mxu0
      %v4890 = vadd.f32 0.0, %v4889
      %v4891 = vpop.f32.mrf.mxu0
      %v4892 = vpop.f32.mrf.mxu0
      %v4893 = vadd.f32 0.0, %v4892
      %v4894 = vpop.f32.mrf.mxu0
      %4895 = vmatprep.mubr.bf16.mxu0 0
      %4896 = vmatmul.mubr.bf16.gmra.mxu0 %v4776
      %v4897 = vpop.f32.mrf.mxu0
      %v4898 = vadd.f32 0.0, %v4897
      %v4899 = vpop.f32.mrf.mxu0
      %v4900 = vpop.f32.mrf.mxu0
      %v4901 = vadd.f32 0.0, %v4900
      %v4902 = vpop.f32.mrf.mxu0
      %4903 = vmatprep.mubr.bf16.mxu0 0
      %4904 = vmatmul.mubr.bf16.gmra.mxu0 %v4777
      %v4905 = vpop.f32.mrf.mxu0
      %v4906 = vadd.f32 0.0, %v4905
      %v4907 = vpop.f32.mrf.mxu0
      %v4908 = vpop.f32.mrf.mxu0
      %v4909 = vadd.f32 0.0, %v4908
      %v4910 = vpop.f32.mrf.mxu0
      %4911 = vmatprep.mubr.bf16.mxu0 0
      %4912 = vmatmul.mubr.bf16.gmra.mxu0 %v4778
      %v4913 = vpop.f32.mrf.mxu0
      %v4914 = vadd.f32 0.0, %v4913
      %v4915 = vpop.f32.mrf.mxu0
      %v4916 = vpop.f32.mrf.mxu0
      %v4917 = vadd.f32 0.0, %v4916
      %v4918 = vpop.f32.mrf.mxu0
      %4919 = vmatprep.mubr.bf16.mxu0 0
      %4920 = vmatmul.mubr.bf16.gmra.mxu0 %v4779
      %v4921 = vpop.f32.mrf.mxu0
      %v4922 = vadd.f32 0.0, %v4921
      %v4923 = vpop.f32.mrf.mxu0
      %v4924 = vpop.f32.mrf.mxu0
      %v4925 = vadd.f32 0.0, %v4924
      %v4926 = vpop.f32.mrf.mxu0
      %4927 = vmatprep.mubr.bf16.mxu0 0
      %4928 = vmatmul.mubr.bf16.gmra.mxu0 %v4780
      %v4929 = vpop.f32.mrf.mxu0
      %v4930 = vadd.f32 0.0, %v4929
      %v4931 = vpop.f32.mrf.mxu0
      %v4932 = vpop.f32.mrf.mxu0
      %v4933 = vadd.f32 0.0, %v4932
      %v4934 = vpop.f32.mrf.mxu0
      %4935 = vmatprep.mubr.bf16.mxu0 0
      %4936 = vmatmul.mubr.bf16.gmra.mxu0 %v4781
      %v4937 = vpop.f32.mrf.mxu0
      %v4938 = vadd.f32 0.0, %v4937
      %v4939 = vpop.f32.mrf.mxu0
      %v4940 = vpop.f32.mrf.mxu0
      %v4941 = vadd.f32 0.0, %v4940
      %v4942 = vpop.f32.mrf.mxu0
      %4943 = vmatprep.mubr.bf16.mxu0 0
      %4944 = vmatmul.mubr.bf16.gmra.mxu0 %v4782
      %v4945 = vpop.f32.mrf.mxu0
      %v4946 = vadd.f32 0.0, %v4945
      %v4947 = vpop.f32.mrf.mxu0
      %v4948 = vpop.f32.mrf.mxu0
      %v4949 = vadd.f32 0.0, %v4948
      %v4950 = vpop.f32.mrf.mxu0
      %4951 = vmatprep.mubr.bf16.mxu0 0
      %4952 = vmatmul.mubr.bf16.gmra.mxu0 %v4783
      %v4953 = vpop.f32.mrf.mxu0
      %v4954 = vadd.f32 0.0, %v4953
      %v4955 = vpop.f32.mrf.mxu0
      %v4956 = vpop.f32.mrf.mxu0
      %v4957 = vadd.f32 0.0, %v4956
      %v4958 = vpop.f32.mrf.mxu0
      %4959 = vmatprep.mubr.bf16.mxu0 0
      %4960 = vmatmul.mubr.bf16.gmra.mxu0 %v4784
      %v4961 = vpop.f32.mrf.mxu0
      %v4962 = vadd.f32 0.0, %v4961
      %v4963 = vpop.f32.mrf.mxu0
      %v4964 = vpop.f32.mrf.mxu0
      %v4965 = vadd.f32 0.0, %v4964
      %v4966 = vpop.f32.mrf.mxu0
      %4967 = vmatprep.mubr.bf16.mxu0 0
      %4968 = vmatmul.mubr.bf16.gmra.mxu0 %v4785
      %v4969 = vpop.f32.mrf.mxu0
      %v4970 = vadd.f32 0.0, %v4969
      %v4971 = vpop.f32.mrf.mxu0
      %v4972 = vpop.f32.mrf.mxu0
      %v4973 = vadd.f32 0.0, %v4972
      %v4974 = vpop.f32.mrf.mxu0
      %4975 = vmatprep.mubr.bf16.mxu0 0
      %4976 = vmatmul.mubr.bf16.gmra.mxu0 %v4786
      %v4977 = vpop.f32.mrf.mxu0
      %v4978 = vadd.f32 0.0, %v4977
      %v4979 = vpop.f32.mrf.mxu0
      %v4980 = vpop.f32.mrf.mxu0
      %v4981 = vadd.f32 0.0, %v4980
      %v4982 = vpop.f32.mrf.mxu0
      %4983 = vmatprep.mubr.bf16.mxu0 0
      %4984 = vmatmul.mubr.bf16.gmra.mxu0 %v4787
      %v4985 = vpop.f32.mrf.mxu0
      %v4986 = vadd.f32 0.0, %v4985
      %v4987 = vpop.f32.mrf.mxu0
      %v4988 = vpop.f32.mrf.mxu0
      %v4989 = vadd.f32 0.0, %v4988
      %v4990 = vpop.f32.mrf.mxu0
      %4991 = vmatprep.mubr.bf16.mxu0 0
      %4992 = vmatmul.mubr.bf16.gmra.mxu0 %v4788
      %v4993 = vpop.f32.mrf.mxu0
      %v4994 = vadd.f32 0.0, %v4993
      %v4995 = vpop.f32.mrf.mxu0
      %v4996 = vpop.f32.mrf.mxu0
      %v4997 = vadd.f32 0.0, %v4996
      %v4998 = vpop.f32.mrf.mxu0
      %4999 = vmatprep.mubr.bf16.mxu0 0
      %5000 = vmatmul.mubr.bf16.gmra.mxu0 %v4789
      %v5001 = vpop.f32.mrf.mxu0
      %v5002 = vadd.f32 0.0, %v5001
      %v5003 = vpop.f32.mrf.mxu0
      %v5004 = vpop.f32.mrf.mxu0
      %v5005 = vadd.f32 0.0, %v5004
      %v5006 = vpop.f32.mrf.mxu0
      %5007 = vmatprep.mubr.bf16.mxu0 0
      %5008 = vmatmul.mubr.bf16.gmra.mxu0 %v4790
      %v5009 = vpop.f32.mrf.mxu0
      %v5010 = vadd.f32 0.0, %v5009
      %v5011 = vpop.f32.mrf.mxu0
      %v5012 = vpop.f32.mrf.mxu0
      %v5013 = vadd.f32 0.0, %v5012
      %v5014 = vpop.f32.mrf.mxu0
      %5015 = vdwg.mxu0
      %v5016 = vadd.f32 %v4629, %v4890
      %v5017 = vadd.f32 %v4630, %v4893
      %v5018 = vadd.f32 %v4631, %v4898
      %v5019 = vadd.f32 %v4632, %v4901
      %v5020 = vadd.f32 %v4633, %v4906
      %v5021 = vadd.f32 %v4634, %v4909
      %v5022 = vadd.f32 %v4635, %v4914
      %v5023 = vadd.f32 %v4636, %v4917
      %v5024 = vadd.f32 %v4637, %v4922
      %v5025 = vadd.f32 %v4638, %v4925
      %v5026 = vadd.f32 %v4639, %v4930
      %v5027 = vadd.f32 %v4640, %v4933
      %v5028 = vadd.f32 %v4641, %v4938
      %v5029 = vadd.f32 %v4642, %v4941
      %v5030 = vadd.f32 %v4643, %v4946
      %v5031 = vadd.f32 %v4644, %v4949
      %v5032 = vadd.f32 %v4645, %v4954
      %v5033 = vadd.f32 %v4646, %v4957
      %v5034 = vadd.f32 %v4647, %v4962
      %v5035 = vadd.f32 %v4648, %v4965
      %v5036 = vadd.f32 %v4649, %v4970
      %v5037 = vadd.f32 %v4650, %v4973
      %v5038 = vadd.f32 %v4651, %v4978
      %v5039 = vadd.f32 %v4652, %v4981
      %v5040 = vadd.f32 %v4653, %v4986
      %v5041 = vadd.f32 %v4654, %v4989
      %v5042 = vadd.f32 %v4655, %v4994
      %v5043 = vadd.f32 %v4656, %v4997
      %v5044 = vadd.f32 %v4657, %v5002
      %v5045 = vadd.f32 %v4658, %v5005
      %v5046 = vadd.f32 %v4659, %v5010
      %v5047 = vadd.f32 %v4660, %v5013
      %v5048 = vld [vmem:[%s4661] sm:$0xf]
      %v5049 = vld [vmem:[%s4661 + $0x4] sm:$0xf]
      %v5050 = vld [vmem:[%s4661 + $0x8] sm:$0x1]
      %v5051 = vld [vmem:[%s4661 + $0xc] sm:$0xf]
      %v5052 = vld [vmem:[%s4661 + $0x10] sm:$0xf]
      %v5053 = vld [vmem:[%s4661 + $0x14] sm:$0x1]
      %v5054 = vld [vmem:[%s4661 + $0x18] sm:$0xf]
      %v5055 = vld [vmem:[%s4661 + $0x1c] sm:$0xf]
      %v5056 = vld [vmem:[%s4661 + $0x20] sm:$0x1]
      %v5057 = vld [vmem:[%s4661 + $0x24] sm:$0xf]
      %v5058 = vld [vmem:[%s4661 + $0x28] sm:$0xf]
      %v5059 = vld [vmem:[%s4661 + $0x2c] sm:$0x1]
      %v5060 = vld [vmem:[%s4661 + $0x30] sm:$0xf]
      %v5061 = vld [vmem:[%s4661 + $0x34] sm:$0xf]
      %v5062 = vld [vmem:[%s4661 + $0x38] sm:$0x1]
      %v5063 = vld [vmem:[%s4661 + $0x3c] sm:$0xf]
      %v5064 = vld [vmem:[%s4661 + $0x40] sm:$0xf]
      %v5065 = vld [vmem:[%s4661 + $0x44] sm:$0x1]
      %v5066 = vld [vmem:[%s4661 + $0x48] sm:$0xf]
      %v5067 = vld [vmem:[%s4661 + $0x4c] sm:$0xf]
      %v5068 = vld [vmem:[%s4661 + $0x50] sm:$0x1]
      %v5069 = vld [vmem:[%s4661 + $0x54] sm:$0xf]
      %v5070 = vld [vmem:[%s4661 + $0x58] sm:$0xf]
      %v5071 = vld [vmem:[%s4661 + $0x5c] sm:$0x1]
      %v5072 = vld [vmem:[%s4661 + $0x60] sm:$0xf]
      %v5073 = vld [vmem:[%s4661 + $0x64] sm:$0xf]
      %v5074 = vld [vmem:[%s4661 + $0x68] sm:$0x1]
      %v5075 = vld [vmem:[%s4661 + $0x6c] sm:$0xf]
      %v5076 = vld [vmem:[%s4661 + $0x70] sm:$0xf]
      %v5077 = vld [vmem:[%s4661 + $0x74] sm:$0x1]
      %v5078 = vld [vmem:[%s4661 + $0x78] sm:$0xf]
      %v5079 = vld [vmem:[%s4661 + $0x7c] sm:$0xf]
      %v5080 = vld [vmem:[%s4661 + $0x80] sm:$0x1]
      %v5081 = vld [vmem:[%s4661 + $0x84] sm:$0xf]
      %v5082 = vld [vmem:[%s4661 + $0x88] sm:$0xf]
      %v5083 = vld [vmem:[%s4661 + $0x8c] sm:$0x1]
      %v5084 = vld [vmem:[%s4661 + $0x90] sm:$0xf]
      %v5085 = vld [vmem:[%s4661 + $0x94] sm:$0xf]
      %v5086 = vld [vmem:[%s4661 + $0x98] sm:$0x1]
      %v5087 = vld [vmem:[%s4661 + $0x9c] sm:$0xf]
      %v5088 = vld [vmem:[%s4661 + $0xa0] sm:$0xf]
      %v5089 = vld [vmem:[%s4661 + $0xa4] sm:$0x1]
      %v5090 = vld [vmem:[%s4661 + $0xa8] sm:$0xf]
      %v5091 = vld [vmem:[%s4661 + $0xac] sm:$0xf]
      %v5092 = vld [vmem:[%s4661 + $0xb0] sm:$0x1]
      %v5093 = vld [vmem:[%s4661 + $0xb4] sm:$0xf]
      %v5094 = vld [vmem:[%s4661 + $0xb8] sm:$0xf]
      %v5095 = vld [vmem:[%s4661 + $0xbc] sm:$0x1]
      %v5097 = vshrl.u32 %v5048, 16
      %v5099 = vrot.slane %v5097, 4
      %v5100 = vshll.u32 %v5048, 16
      %v5102 = vrot.slane %v5100, 5
      %v5103 = vor.u32 %v5099, %v5102
      %v5104 = vrot.slane %v5103, 4
      %v5106 = vshll.u32 %v5049, 16
      %v5108 = vrot.slane %v5106, 5
      %v5109 = vsel %vm1815, %v5104, %v5108
      %v5110 = vshrl.u32 %v5049, 16
      %v5112 = vrot.slane %v5110, 4
      %v5113 = vor.u32 %v5112, %v5108
      %v5114 = vrot.slane %v5113, 4
      %v5116 = vshll.u32 %v5050, 16
      %v5118 = vrot.slane %v5116, 5
      %v5119 = vsel %vm1815, %v5114, %v5118
      %v5121 = vshrl.u32 %v5051, 16
      %v5123 = vrot.slane %v5121, 4
      %v5124 = vshll.u32 %v5051, 16
      %v5126 = vrot.slane %v5124, 5
      %v5127 = vor.u32 %v5123, %v5126
      %v5128 = vrot.slane %v5127, 4
      %v5130 = vshll.u32 %v5052, 16
      %v5132 = vrot.slane %v5130, 5
      %v5133 = vsel %vm1815, %v5128, %v5132
      %v5134 = vshrl.u32 %v5052, 16
      %v5136 = vrot.slane %v5134, 4
      %v5137 = vor.u32 %v5136, %v5132
      %v5138 = vrot.slane %v5137, 4
      %v5140 = vshll.u32 %v5053, 16
      %v5142 = vrot.slane %v5140, 5
      %v5143 = vsel %vm1815, %v5138, %v5142
      %v5145 = vshrl.u32 %v5054, 16
      %v5147 = vrot.slane %v5145, 4
      %v5148 = vshll.u32 %v5054, 16
      %v5150 = vrot.slane %v5148, 5
      %v5151 = vor.u32 %v5147, %v5150
      %v5152 = vrot.slane %v5151, 4
      %v5154 = vshll.u32 %v5055, 16
      %v5156 = vrot.slane %v5154, 5
      %v5157 = vsel %vm1815, %v5152, %v5156
      %v5158 = vshrl.u32 %v5055, 16
      %v5160 = vrot.slane %v5158, 4
      %v5161 = vor.u32 %v5160, %v5156
      %v5162 = vrot.slane %v5161, 4
      %v5164 = vshll.u32 %v5056, 16
      %v5166 = vrot.slane %v5164, 5
      %v5167 = vsel %vm1815, %v5162, %v5166
      %v5169 = vshrl.u32 %v5057, 16
      %v5171 = vrot.slane %v5169, 4
      %v5172 = vshll.u32 %v5057, 16
      %v5174 = vrot.slane %v5172, 5
      %v5175 = vor.u32 %v5171, %v5174
      %v5176 = vrot.slane %v5175, 4
      %v5178 = vshll.u32 %v5058, 16
      %v5180 = vrot.slane %v5178, 5
      %v5181 = vsel %vm1815, %v5176, %v5180
      %v5182 = vshrl.u32 %v5058, 16
      %v5184 = vrot.slane %v5182, 4
      %v5185 = vor.u32 %v5184, %v5180
      %v5186 = vrot.slane %v5185, 4
      %v5188 = vshll.u32 %v5059, 16
      %v5190 = vrot.slane %v5188, 5
      %v5191 = vsel %vm1815, %v5186, %v5190
      %v5193 = vshrl.u32 %v5060, 16
      %v5195 = vrot.slane %v5193, 4
      %v5196 = vshll.u32 %v5060, 16
      %v5198 = vrot.slane %v5196, 5
      %v5199 = vor.u32 %v5195, %v5198
      %v5200 = vrot.slane %v5199, 4
      %v5202 = vshll.u32 %v5061, 16
      %v5204 = vrot.slane %v5202, 5
      %v5205 = vsel %vm1815, %v5200, %v5204
      %v5206 = vshrl.u32 %v5061, 16
      %v5208 = vrot.slane %v5206, 4
      %v5209 = vor.u32 %v5208, %v5204
      %v5210 = vrot.slane %v5209, 4
      %v5212 = vshll.u32 %v5062, 16
      %v5214 = vrot.slane %v5212, 5
      %v5215 = vsel %vm1815, %v5210, %v5214
      %v5217 = vshrl.u32 %v5063, 16
      %v5219 = vrot.slane %v5217, 4
      %v5220 = vshll.u32 %v5063, 16
      %v5222 = vrot.slane %v5220, 5
      %v5223 = vor.u32 %v5219, %v5222
      %v5224 = vrot.slane %v5223, 4
      %v5226 = vshll.u32 %v5064, 16
      %v5228 = vrot.slane %v5226, 5
      %v5229 = vsel %vm1815, %v5224, %v5228
      %v5230 = vshrl.u32 %v5064, 16
      %v5232 = vrot.slane %v5230, 4
      %v5233 = vor.u32 %v5232, %v5228
      %v5234 = vrot.slane %v5233, 4
      %v5236 = vshll.u32 %v5065, 16
      %v5238 = vrot.slane %v5236, 5
      %v5239 = vsel %vm1815, %v5234, %v5238
      %v5241 = vshrl.u32 %v5066, 16
      %v5243 = vrot.slane %v5241, 4
      %v5244 = vshll.u32 %v5066, 16
      %v5246 = vrot.slane %v5244, 5
      %v5247 = vor.u32 %v5243, %v5246
      %v5248 = vrot.slane %v5247, 4
      %v5250 = vshll.u32 %v5067, 16
      %v5252 = vrot.slane %v5250, 5
      %v5253 = vsel %vm1815, %v5248, %v5252
      %v5254 = vshrl.u32 %v5067, 16
      %v5256 = vrot.slane %v5254, 4
      %v5257 = vor.u32 %v5256, %v5252
      %v5258 = vrot.slane %v5257, 4
      %v5260 = vshll.u32 %v5068, 16
      %v5262 = vrot.slane %v5260, 5
      %v5263 = vsel %vm1815, %v5258, %v5262
      %v5265 = vshrl.u32 %v5069, 16
      %v5267 = vrot.slane %v5265, 4
      %v5268 = vshll.u32 %v5069, 16
      %v5270 = vrot.slane %v5268, 5
      %v5271 = vor.u32 %v5267, %v5270
      %v5272 = vrot.slane %v5271, 4
      %v5274 = vshll.u32 %v5070, 16
      %v5276 = vrot.slane %v5274, 5
      %v5277 = vsel %vm1815, %v5272, %v5276
      %v5278 = vshrl.u32 %v5070, 16
      %v5280 = vrot.slane %v5278, 4
      %v5281 = vor.u32 %v5280, %v5276
      %v5282 = vrot.slane %v5281, 4
      %v5284 = vshll.u32 %v5071, 16
      %v5286 = vrot.slane %v5284, 5
      %v5287 = vsel %vm1815, %v5282, %v5286
      %v5289 = vshrl.u32 %v5072, 16
      %v5291 = vrot.slane %v5289, 4
      %v5292 = vshll.u32 %v5072, 16
      %v5294 = vrot.slane %v5292, 5
      %v5295 = vor.u32 %v5291, %v5294
      %v5296 = vrot.slane %v5295, 4
      %v5298 = vshll.u32 %v5073, 16
      %v5300 = vrot.slane %v5298, 5
      %v5301 = vsel %vm1815, %v5296, %v5300
      %v5302 = vshrl.u32 %v5073, 16
      %v5304 = vrot.slane %v5302, 4
      %v5305 = vor.u32 %v5304, %v5300
      %v5306 = vrot.slane %v5305, 4
      %v5308 = vshll.u32 %v5074, 16
      %v5310 = vrot.slane %v5308, 5
      %v5311 = vsel %vm1815, %v5306, %v5310
      %v5313 = vshrl.u32 %v5075, 16
      %v5315 = vrot.slane %v5313, 4
      %v5316 = vshll.u32 %v5075, 16
      %v5318 = vrot.slane %v5316, 5
      %v5319 = vor.u32 %v5315, %v5318
      %v5320 = vrot.slane %v5319, 4
      %v5322 = vshll.u32 %v5076, 16
      %v5324 = vrot.slane %v5322, 5
      %v5325 = vsel %vm1815, %v5320, %v5324
      %v5326 = vshrl.u32 %v5076, 16
      %v5328 = vrot.slane %v5326, 4
      %v5329 = vor.u32 %v5328, %v5324
      %v5330 = vrot.slane %v5329, 4
      %v5332 = vshll.u32 %v5077, 16
      %v5334 = vrot.slane %v5332, 5
      %v5335 = vsel %vm1815, %v5330, %v5334
      %v5337 = vshrl.u32 %v5078, 16
      %v5339 = vrot.slane %v5337, 4
      %v5340 = vshll.u32 %v5078, 16
      %v5342 = vrot.slane %v5340, 5
      %v5343 = vor.u32 %v5339, %v5342
      %v5344 = vrot.slane %v5343, 4
      %v5346 = vshll.u32 %v5079, 16
      %v5348 = vrot.slane %v5346, 5
      %v5349 = vsel %vm1815, %v5344, %v5348
      %v5350 = vshrl.u32 %v5079, 16
      %v5352 = vrot.slane %v5350, 4
      %v5353 = vor.u32 %v5352, %v5348
      %v5354 = vrot.slane %v5353, 4
      %v5356 = vshll.u32 %v5080, 16
      %v5358 = vrot.slane %v5356, 5
      %v5359 = vsel %vm1815, %v5354, %v5358
      %v5361 = vshrl.u32 %v5081, 16
      %v5363 = vrot.slane %v5361, 4
      %v5364 = vshll.u32 %v5081, 16
      %v5366 = vrot.slane %v5364, 5
      %v5367 = vor.u32 %v5363, %v5366
      %v5368 = vrot.slane %v5367, 4
      %v5370 = vshll.u32 %v5082, 16
      %v5372 = vrot.slane %v5370, 5
      %v5373 = vsel %vm1815, %v5368, %v5372
      %v5374 = vshrl.u32 %v5082, 16
      %v5376 = vrot.slane %v5374, 4
      %v5377 = vor.u32 %v5376, %v5372
      %v5378 = vrot.slane %v5377, 4
      %v5380 = vshll.u32 %v5083, 16
      %v5382 = vrot.slane %v5380, 5
      %v5383 = vsel %vm1815, %v5378, %v5382
      %v5385 = vshrl.u32 %v5084, 16
      %v5387 = vrot.slane %v5385, 4
      %v5388 = vshll.u32 %v5084, 16
      %v5390 = vrot.slane %v5388, 5
      %v5391 = vor.u32 %v5387, %v5390
      %v5392 = vrot.slane %v5391, 4
      %v5394 = vshll.u32 %v5085, 16
      %v5396 = vrot.slane %v5394, 5
      %v5397 = vsel %vm1815, %v5392, %v5396
      %v5398 = vshrl.u32 %v5085, 16
      %v5400 = vrot.slane %v5398, 4
      %v5401 = vor.u32 %v5400, %v5396
      %v5402 = vrot.slane %v5401, 4
      %v5404 = vshll.u32 %v5086, 16
      %v5406 = vrot.slane %v5404, 5
      %v5407 = vsel %vm1815, %v5402, %v5406
      %v5409 = vshrl.u32 %v5087, 16
      %v5411 = vrot.slane %v5409, 4
      %v5412 = vshll.u32 %v5087, 16
      %v5414 = vrot.slane %v5412, 5
      %v5415 = vor.u32 %v5411, %v5414
      %v5416 = vrot.slane %v5415, 4
      %v5418 = vshll.u32 %v5088, 16
      %v5420 = vrot.slane %v5418, 5
      %v5421 = vsel %vm1815, %v5416, %v5420
      %v5422 = vshrl.u32 %v5088, 16
      %v5424 = vrot.slane %v5422, 4
      %v5425 = vor.u32 %v5424, %v5420
      %v5426 = vrot.slane %v5425, 4
      %v5428 = vshll.u32 %v5089, 16
      %v5430 = vrot.slane %v5428, 5
      %v5431 = vsel %vm1815, %v5426, %v5430
      %v5433 = vshrl.u32 %v5090, 16
      %v5435 = vrot.slane %v5433, 4
      %v5436 = vshll.u32 %v5090, 16
      %v5438 = vrot.slane %v5436, 5
      %v5439 = vor.u32 %v5435, %v5438
      %v5440 = vrot.slane %v5439, 4
      %v5442 = vshll.u32 %v5091, 16
      %v5444 = vrot.slane %v5442, 5
      %v5445 = vsel %vm1815, %v5440, %v5444
      %v5446 = vshrl.u32 %v5091, 16
      %v5448 = vrot.slane %v5446, 4
      %v5449 = vor.u32 %v5448, %v5444
      %v5450 = vrot.slane %v5449, 4
      %v5452 = vshll.u32 %v5092, 16
      %v5454 = vrot.slane %v5452, 5
      %v5455 = vsel %vm1815, %v5450, %v5454
      %v5457 = vshrl.u32 %v5093, 16
      %v5459 = vrot.slane %v5457, 4
      %v5460 = vshll.u32 %v5093, 16
      %v5462 = vrot.slane %v5460, 5
      %v5463 = vor.u32 %v5459, %v5462
      %v5464 = vrot.slane %v5463, 4
      %v5466 = vshll.u32 %v5094, 16
      %v5468 = vrot.slane %v5466, 5
      %v5469 = vsel %vm1815, %v5464, %v5468
      %v5470 = vshrl.u32 %v5094, 16
      %v5472 = vrot.slane %v5470, 4
      %v5473 = vor.u32 %v5472, %v5468
      %v5474 = vrot.slane %v5473, 4
      %v5476 = vshll.u32 %v5095, 16
      %v5478 = vrot.slane %v5476, 5
      %v5479 = vsel %vm1815, %v5474, %v5478
      %s5480 = scalar_lea.vmem %s3, 448
      %v5481 = vld [vmem:[%s5480] sm:$0xf]
      %v5482 = vld [vmem:[%s5480 + $0x4] sm:$0xf]
      %v5483 = vld [vmem:[%s5480 + $0x8] sm:$0xf]
      %v5484 = vld [vmem:[%s5480 + $0xc] sm:$0xf]
      %v5485 = vld [vmem:[%s5480 + $0x10] sm:$0xf]
      %v5486 = vld [vmem:[%s5480 + $0x14] sm:$0xf]
      %v5487 = vld [vmem:[%s5480 + $0x18] sm:$0xf]
      %v5488 = vld [vmem:[%s5480 + $0x1c] sm:$0xf]
      %v5489 = vld [vmem:[%s5480 + $0x20] sm:$0xf]
      %v5490 = vld [vmem:[%s5480 + $0x24] sm:$0xf]
      %v5491 = vld [vmem:[%s5480 + $0x28] sm:$0xf]
      %v5492 = vld [vmem:[%s5480 + $0x2c] sm:$0xf]
      %v5493 = vld [vmem:[%s5480 + $0x30] sm:$0xf]
      %v5494 = vld [vmem:[%s5480 + $0x34] sm:$0xf]
      %v5495 = vld [vmem:[%s5480 + $0x38] sm:$0xf]
      %v5496 = vld [vmem:[%s5480 + $0x3c] sm:$0xf]
      %v5497 = vunpack.c.l.b16 %v5109
      %v5498 = vunpack.c.l.b16 %v5119
      %v5499 = vunpack.c.l.b16 %v5133
      %v5500 = vunpack.c.l.b16 %v5143
      %v5501 = vunpack.c.l.b16 %v5157
      %v5502 = vunpack.c.l.b16 %v5167
      %v5503 = vunpack.c.l.b16 %v5181
      %v5504 = vunpack.c.l.b16 %v5191
      %v5505 = vunpack.c.l.b16 %v5205
      %v5506 = vunpack.c.l.b16 %v5215
      %v5507 = vunpack.c.l.b16 %v5229
      %v5508 = vunpack.c.l.b16 %v5239
      %v5509 = vunpack.c.l.b16 %v5253
      %v5510 = vunpack.c.l.b16 %v5263
      %v5511 = vunpack.c.l.b16 %v5277
      %v5512 = vunpack.c.l.b16 %v5287
      %v5513 = vunpack.c.l.b16 %v5301
      %v5514 = vunpack.c.l.b16 %v5311
      %v5515 = vunpack.c.l.b16 %v5325
      %v5516 = vunpack.c.l.b16 %v5335
      %v5517 = vunpack.c.l.b16 %v5349
      %v5518 = vunpack.c.l.b16 %v5359
      %v5519 = vunpack.c.l.b16 %v5373
      %v5520 = vunpack.c.l.b16 %v5383
      %v5521 = vunpack.c.l.b16 %v5397
      %v5522 = vunpack.c.l.b16 %v5407
      %v5523 = vunpack.c.l.b16 %v5421
      %v5524 = vunpack.c.l.b16 %v5431
      %v5525 = vunpack.c.l.b16 %v5445
      %v5526 = vunpack.c.l.b16 %v5455
      %v5527 = vunpack.c.l.b16 %v5469
      %v5528 = vunpack.c.l.b16 %v5479
      %v5529 = vpack.c.b16 %v5498, %v5497
      %v5530 = vpack.c.b16 %v5500, %v5499
      %v5531 = vpack.c.b16 %v5502, %v5501
      %v5532 = vpack.c.b16 %v5504, %v5503
      %v5533 = vpack.c.b16 %v5506, %v5505
      %v5534 = vpack.c.b16 %v5508, %v5507
      %v5535 = vpack.c.b16 %v5510, %v5509
      %v5536 = vpack.c.b16 %v5512, %v5511
      %v5537 = vpack.c.b16 %v5514, %v5513
      %v5538 = vpack.c.b16 %v5516, %v5515
      %v5539 = vpack.c.b16 %v5518, %v5517
      %v5540 = vpack.c.b16 %v5520, %v5519
      %v5541 = vpack.c.b16 %v5522, %v5521
      %v5542 = vpack.c.b16 %v5524, %v5523
      %v5543 = vpack.c.b16 %v5526, %v5525
      %v5544 = vpack.c.b16 %v5528, %v5527
      %v5577 = vunpack.c.l.b16 %v5481
      %v5578 = vunpack.c.l.b16 %v5482
      %v5579 = vunpack.c.l.b16 %v5483
      %v5580 = vunpack.c.l.b16 %v5484
      %v5581 = vunpack.c.l.b16 %v5485
      %v5582 = vunpack.c.l.b16 %v5486
      %v5583 = vunpack.c.l.b16 %v5487
      %v5584 = vunpack.c.l.b16 %v5488
      %v5585 = vunpack.c.l.b16 %v5489
      %v5586 = vunpack.c.l.b16 %v5490
      %v5587 = vunpack.c.l.b16 %v5491
      %v5588 = vunpack.c.l.b16 %v5492
      %v5589 = vunpack.c.l.b16 %v5493
      %v5590 = vunpack.c.l.b16 %v5494
      %v5591 = vunpack.c.l.b16 %v5495
      %v5592 = vunpack.c.l.b16 %v5496
      %v5593 = vpack.c.b16 %v5578, %v5577
      %v5594 = vpack.c.b16 %v5580, %v5579
      %v5595 = vpack.c.b16 %v5582, %v5581
      %v5596 = vpack.c.b16 %v5584, %v5583
      %v5597 = vpack.c.b16 %v5586, %v5585
      %v5598 = vpack.c.b16 %v5588, %v5587
      %v5599 = vpack.c.b16 %v5590, %v5589
      %v5600 = vpack.c.b16 %v5592, %v5591
      %5609 = vmatprep.subr.bf16.mxu0 0
      %5610 = vmatpush1.bf16.msra.mxu0 %v5600
      %5611 = vmatprep.subr.bf16.mxu0 0
      %5612 = vmatpush1.bf16.msra.mxu0 %v5599
      %5613 = vmatprep.subr.bf16.mxu0 0
      %5614 = vmatpush1.bf16.msra.mxu0 %v5598
      %5615 = vmatprep.subr.bf16.mxu0 0
      %5616 = vmatpush1.bf16.msra.mxu0 %v5597
      %5617 = vmatprep.subr.bf16.mxu0 0
      %5618 = vmatpush1.bf16.msra.mxu0 %v5596
      %5619 = vmatprep.subr.bf16.mxu0 0
      %5620 = vmatpush1.bf16.msra.mxu0 %v5595
      %5621 = vmatprep.subr.bf16.mxu0 0
      %5622 = vmatpush1.bf16.msra.mxu0 %v5594
      %5623 = vmatprep.subr.bf16.mxu0 0
      %5624 = vmatpush1.bf16.msra.mxu0 %v5593
      %5625 = vmatprep.subr.bf16.mxu0 0
      %5626 = vmatpush2.bf16.msra.mxu0 0
      %5627 = vmatprep.subr.bf16.mxu0 0
      %5628 = vmatpush2.bf16.msra.mxu0 0
      %5629 = vmatprep.subr.bf16.mxu0 0
      %5630 = vmatpush2.bf16.msra.mxu0 0
      %5631 = vmatprep.subr.bf16.mxu0 0
      %5632 = vmatpush2.bf16.msra.mxu0 0
      %5633 = vmatprep.subr.bf16.mxu0 0
      %5634 = vmatpush2.bf16.msra.mxu0 0
      %5635 = vmatprep.subr.bf16.mxu0 0
      %5636 = vmatpush2.bf16.msra.mxu0 0
      %5637 = vmatprep.subr.bf16.mxu0 0
      %5638 = vmatpush2.bf16.msra.mxu0 0
      %5639 = vmatprep.subr.bf16.mxu0 0
      %5640 = vmatpush2.bf16.msra.mxu0 0
      %5641 = vmatprep.mubr.bf16.mxu0 0
      %5642 = vmatmul.mubr.bf16.gmra.mxu0 %v5529
      %v5643 = vpop.f32.mrf.mxu0
      %v5644 = vadd.f32 0.0, %v5643
      %v5645 = vpop.f32.mrf.mxu0
      %v5646 = vpop.f32.mrf.mxu0
      %v5647 = vadd.f32 0.0, %v5646
      %v5648 = vpop.f32.mrf.mxu0
      %5649 = vmatprep.mubr.bf16.mxu0 0
      %5650 = vmatmul.mubr.bf16.gmra.mxu0 %v5530
      %v5651 = vpop.f32.mrf.mxu0
      %v5652 = vadd.f32 0.0, %v5651
      %v5653 = vpop.f32.mrf.mxu0
      %v5654 = vpop.f32.mrf.mxu0
      %v5655 = vadd.f32 0.0, %v5654
      %v5656 = vpop.f32.mrf.mxu0
      %5657 = vmatprep.mubr.bf16.mxu0 0
      %5658 = vmatmul.mubr.bf16.gmra.mxu0 %v5531
      %v5659 = vpop.f32.mrf.mxu0
      %v5660 = vadd.f32 0.0, %v5659
      %v5661 = vpop.f32.mrf.mxu0
      %v5662 = vpop.f32.mrf.mxu0
      %v5663 = vadd.f32 0.0, %v5662
      %v5664 = vpop.f32.mrf.mxu0
      %5665 = vmatprep.mubr.bf16.mxu0 0
      %5666 = vmatmul.mubr.bf16.gmra.mxu0 %v5532
      %v5667 = vpop.f32.mrf.mxu0
      %v5668 = vadd.f32 0.0, %v5667
      %v5669 = vpop.f32.mrf.mxu0
      %v5670 = vpop.f32.mrf.mxu0
      %v5671 = vadd.f32 0.0, %v5670
      %v5672 = vpop.f32.mrf.mxu0
      %5673 = vmatprep.mubr.bf16.mxu0 0
      %5674 = vmatmul.mubr.bf16.gmra.mxu0 %v5533
      %v5675 = vpop.f32.mrf.mxu0
      %v5676 = vadd.f32 0.0, %v5675
      %v5677 = vpop.f32.mrf.mxu0
      %v5678 = vpop.f32.mrf.mxu0
      %v5679 = vadd.f32 0.0, %v5678
      %v5680 = vpop.f32.mrf.mxu0
      %5681 = vmatprep.mubr.bf16.mxu0 0
      %5682 = vmatmul.mubr.bf16.gmra.mxu0 %v5534
      %v5683 = vpop.f32.mrf.mxu0
      %v5684 = vadd.f32 0.0, %v5683
      %v5685 = vpop.f32.mrf.mxu0
      %v5686 = vpop.f32.mrf.mxu0
      %v5687 = vadd.f32 0.0, %v5686
      %v5688 = vpop.f32.mrf.mxu0
      %5689 = vmatprep.mubr.bf16.mxu0 0
      %5690 = vmatmul.mubr.bf16.gmra.mxu0 %v5535
      %v5691 = vpop.f32.mrf.mxu0
      %v5692 = vadd.f32 0.0, %v5691
      %v5693 = vpop.f32.mrf.mxu0
      %v5694 = vpop.f32.mrf.mxu0
      %v5695 = vadd.f32 0.0, %v5694
      %v5696 = vpop.f32.mrf.mxu0
      %5697 = vmatprep.mubr.bf16.mxu0 0
      %5698 = vmatmul.mubr.bf16.gmra.mxu0 %v5536
      %v5699 = vpop.f32.mrf.mxu0
      %v5700 = vadd.f32 0.0, %v5699
      %v5701 = vpop.f32.mrf.mxu0
      %v5702 = vpop.f32.mrf.mxu0
      %v5703 = vadd.f32 0.0, %v5702
      %v5704 = vpop.f32.mrf.mxu0
      %5705 = vmatprep.mubr.bf16.mxu0 0
      %5706 = vmatmul.mubr.bf16.gmra.mxu0 %v5537
      %v5707 = vpop.f32.mrf.mxu0
      %v5708 = vadd.f32 0.0, %v5707
      %v5709 = vpop.f32.mrf.mxu0
      %v5710 = vpop.f32.mrf.mxu0
      %v5711 = vadd.f32 0.0, %v5710
      %v5712 = vpop.f32.mrf.mxu0
      %5713 = vmatprep.mubr.bf16.mxu0 0
      %5714 = vmatmul.mubr.bf16.gmra.mxu0 %v5538
      %v5715 = vpop.f32.mrf.mxu0
      %v5716 = vadd.f32 0.0, %v5715
      %v5717 = vpop.f32.mrf.mxu0
      %v5718 = vpop.f32.mrf.mxu0
      %v5719 = vadd.f32 0.0, %v5718
      %v5720 = vpop.f32.mrf.mxu0
      %5721 = vmatprep.mubr.bf16.mxu0 0
      %5722 = vmatmul.mubr.bf16.gmra.mxu0 %v5539
      %v5723 = vpop.f32.mrf.mxu0
      %v5724 = vadd.f32 0.0, %v5723
      %v5725 = vpop.f32.mrf.mxu0
      %v5726 = vpop.f32.mrf.mxu0
      %v5727 = vadd.f32 0.0, %v5726
      %v5728 = vpop.f32.mrf.mxu0
      %5729 = vmatprep.mubr.bf16.mxu0 0
      %5730 = vmatmul.mubr.bf16.gmra.mxu0 %v5540
      %v5731 = vpop.f32.mrf.mxu0
      %v5732 = vadd.f32 0.0, %v5731
      %v5733 = vpop.f32.mrf.mxu0
      %v5734 = vpop.f32.mrf.mxu0
      %v5735 = vadd.f32 0.0, %v5734
      %v5736 = vpop.f32.mrf.mxu0
      %5737 = vmatprep.mubr.bf16.mxu0 0
      %5738 = vmatmul.mubr.bf16.gmra.mxu0 %v5541
      %v5739 = vpop.f32.mrf.mxu0
      %v5740 = vadd.f32 0.0, %v5739
      %v5741 = vpop.f32.mrf.mxu0
      %v5742 = vpop.f32.mrf.mxu0
      %v5743 = vadd.f32 0.0, %v5742
      %v5744 = vpop.f32.mrf.mxu0
      %5745 = vmatprep.mubr.bf16.mxu0 0
      %5746 = vmatmul.mubr.bf16.gmra.mxu0 %v5542
      %v5747 = vpop.f32.mrf.mxu0
      %v5748 = vadd.f32 0.0, %v5747
      %v5749 = vpop.f32.mrf.mxu0
      %v5750 = vpop.f32.mrf.mxu0
      %v5751 = vadd.f32 0.0, %v5750
      %v5752 = vpop.f32.mrf.mxu0
      %5753 = vmatprep.mubr.bf16.mxu0 0
      %5754 = vmatmul.mubr.bf16.gmra.mxu0 %v5543
      %v5755 = vpop.f32.mrf.mxu0
      %v5756 = vadd.f32 0.0, %v5755
      %v5757 = vpop.f32.mrf.mxu0
      %v5758 = vpop.f32.mrf.mxu0
      %v5759 = vadd.f32 0.0, %v5758
      %v5760 = vpop.f32.mrf.mxu0
      %5761 = vmatprep.mubr.bf16.mxu0 0
      %5762 = vmatmul.mubr.bf16.gmra.mxu0 %v5544
      %v5763 = vpop.f32.mrf.mxu0
      %v5764 = vadd.f32 0.0, %v5763
      %v5765 = vpop.f32.mrf.mxu0
      %v5766 = vpop.f32.mrf.mxu0
      %v5767 = vadd.f32 0.0, %v5766
      %v5768 = vpop.f32.mrf.mxu0
      %5769 = vdwg.mxu0
      %v5770 = vadd.f32 %v5016, %v5644
      %v5771 = vadd.f32 %v5017, %v5647
      %v5772 = vadd.f32 %v5018, %v5652
      %v5773 = vadd.f32 %v5019, %v5655
      %v5774 = vadd.f32 %v5020, %v5660
      %v5775 = vadd.f32 %v5021, %v5663
      %v5776 = vadd.f32 %v5022, %v5668
      %v5777 = vadd.f32 %v5023, %v5671
      %v5778 = vadd.f32 %v5024, %v5676
      %v5779 = vadd.f32 %v5025, %v5679
      %v5780 = vadd.f32 %v5026, %v5684
      %v5781 = vadd.f32 %v5027, %v5687
      %v5782 = vadd.f32 %v5028, %v5692
      %v5783 = vadd.f32 %v5029, %v5695
      %v5784 = vadd.f32 %v5030, %v5700
      %v5785 = vadd.f32 %v5031, %v5703
      %v5786 = vadd.f32 %v5032, %v5708
      %v5787 = vadd.f32 %v5033, %v5711
      %v5788 = vadd.f32 %v5034, %v5716
      %v5789 = vadd.f32 %v5035, %v5719
      %v5790 = vadd.f32 %v5036, %v5724
      %v5791 = vadd.f32 %v5037, %v5727
      %v5792 = vadd.f32 %v5038, %v5732
      %v5793 = vadd.f32 %v5039, %v5735
      %v5794 = vadd.f32 %v5040, %v5740
      %v5795 = vadd.f32 %v5041, %v5743
      %v5796 = vadd.f32 %v5042, %v5748
      %v5797 = vadd.f32 %v5043, %v5751
      %v5798 = vadd.f32 %v5044, %v5756
      %v5799 = vadd.f32 %v5045, %v5759
      %v5800 = vadd.f32 %v5046, %v5764
      %v5801 = vadd.f32 %v5047, %v5767
      %v5802 = vld [vmem:[%s4661] sm:$0xe]
      %v5803 = vld [vmem:[%s4661 + $0xc] sm:$0xe]
      %v5804 = vld [vmem:[%s4661 + $0x18] sm:$0xe]
      %v5805 = vld [vmem:[%s4661 + $0x24] sm:$0xe]
      %v5806 = vld [vmem:[%s4661 + $0x30] sm:$0xe]
      %v5807 = vld [vmem:[%s4661 + $0x3c] sm:$0xe]
      %v5808 = vld [vmem:[%s4661 + $0x48] sm:$0xe]
      %v5809 = vld [vmem:[%s4661 + $0x54] sm:$0xe]
      %v5810 = vld [vmem:[%s4661 + $0x60] sm:$0xe]
      %v5811 = vld [vmem:[%s4661 + $0x6c] sm:$0xe]
      %v5812 = vld [vmem:[%s4661 + $0x78] sm:$0xe]
      %v5813 = vld [vmem:[%s4661 + $0x84] sm:$0xe]
      %v5814 = vld [vmem:[%s4661 + $0x90] sm:$0xe]
      %v5815 = vld [vmem:[%s4661 + $0x9c] sm:$0xe]
      %v5816 = vld [vmem:[%s4661 + $0xa8] sm:$0xe]
      %v5817 = vld [vmem:[%s4661 + $0xb4] sm:$0xe]
      %v5866 = vrot.slane %v5802, 5
      %v5867 = vrot.slane %v5866, 4
      %v5868 = vrot.slane %v5049, 5
      %v5869 = vsel %vm2588, %v5867, %v5868
      %v5870 = vrot.slane %v5868, 4
      %v5871 = vrot.slane %v5050, 5
      %v5872 = vsel %vm2588, %v5870, %v5871
      %v5873 = vrot.slane %v5803, 5
      %v5874 = vrot.slane %v5873, 4
      %v5875 = vrot.slane %v5052, 5
      %v5876 = vsel %vm2588, %v5874, %v5875
      %v5877 = vrot.slane %v5875, 4
      %v5878 = vrot.slane %v5053, 5
      %v5879 = vsel %vm2588, %v5877, %v5878
      %v5880 = vrot.slane %v5804, 5
      %v5881 = vrot.slane %v5880, 4
      %v5882 = vrot.slane %v5055, 5
      %v5883 = vsel %vm2588, %v5881, %v5882
      %v5884 = vrot.slane %v5882, 4
      %v5885 = vrot.slane %v5056, 5
      %v5886 = vsel %vm2588, %v5884, %v5885
      %v5887 = vrot.slane %v5805, 5
      %v5888 = vrot.slane %v5887, 4
      %v5889 = vrot.slane %v5058, 5
      %v5890 = vsel %vm2588, %v5888, %v5889
      %v5891 = vrot.slane %v5889, 4
      %v5892 = vrot.slane %v5059, 5
      %v5893 = vsel %vm2588, %v5891, %v5892
      %v5894 = vrot.slane %v5806, 5
      %v5895 = vrot.slane %v5894, 4
      %v5896 = vrot.slane %v5061, 5
      %v5897 = vsel %vm2588, %v5895, %v5896
      %v5898 = vrot.slane %v5896, 4
      %v5899 = vrot.slane %v5062, 5
      %v5900 = vsel %vm2588, %v5898, %v5899
      %v5901 = vrot.slane %v5807, 5
      %v5902 = vrot.slane %v5901, 4
      %v5903 = vrot.slane %v5064, 5
      %v5904 = vsel %vm2588, %v5902, %v5903
      %v5905 = vrot.slane %v5903, 4
      %v5906 = vrot.slane %v5065, 5
      %v5907 = vsel %vm2588, %v5905, %v5906
      %v5908 = vrot.slane %v5808, 5
      %v5909 = vrot.slane %v5908, 4
      %v5910 = vrot.slane %v5067, 5
      %v5911 = vsel %vm2588, %v5909, %v5910
      %v5912 = vrot.slane %v5910, 4
      %v5913 = vrot.slane %v5068, 5
      %v5914 = vsel %vm2588, %v5912, %v5913
      %v5915 = vrot.slane %v5809, 5
      %v5916 = vrot.slane %v5915, 4
      %v5917 = vrot.slane %v5070, 5
      %v5918 = vsel %vm2588, %v5916, %v5917
      %v5919 = vrot.slane %v5917, 4
      %v5920 = vrot.slane %v5071, 5
      %v5921 = vsel %vm2588, %v5919, %v5920
      %v5922 = vrot.slane %v5810, 5
      %v5923 = vrot.slane %v5922, 4
      %v5924 = vrot.slane %v5073, 5
      %v5925 = vsel %vm2588, %v5923, %v5924
      %v5926 = vrot.slane %v5924, 4
      %v5927 = vrot.slane %v5074, 5
      %v5928 = vsel %vm2588, %v5926, %v5927
      %v5929 = vrot.slane %v5811, 5
      %v5930 = vrot.slane %v5929, 4
      %v5931 = vrot.slane %v5076, 5
      %v5932 = vsel %vm2588, %v5930, %v5931
      %v5933 = vrot.slane %v5931, 4
      %v5934 = vrot.slane %v5077, 5
      %v5935 = vsel %vm2588, %v5933, %v5934
      %v5936 = vrot.slane %v5812, 5
      %v5937 = vrot.slane %v5936, 4
      %v5938 = vrot.slane %v5079, 5
      %v5939 = vsel %vm2588, %v5937, %v5938
      %v5940 = vrot.slane %v5938, 4
      %v5941 = vrot.slane %v5080, 5
      %v5942 = vsel %vm2588, %v5940, %v5941
      %v5943 = vrot.slane %v5813, 5
      %v5944 = vrot.slane %v5943, 4
      %v5945 = vrot.slane %v5082, 5
      %v5946 = vsel %vm2588, %v5944, %v5945
      %v5947 = vrot.slane %v5945, 4
      %v5948 = vrot.slane %v5083, 5
      %v5949 = vsel %vm2588, %v5947, %v5948
      %v5950 = vrot.slane %v5814, 5
      %v5951 = vrot.slane %v5950, 4
      %v5952 = vrot.slane %v5085, 5
      %v5953 = vsel %vm2588, %v5951, %v5952
      %v5954 = vrot.slane %v5952, 4
      %v5955 = vrot.slane %v5086, 5
      %v5956 = vsel %vm2588, %v5954, %v5955
      %v5957 = vrot.slane %v5815, 5
      %v5958 = vrot.slane %v5957, 4
      %v5959 = vrot.slane %v5088, 5
      %v5960 = vsel %vm2588, %v5958, %v5959
      %v5961 = vrot.slane %v5959, 4
      %v5962 = vrot.slane %v5089, 5
      %v5963 = vsel %vm2588, %v5961, %v5962
      %v5964 = vrot.slane %v5816, 5
      %v5965 = vrot.slane %v5964, 4
      %v5966 = vrot.slane %v5091, 5
      %v5967 = vsel %vm2588, %v5965, %v5966
      %v5968 = vrot.slane %v5966, 4
      %v5969 = vrot.slane %v5092, 5
      %v5970 = vsel %vm2588, %v5968, %v5969
      %v5971 = vrot.slane %v5817, 5
      %v5972 = vrot.slane %v5971, 4
      %v5973 = vrot.slane %v5094, 5
      %v5974 = vsel %vm2588, %v5972, %v5973
      %v5975 = vrot.slane %v5973, 4
      %v5976 = vrot.slane %v5095, 5
      %v5977 = vsel %vm2588, %v5975, %v5976
      %s5978 = scalar_lea.vmem %s3, 512
      %v5979 = vld [vmem:[%s5978] sm:$0xf]
      %v5980 = vld [vmem:[%s5978 + $0x4] sm:$0xf]
      %v5981 = vld [vmem:[%s5978 + $0x8] sm:$0xf]
      %v5982 = vld [vmem:[%s5978 + $0xc] sm:$0xf]
      %v5983 = vld [vmem:[%s5978 + $0x10] sm:$0xf]
      %v5984 = vld [vmem:[%s5978 + $0x14] sm:$0xf]
      %v5985 = vld [vmem:[%s5978 + $0x18] sm:$0xf]
      %v5986 = vld [vmem:[%s5978 + $0x1c] sm:$0xf]
      %v5987 = vld [vmem:[%s5978 + $0x20] sm:$0xf]
      %v5988 = vld [vmem:[%s5978 + $0x24] sm:$0xf]
      %v5989 = vld [vmem:[%s5978 + $0x28] sm:$0xf]
      %v5990 = vld [vmem:[%s5978 + $0x2c] sm:$0xf]
      %v5991 = vld [vmem:[%s5978 + $0x30] sm:$0xf]
      %v5992 = vld [vmem:[%s5978 + $0x34] sm:$0xf]
      %v5993 = vld [vmem:[%s5978 + $0x38] sm:$0xf]
      %v5994 = vld [vmem:[%s5978 + $0x3c] sm:$0xf]
      %v5995 = vunpack.c.l.b16 %v5869
      %v5996 = vunpack.c.l.b16 %v5872
      %v5997 = vunpack.c.l.b16 %v5876
      %v5998 = vunpack.c.l.b16 %v5879
      %v5999 = vunpack.c.l.b16 %v5883
      %v6000 = vunpack.c.l.b16 %v5886
      %v6001 = vunpack.c.l.b16 %v5890
      %v6002 = vunpack.c.l.b16 %v5893
      %v6003 = vunpack.c.l.b16 %v5897
      %v6004 = vunpack.c.l.b16 %v5900
      %v6005 = vunpack.c.l.b16 %v5904
      %v6006 = vunpack.c.l.b16 %v5907
      %v6007 = vunpack.c.l.b16 %v5911
      %v6008 = vunpack.c.l.b16 %v5914
      %v6009 = vunpack.c.l.b16 %v5918
      %v6010 = vunpack.c.l.b16 %v5921
      %v6011 = vunpack.c.l.b16 %v5925
      %v6012 = vunpack.c.l.b16 %v5928
      %v6013 = vunpack.c.l.b16 %v5932
      %v6014 = vunpack.c.l.b16 %v5935
      %v6015 = vunpack.c.l.b16 %v5939
      %v6016 = vunpack.c.l.b16 %v5942
      %v6017 = vunpack.c.l.b16 %v5946
      %v6018 = vunpack.c.l.b16 %v5949
      %v6019 = vunpack.c.l.b16 %v5953
      %v6020 = vunpack.c.l.b16 %v5956
      %v6021 = vunpack.c.l.b16 %v5960
      %v6022 = vunpack.c.l.b16 %v5963
      %v6023 = vunpack.c.l.b16 %v5967
      %v6024 = vunpack.c.l.b16 %v5970
      %v6025 = vunpack.c.l.b16 %v5974
      %v6026 = vunpack.c.l.b16 %v5977
      %v6027 = vpack.c.b16 %v5996, %v5995
      %v6028 = vpack.c.b16 %v5998, %v5997
      %v6029 = vpack.c.b16 %v6000, %v5999
      %v6030 = vpack.c.b16 %v6002, %v6001
      %v6031 = vpack.c.b16 %v6004, %v6003
      %v6032 = vpack.c.b16 %v6006, %v6005
      %v6033 = vpack.c.b16 %v6008, %v6007
      %v6034 = vpack.c.b16 %v6010, %v6009
      %v6035 = vpack.c.b16 %v6012, %v6011
      %v6036 = vpack.c.b16 %v6014, %v6013
      %v6037 = vpack.c.b16 %v6016, %v6015
      %v6038 = vpack.c.b16 %v6018, %v6017
      %v6039 = vpack.c.b16 %v6020, %v6019
      %v6040 = vpack.c.b16 %v6022, %v6021
      %v6041 = vpack.c.b16 %v6024, %v6023
      %v6042 = vpack.c.b16 %v6026, %v6025
      %v6075 = vunpack.c.l.b16 %v5979
      %v6076 = vunpack.c.l.b16 %v5980
      %v6077 = vunpack.c.l.b16 %v5981
      %v6078 = vunpack.c.l.b16 %v5982
      %v6079 = vunpack.c.l.b16 %v5983
      %v6080 = vunpack.c.l.b16 %v5984
      %v6081 = vunpack.c.l.b16 %v5985
      %v6082 = vunpack.c.l.b16 %v5986
      %v6083 = vunpack.c.l.b16 %v5987
      %v6084 = vunpack.c.l.b16 %v5988
      %v6085 = vunpack.c.l.b16 %v5989
      %v6086 = vunpack.c.l.b16 %v5990
      %v6087 = vunpack.c.l.b16 %v5991
      %v6088 = vunpack.c.l.b16 %v5992
      %v6089 = vunpack.c.l.b16 %v5993
      %v6090 = vunpack.c.l.b16 %v5994
      %v6091 = vpack.c.b16 %v6076, %v6075
      %v6092 = vpack.c.b16 %v6078, %v6077
      %v6093 = vpack.c.b16 %v6080, %v6079
      %v6094 = vpack.c.b16 %v6082, %v6081
      %v6095 = vpack.c.b16 %v6084, %v6083
      %v6096 = vpack.c.b16 %v6086, %v6085
      %v6097 = vpack.c.b16 %v6088, %v6087
      %v6098 = vpack.c.b16 %v6090, %v6089
      %6107 = vmatprep.subr.bf16.mxu0 0
      %6108 = vmatpush1.bf16.msra.mxu0 %v6098
      %6109 = vmatprep.subr.bf16.mxu0 0
      %6110 = vmatpush1.bf16.msra.mxu0 %v6097
      %6111 = vmatprep.subr.bf16.mxu0 0
      %6112 = vmatpush1.bf16.msra.mxu0 %v6096
      %6113 = vmatprep.subr.bf16.mxu0 0
      %6114 = vmatpush1.bf16.msra.mxu0 %v6095
      %6115 = vmatprep.subr.bf16.mxu0 0
      %6116 = vmatpush1.bf16.msra.mxu0 %v6094
      %6117 = vmatprep.subr.bf16.mxu0 0
      %6118 = vmatpush1.bf16.msra.mxu0 %v6093
      %6119 = vmatprep.subr.bf16.mxu0 0
      %6120 = vmatpush1.bf16.msra.mxu0 %v6092
      %6121 = vmatprep.subr.bf16.mxu0 0
      %6122 = vmatpush1.bf16.msra.mxu0 %v6091
      %6123 = vmatprep.subr.bf16.mxu0 0
      %6124 = vmatpush2.bf16.msra.mxu0 0
      %6125 = vmatprep.subr.bf16.mxu0 0
      %6126 = vmatpush2.bf16.msra.mxu0 0
      %6127 = vmatprep.subr.bf16.mxu0 0
      %6128 = vmatpush2.bf16.msra.mxu0 0
      %6129 = vmatprep.subr.bf16.mxu0 0
      %6130 = vmatpush2.bf16.msra.mxu0 0
      %6131 = vmatprep.subr.bf16.mxu0 0
      %6132 = vmatpush2.bf16.msra.mxu0 0
      %6133 = vmatprep.subr.bf16.mxu0 0
      %6134 = vmatpush2.bf16.msra.mxu0 0
      %6135 = vmatprep.subr.bf16.mxu0 0
      %6136 = vmatpush2.bf16.msra.mxu0 0
      %6137 = vmatprep.subr.bf16.mxu0 0
      %6138 = vmatpush2.bf16.msra.mxu0 0
      %6139 = vmatprep.mubr.bf16.mxu0 0
      %6140 = vmatmul.mubr.bf16.gmra.mxu0 %v6027
      %v6141 = vpop.f32.mrf.mxu0
      %v6142 = vadd.f32 0.0, %v6141
      %v6143 = vpop.f32.mrf.mxu0
      %v6144 = vpop.f32.mrf.mxu0
      %v6145 = vadd.f32 0.0, %v6144
      %v6146 = vpop.f32.mrf.mxu0
      %6147 = vmatprep.mubr.bf16.mxu0 0
      %6148 = vmatmul.mubr.bf16.gmra.mxu0 %v6028
      %v6149 = vpop.f32.mrf.mxu0
      %v6150 = vadd.f32 0.0, %v6149
      %v6151 = vpop.f32.mrf.mxu0
      %v6152 = vpop.f32.mrf.mxu0
      %v6153 = vadd.f32 0.0, %v6152
      %v6154 = vpop.f32.mrf.mxu0
      %6155 = vmatprep.mubr.bf16.mxu0 0
      %6156 = vmatmul.mubr.bf16.gmra.mxu0 %v6029
      %v6157 = vpop.f32.mrf.mxu0
      %v6158 = vadd.f32 0.0, %v6157
      %v6159 = vpop.f32.mrf.mxu0
      %v6160 = vpop.f32.mrf.mxu0
      %v6161 = vadd.f32 0.0, %v6160
      %v6162 = vpop.f32.mrf.mxu0
      %6163 = vmatprep.mubr.bf16.mxu0 0
      %6164 = vmatmul.mubr.bf16.gmra.mxu0 %v6030
      %v6165 = vpop.f32.mrf.mxu0
      %v6166 = vadd.f32 0.0, %v6165
      %v6167 = vpop.f32.mrf.mxu0
      %v6168 = vpop.f32.mrf.mxu0
      %v6169 = vadd.f32 0.0, %v6168
      %v6170 = vpop.f32.mrf.mxu0
      %6171 = vmatprep.mubr.bf16.mxu0 0
      %6172 = vmatmul.mubr.bf16.gmra.mxu0 %v6031
      %v6173 = vpop.f32.mrf.mxu0
      %v6174 = vadd.f32 0.0, %v6173
      %v6175 = vpop.f32.mrf.mxu0
      %v6176 = vpop.f32.mrf.mxu0
      %v6177 = vadd.f32 0.0, %v6176
      %v6178 = vpop.f32.mrf.mxu0
      %6179 = vmatprep.mubr.bf16.mxu0 0
      %6180 = vmatmul.mubr.bf16.gmra.mxu0 %v6032
      %v6181 = vpop.f32.mrf.mxu0
      %v6182 = vadd.f32 0.0, %v6181
      %v6183 = vpop.f32.mrf.mxu0
      %v6184 = vpop.f32.mrf.mxu0
      %v6185 = vadd.f32 0.0, %v6184
      %v6186 = vpop.f32.mrf.mxu0
      %6187 = vmatprep.mubr.bf16.mxu0 0
      %6188 = vmatmul.mubr.bf16.gmra.mxu0 %v6033
      %v6189 = vpop.f32.mrf.mxu0
      %v6190 = vadd.f32 0.0, %v6189
      %v6191 = vpop.f32.mrf.mxu0
      %v6192 = vpop.f32.mrf.mxu0
      %v6193 = vadd.f32 0.0, %v6192
      %v6194 = vpop.f32.mrf.mxu0
      %6195 = vmatprep.mubr.bf16.mxu0 0
      %6196 = vmatmul.mubr.bf16.gmra.mxu0 %v6034
      %v6197 = vpop.f32.mrf.mxu0
      %v6198 = vadd.f32 0.0, %v6197
      %v6199 = vpop.f32.mrf.mxu0
      %v6200 = vpop.f32.mrf.mxu0
      %v6201 = vadd.f32 0.0, %v6200
      %v6202 = vpop.f32.mrf.mxu0
      %6203 = vmatprep.mubr.bf16.mxu0 0
      %6204 = vmatmul.mubr.bf16.gmra.mxu0 %v6035
      %v6205 = vpop.f32.mrf.mxu0
      %v6206 = vadd.f32 0.0, %v6205
      %v6207 = vpop.f32.mrf.mxu0
      %v6208 = vpop.f32.mrf.mxu0
      %v6209 = vadd.f32 0.0, %v6208
      %v6210 = vpop.f32.mrf.mxu0
      %6211 = vmatprep.mubr.bf16.mxu0 0
      %6212 = vmatmul.mubr.bf16.gmra.mxu0 %v6036
      %v6213 = vpop.f32.mrf.mxu0
      %v6214 = vadd.f32 0.0, %v6213
      %v6215 = vpop.f32.mrf.mxu0
      %v6216 = vpop.f32.mrf.mxu0
      %v6217 = vadd.f32 0.0, %v6216
      %v6218 = vpop.f32.mrf.mxu0
      %6219 = vmatprep.mubr.bf16.mxu0 0
      %6220 = vmatmul.mubr.bf16.gmra.mxu0 %v6037
      %v6221 = vpop.f32.mrf.mxu0
      %v6222 = vadd.f32 0.0, %v6221
      %v6223 = vpop.f32.mrf.mxu0
      %v6224 = vpop.f32.mrf.mxu0
      %v6225 = vadd.f32 0.0, %v6224
      %v6226 = vpop.f32.mrf.mxu0
      %6227 = vmatprep.mubr.bf16.mxu0 0
      %6228 = vmatmul.mubr.bf16.gmra.mxu0 %v6038
      %v6229 = vpop.f32.mrf.mxu0
      %v6230 = vadd.f32 0.0, %v6229
      %v6231 = vpop.f32.mrf.mxu0
      %v6232 = vpop.f32.mrf.mxu0
      %v6233 = vadd.f32 0.0, %v6232
      %v6234 = vpop.f32.mrf.mxu0
      %6235 = vmatprep.mubr.bf16.mxu0 0
      %6236 = vmatmul.mubr.bf16.gmra.mxu0 %v6039
      %v6237 = vpop.f32.mrf.mxu0
      %v6238 = vadd.f32 0.0, %v6237
      %v6239 = vpop.f32.mrf.mxu0
      %v6240 = vpop.f32.mrf.mxu0
      %v6241 = vadd.f32 0.0, %v6240
      %v6242 = vpop.f32.mrf.mxu0
      %6243 = vmatprep.mubr.bf16.mxu0 0
      %6244 = vmatmul.mubr.bf16.gmra.mxu0 %v6040
      %v6245 = vpop.f32.mrf.mxu0
      %v6246 = vadd.f32 0.0, %v6245
      %v6247 = vpop.f32.mrf.mxu0
      %v6248 = vpop.f32.mrf.mxu0
      %v6249 = vadd.f32 0.0, %v6248
      %v6250 = vpop.f32.mrf.mxu0
      %6251 = vmatprep.mubr.bf16.mxu0 0
      %6252 = vmatmul.mubr.bf16.gmra.mxu0 %v6041
      %v6253 = vpop.f32.mrf.mxu0
      %v6254 = vadd.f32 0.0, %v6253
      %v6255 = vpop.f32.mrf.mxu0
      %v6256 = vpop.f32.mrf.mxu0
      %v6257 = vadd.f32 0.0, %v6256
      %v6258 = vpop.f32.mrf.mxu0
      %6259 = vmatprep.mubr.bf16.mxu0 0
      %6260 = vmatmul.mubr.bf16.gmra.mxu0 %v6042
      %v6261 = vpop.f32.mrf.mxu0
      %v6262 = vadd.f32 0.0, %v6261
      %v6263 = vpop.f32.mrf.mxu0
      %v6264 = vpop.f32.mrf.mxu0
      %v6265 = vadd.f32 0.0, %v6264
      %v6266 = vpop.f32.mrf.mxu0
      %6267 = vdwg.mxu0
      %v6268 = vadd.f32 %v5770, %v6142
      %v6269 = vadd.f32 %v5771, %v6145
      %v6270 = vadd.f32 %v5772, %v6150
      %v6271 = vadd.f32 %v5773, %v6153
      %v6272 = vadd.f32 %v5774, %v6158
      %v6273 = vadd.f32 %v5775, %v6161
      %v6274 = vadd.f32 %v5776, %v6166
      %v6275 = vadd.f32 %v5777, %v6169
      %v6276 = vadd.f32 %v5778, %v6174
      %v6277 = vadd.f32 %v5779, %v6177
      %v6278 = vadd.f32 %v5780, %v6182
      %v6279 = vadd.f32 %v5781, %v6185
      %v6280 = vadd.f32 %v5782, %v6190
      %v6281 = vadd.f32 %v5783, %v6193
      %v6282 = vadd.f32 %v5784, %v6198
      %v6283 = vadd.f32 %v5785, %v6201
      %v6284 = vadd.f32 %v5786, %v6206
      %v6285 = vadd.f32 %v5787, %v6209
      %v6286 = vadd.f32 %v5788, %v6214
      %v6287 = vadd.f32 %v5789, %v6217
      %v6288 = vadd.f32 %v5790, %v6222
      %v6289 = vadd.f32 %v5791, %v6225
      %v6290 = vadd.f32 %v5792, %v6230
      %v6291 = vadd.f32 %v5793, %v6233
      %v6292 = vadd.f32 %v5794, %v6238
      %v6293 = vadd.f32 %v5795, %v6241
      %v6294 = vadd.f32 %v5796, %v6246
      %v6295 = vadd.f32 %v5797, %v6249
      %v6296 = vadd.f32 %v5798, %v6254
      %v6297 = vadd.f32 %v5799, %v6257
      %v6298 = vadd.f32 %v5800, %v6262
      %v6299 = vadd.f32 %v5801, %v6265
      %v6300 = vmax.f32 %v6268, 0.0
      %v6301 = vmax.f32 %v6269, 0.0
      %v6302 = vmax.f32 %v6270, 0.0
      %v6303 = vmax.f32 %v6271, 0.0
      %v6304 = vmax.f32 %v6272, 0.0
      %v6305 = vmax.f32 %v6273, 0.0
      %v6306 = vmax.f32 %v6274, 0.0
      %v6307 = vmax.f32 %v6275, 0.0
      %v6308 = vmax.f32 %v6276, 0.0
      %v6309 = vmax.f32 %v6277, 0.0
      %v6310 = vmax.f32 %v6278, 0.0
      %v6311 = vmax.f32 %v6279, 0.0
      %v6312 = vmax.f32 %v6280, 0.0
      %v6313 = vmax.f32 %v6281, 0.0
      %v6314 = vmax.f32 %v6282, 0.0
      %v6315 = vmax.f32 %v6283, 0.0
      %v6316 = vmax.f32 %v6284, 0.0
      %v6317 = vmax.f32 %v6285, 0.0
      %v6318 = vmax.f32 %v6286, 0.0
      %v6319 = vmax.f32 %v6287, 0.0
      %v6320 = vmax.f32 %v6288, 0.0
      %v6321 = vmax.f32 %v6289, 0.0
      %v6322 = vmax.f32 %v6290, 0.0
      %v6323 = vmax.f32 %v6291, 0.0
      %v6324 = vmax.f32 %v6292, 0.0
      %v6325 = vmax.f32 %v6293, 0.0
      %v6326 = vmax.f32 %v6294, 0.0
      %v6327 = vmax.f32 %v6295, 0.0
      %v6328 = vmax.f32 %v6296, 0.0
      %v6329 = vmax.f32 %v6297, 0.0
      %v6330 = vmax.f32 %v6298, 0.0
      %v6331 = vmax.f32 %v6299, 0.0
      %6332 = vst [vmem:[%s224] sm:$0xff] %v6300
      %6333 = vst [vmem:[%s224 + $0x8] sm:$0xff] %v6301
      %6334 = vst [vmem:[%s224 + $0x10] sm:$0xff] %v6302
      %6335 = vst [vmem:[%s224 + $0x18] sm:$0xff] %v6303
      %6336 = vst [vmem:[%s224 + $0x20] sm:$0xff] %v6304
      %6337 = vst [vmem:[%s224 + $0x28] sm:$0xff] %v6305
      %6338 = vst [vmem:[%s224 + $0x30] sm:$0xff] %v6306
      %6339 = vst [vmem:[%s224 + $0x38] sm:$0xff] %v6307
      %6340 = vst [vmem:[%s224 + $0x40] sm:$0xff] %v6308
      %6341 = vst [vmem:[%s224 + $0x48] sm:$0xff] %v6309
      %6342 = vst [vmem:[%s224 + $0x50] sm:$0xff] %v6310
      %6343 = vst [vmem:[%s224 + $0x58] sm:$0xff] %v6311
      %6344 = vst [vmem:[%s224 + $0x60] sm:$0xff] %v6312
      %6345 = vst [vmem:[%s224 + $0x68] sm:$0xff] %v6313
      %6346 = vst [vmem:[%s224 + $0x70] sm:$0xff] %v6314
      %6347 = vst [vmem:[%s224 + $0x78] sm:$0xff] %v6315
      %6348 = vst [vmem:[%s224 + $0x80] sm:$0xff] %v6316
      %6349 = vst [vmem:[%s224 + $0x88] sm:$0xff] %v6317
      %6350 = vst [vmem:[%s224 + $0x90] sm:$0xff] %v6318
      %6351 = vst [vmem:[%s224 + $0x98] sm:$0xff] %v6319
      %6352 = vst [vmem:[%s224 + $0xa0] sm:$0xff] %v6320
      %6353 = vst [vmem:[%s224 + $0xa8] sm:$0xff] %v6321
      %6354 = vst [vmem:[%s224 + $0xb0] sm:$0xff] %v6322
      %6355 = vst [vmem:[%s224 + $0xb8] sm:$0xff] %v6323
      %6356 = vst [vmem:[%s224 + $0xc0] sm:$0xff] %v6324
      %6357 = vst [vmem:[%s224 + $0xc8] sm:$0xff] %v6325
      %6358 = vst [vmem:[%s224 + $0xd0] sm:$0xff] %v6326
      %6359 = vst [vmem:[%s224 + $0xd8] sm:$0xff] %v6327
      %6360 = vst [vmem:[%s224 + $0xe0] sm:$0xff] %v6328
      %6361 = vst [vmem:[%s224 + $0xe8] sm:$0xff] %v6329
      %6362 = vst [vmem:[%s224 + $0xf0] sm:$0xff] %v6330
      %6363 = vst [vmem:[%s224 + $0xf8] sm:$0xff] %v6331
      %p6364 = scmp.lt.s32.totalorder %s16, 1
      %s6365 = scalar_select %p6364, %s16, 1
      %s6366 = smul.addr %s6365, 32
      %s6367 = smul.addr %s6366, 8
      %s6368 = scalar_lea.vmem %s5, %s6367
      // Predicated region
      $region41: #{ror_res_unit.1} parent=39 // pred_check
        %p6369 = pneg %p144
      $region42: #{ror_res_unit.1} parent=39 // pred_check_branch
        %6371 = sbr.rel (%p6369) target = $region44
      $region43: #{ror_res_unit.1} parent=39 // pred_region
        _
      $region44: #{ror_res_unit.1} parent=39 // pred_fallthru
        _
    $region40: #{ror_res_unit.1} parent=5 // pred_fallthru
      _
    %p6372 = scmp.le.s32.totalorder 2, %s11
    // Predicated region
    $region45: #{ror_res_unit.1} parent=5 // pred_check
      %p6373 = pneg %p6372
    $region46: #{ror_res_unit.1} parent=5 // pred_check_branch
      %6375 = sbr.rel (%p6373) target = $region48
    $region47: #{ror_res_unit.1} parent=5 // pred_region
      %s6376 = ssub.s32 %s11, 2
      // Predicated region
      $region49: #{ror_res_unit.1} parent=47 // pred_check
        %p6377 = pneg %p150
      $region50: #{ror_res_unit.1} parent=47 // pred_check_branch
        %6379 = sbr.rel (%p6377) target = $region52
      $region51: #{ror_res_unit.1} parent=47 // pred_region
        %p6380 = scmp.lt.s32.totalorder %s17, 1
        %s6381 = scalar_select %p6380, %s17, 1
        %s6382 = smul.addr %s6381, 32
        %s6383 = smul.addr %s6382, 8
        %s6384 = scalar_lea.vmem %s5, %s6383
      $region52: #{ror_res_unit.1} parent=47 // pred_fallthru
        _
    $region48: #{ror_res_unit.1} parent=5 // pred_fallthru
      _
  $region6: #{ror_res_unit.1} parent=0 // loop_footer
    %s15 = sadd.s32 1, %s11
  $region7: #{ror_res_unit.1} parent=0 // loop_footer_branch
    %10 = sbr.rel target = $region3
  $region8: #{ror_res_unit.1} parent=0 // loop_exit
    _

</llo_original>
